<compile_context>
chip_gen: v7x
topology: tpu7x:2x2x1
jax: 0.10.0
libtpu: 0.0.40
codegen_flags: <defaults>
</compile_context>

<pallas_src>
import math
import jax
import jax.numpy as jnp
from jax.experimental import pallas as pl
from jax.experimental.pallas import tpu as pltpu


# ----------------------------- kernel ---------------------------------------


def make_block_kernel(num_heads: int, head_dim: int, dim: int, bt: int, seq: int,
                      *, exact_softmax: bool = False):
    inv_sqrt2 = 1.0 / math.sqrt(2.0)
    rows = bt * seq

    def layernorm(v, w, b):
        mu = jnp.mean(v, axis=-1, keepdims=True)
        var = jnp.mean((v - mu) ** 2, axis=-1, keepdims=True)
        return (v - mu) * jax.lax.rsqrt(var + 1e-5) * w + b

    def kernel(x_ref, ln1w_ref, ln1b_ref, wqkv_ref, wproj_ref, bproj_ref,
               ln2w_ref, ln2b_ref, wfc1_ref, bfc1_ref, wfc2_ref, bfc2_ref,
               o_ref, qkv_scr, attn_scr):
        mm = wqkv_ref.dtype                                   # MXU operand dtype
        x = x_ref[...].astype(jnp.float32).reshape(rows, dim)

        # ---- norm1 + fused QKV over all fused batch rows (big-M, full-K) ----
        xn = layernorm(x, ln1w_ref[0], ln1b_ref[0])
        qkv_scr[...] = jnp.dot(xn.astype(mm), wqkv_ref[...],
                               preferred_element_type=jnp.float32).astype(mm)

        # ---- per-batch attention; per-head outputs scatter into attn_scr ----
        def attn_body(b, carry):
            r0 = b * seq
            if not isinstance(b, int):
                r0 = pl.multiple_of(r0, 8)      # bt>1 only when seq % 8 == 0
            for h in range(num_heads):          # static unroll (heads are few)
                lo = h * head_dim
                hi = lo + head_dim
                qh = qkv_scr[pl.ds(r0, seq), 0 * dim + lo:0 * dim + hi]
                kh = qkv_scr[pl.ds(r0, seq), 1 * dim + lo:1 * dim + hi]
                vh = qkv_scr[pl.ds(r0, seq), 2 * dim + lo:2 * dim + hi]
                # q @ k^T, contracting last axes -> no kh.T relayout.
                s = jax.lax.dot_general(
                    qh, kh, (((1,), (1,)), ((), ())),
                    preferred_element_type=jnp.float32)       # (seq, seq) f32
                s = s - jnp.max(s, axis=-1, keepdims=True)
                p = jnp.exp(s)
                denom = jnp.sum(p, axis=-1, keepdims=True)
                if exact_softmax:
                    p = p / denom
                else:
                    p = p * pl.reciprocal(denom, approx=True)  # EUP slot
                oh = jnp.dot(p.astype(mm), vh,
                             preferred_element_type=jnp.float32)  # (seq, D)
                attn_scr[pl.ds(r0, seq), lo:hi] = oh.astype(mm)
            return carry

        if bt == 1:
            attn_body(0, None)
        else:
            jax.lax.fori_loop(0, bt, attn_body, None)

        # ---- single full-K output projection over all fused rows ----
        attn_out = jnp.dot(attn_scr[...], wproj_ref[...],
                           preferred_element_type=jnp.float32)     # (rows, C)
        x = x + attn_out + bproj_ref[0]                       # residual 1 (f32)

        # ---- norm2 + MLP on fused rows ----
        xn2 = layernorm(x, ln2w_ref[0], ln2b_ref[0])
        h1 = jnp.dot(xn2.astype(mm), wfc1_ref[...],
                     preferred_element_type=jnp.float32) + bfc1_ref[0]
        h1 = 0.5 * h1 * (1.0 + jax.lax.erf(h1 * inv_sqrt2))   # exact GELU
        h2 = jnp.dot(h1.astype(mm), wfc2_ref[...],
                     preferred_element_type=jnp.float32) + bfc2_ref[0]
        o_ref[...] = (x + h2).reshape(bt, seq, dim).astype(o_ref.dtype)

    return kernel


# ----------------------------- wrapper ---------------------------------------


def _tpu_info():
    try:
        return pltpu.get_tpu_info()
    except Exception:
        return None


def _target_rows() -> int:
    """Bigger activation tiles on v5e (128 MiB VMEM, slow HBM)."""
    info = _tpu_info()
    name = str(getattr(info, "chip_version", "")).lower() if info else ""
    if "5" in name:
        return 512
    return 256


def _pick_batch_tile(B: int, N: int, target_rows: int) -> int:
    """Choose a batch tile bt (divisor of B) such that bt*N ~ target_rows.

    Rules from the perf review:
      * bt = 1 whenever N % 8 != 0 (keeps per-batch row slices sublane-aligned).
      * keep >= 2 grid blocks when B >= 2, preferring an EVEN grid length so
        both v7x TensorCores stay balanced.
    """
    if N % 8 != 0:
        return 1
    want = max(1, target_rows // N)
    candidates = [bt for bt in range(1, B + 1) if B % bt == 0 and bt <= want]
    if not candidates:
        candidates = [1]
    if B >= 2:
        two_plus = [bt for bt in candidates if B // bt >= 2]
        candidates = two_plus or [1]
    even = [bt for bt in candidates if (B // bt) % 2 == 0]
    pool = even or candidates
    return max(pool)


def _vmem_limit_bytes(required_bytes: int) -> int:
    cap = 64 << 20                                  # conservative (v7x) default
    info = _tpu_info()
    if info is not None:
        cap = int(getattr(info, "vmem_capacity_bytes", cap)) or cap
    headroom = cap - cap // 8                       # leave ~12.5% for Mosaic
    if required_bytes > headroom:
        raise ValueError(
            f"ViT block VMEM requirement ~{required_bytes >> 20} MiB exceeds usable "
            f"VMEM ~{headroom >> 20} MiB on this chip; use matmul_dtype=bfloat16 "
            f"and/or reduce the batch tile / model width.")
    return max(min(headroom, max(2 * required_bytes, 48 << 20)), required_bytes)


def vit_block(x, params, num_heads, *, matmul_dtype=None, exact_softmax=False,
              single_buffer_weights=True):
    B, N, C = x.shape
    head_dim = C // num_heads
    hidden = params["w_fc1"].shape[1]

    bt = _pick_batch_tile(B, N, _target_rows())
    grid = (B // bt,)
    rows = bt * N

    f32 = jnp.float32
    param_dtype = params["w_qkv"].dtype
    if matmul_dtype is not None:
        mm = matmul_dtype
    else:
        # bf16 MXU operands by default (v6e/v7x native datapath, halves weight
        # VMEM residency). f32 stays available as an explicit accuracy mode.
        mm = jnp.bfloat16 if param_dtype == jnp.float32 else param_dtype

    # --- param prep (outside the kernel, one-time in real deployments) ---
    scale = head_dim ** (-0.5)
    w_qkv = params["w_qkv"].astype(f32)
    w_qkv = w_qkv.at[:, :C].multiply(scale)          # fold softmax scale into q cols
    w_qkv = w_qkv.astype(mm)
    w_proj = params["w_proj"].astype(mm)
    w_fc1 = params["w_fc1"].astype(mm)
    w_fc2 = params["w_fc2"].astype(mm)
    ln1_w = params["ln1_w"].astype(f32)
    ln1_b = params["ln1_b"].astype(f32)
    ln2_w = params["ln2_w"].astype(f32)
    ln2_b = params["ln2_b"].astype(f32)
    b_proj = params["b_proj"].astype(f32)
    b_fc1 = params["b_fc1"].astype(f32)
    b_fc2 = params["b_fc2"].astype(f32)

    kernel = make_block_kernel(num_heads, head_dim, C, bt, N,
                               exact_softmax=exact_softmax)

    mm_b = jnp.dtype(mm).itemsize
    x_b = jnp.dtype(x.dtype).itemsize
    weight_bytes = (3 * C * C + C * C + C * hidden + hidden * C) * mm_b \
                   + (6 * C + hidden) * 4
    act_block = rows * C * x_b
    scratch_bytes = rows * (3 * C + C) * mm_b
    interm_bytes = rows * (2 * C + 3 * C + hidden + C) * 4     # f32 live values
    weight_bufs = 1 if single_buffer_weights else 2
    required = (weight_bufs * weight_bytes + 4 * act_block
                + scratch_bytes + interm_bytes)

    cost = pl.CostEstimate(
        flops=2 * B * N * (3 * C * C + C * C + C * hidden + hidden * C)
              + 4 * B * N * N * C,
        transcendentals=B * num_heads * N * N + B * N * hidden,
        bytes_accessed=2 * B * N * C * x_b + weight_bytes,
    )

    def wspec(shape):
        # Grid-invariant weights: single-buffer (index_map constant across grid).
        if single_buffer_weights:
            return pl.BlockSpec(shape, lambda b: (0, 0),
                                pipeline_mode=pl.Buffered(1))
        return pl.BlockSpec(shape, lambda b: (0, 0))

    in_specs = [
        pl.BlockSpec((bt, N, C), lambda b: (b, 0, 0)),   # x (streamed per step)
        wspec((1, C)),                                   # ln1 weight
        wspec((1, C)),                                   # ln1 bias
        wspec((C, 3 * C)),                               # qkv weight (in, out)
        wspec((C, C)),                                   # proj weight (in, out)
        wspec((1, C)),                                   # proj bias
        wspec((1, C)),                                   # ln2 weight
        wspec((1, C)),                                   # ln2 bias
        wspec((C, hidden)),                              # fc1 weight (in, out)
        wspec((1, hidden)),                              # fc1 bias
        wspec((hidden, C)),                              # fc2 weight (in, out)
        wspec((1, C)),                                   # fc2 bias
    ]
    out_spec = pl.BlockSpec((bt, N, C), lambda b: (b, 0, 0))

    return pl.pallas_call(
        kernel,
        out_shape=jax.ShapeDtypeStruct((B, N, C), x.dtype),
        grid_spec=pltpu.PrefetchScalarGridSpec(
            num_scalar_prefetch=0,
            grid=grid,
            in_specs=in_specs,
            out_specs=out_spec,
            scratch_shapes=[pltpu.VMEM((rows, 3 * C), mm),   # staged qkv
                            pltpu.VMEM((rows, C), mm)],      # per-head attn out
        ),
        compiler_params=pltpu.CompilerParams(
            dimension_semantics=("parallel",),
            vmem_limit_bytes=_vmem_limit_bytes(required)),
        cost_estimate=cost,
    )(x, ln1_w, ln1_b, w_qkv, w_proj, b_proj,
      ln2_w, ln2_b, w_fc1, b_fc1, w_fc2, b_fc2)


# ----------------------------- reference -------------------------------------


def reference_block(x, params, num_heads):
    B, N, C = x.shape
    D = C // num_heads
    scale = D ** (-0.5)

    def ln(v, w, b):
        mu = jnp.mean(v, axis=-1, keepdims=True)
        var = jnp.mean((v - mu) ** 2, axis=-1, keepdims=True)
        return (v - mu) / jnp.sqrt(var + 1e-5) * w[0] + b[0]

    xn = ln(x, params["ln1_w"], params["ln1_b"])
    qkv = xn @ params["w_qkv"]                                  # (B,N,3C)
    qkv = qkv.reshape(B, N, 3, num_heads, D).transpose(2, 0, 3, 1, 4)
    q, k, v = qkv[0] * scale, qkv[1], qkv[2]                    # (B,H,N,D)
    attn = jax.nn.softmax(q @ k.transpose(0, 1, 3, 2), axis=-1)
    o = (attn @ v).transpose(0, 2, 1, 3).reshape(B, N, C)
    o = o @ params["w_proj"] + params["b_proj"][0]
    x = x + o
    xn2 = ln(x, params["ln2_w"], params["ln2_b"])
    h = xn2 @ params["w_fc1"] + params["b_fc1"][0]
    h = 0.5 * h * (1.0 + jax.lax.erf(h / math.sqrt(2.0)))
    h = h @ params["w_fc2"] + params["b_fc2"][0]
    return x + h


# ------------------------------- demo -----------------------------------------


if __name__ == "__main__":
    B, N, C = 4, 8, 32
    num_heads = 4
    mlp_ratio = 4.0
    hidden = int(C * mlp_ratio)

    key = jax.random.PRNGKey(0)
    ks = jax.random.split(key, 8)
    s = 0.02
    params = {
        "ln1_w": jnp.ones((1, C), jnp.float32),
        "ln1_b": jnp.zeros((1, C), jnp.float32),
        "w_qkv": s * jax.random.normal(ks[0], (C, 3 * C), jnp.float32),
        "w_proj": s * jax.random.normal(ks[1], (C, C), jnp.float32),
        "b_proj": s * jax.random.normal(ks[2], (1, C), jnp.float32),
        "ln2_w": jnp.ones((1, C), jnp.float32),
        "ln2_b": jnp.zeros((1, C), jnp.float32),
        "w_fc1": s * jax.random.normal(ks[3], (C, hidden), jnp.float32),
        "b_fc1": s * jax.random.normal(ks[4], (1, hidden), jnp.float32),
        "w_fc2": s * jax.random.normal(ks[5], (hidden, C), jnp.float32),
        "b_fc2": s * jax.random.normal(ks[6], (1, C), jnp.float32),
    }
    x = jax.random.normal(ks[7], (B, N, C), jnp.float32)

    ref = reference_block(x, params, num_heads)

    def run(**kw):
        # Fallback if pipeline_mode=Buffered(1) is unsupported in this build.
        try:
            return vit_block(x, params, num_heads, **kw)
        except Exception:
            return vit_block(x, params, num_heads,
                             single_buffer_weights=False, **kw)

    # Opt-in accuracy mode: f32 MXU operands + exact softmax reciprocal.
    out_f32 = run(matmul_dtype=jnp.float32, exact_softmax=True)
    jax.block_until_ready(out_f32)
    assert out_f32.shape == (B, N, C)
    assert jnp.allclose(out_f32, ref, atol=1e-3, rtol=1e-3), "f32 path mismatch"

    # Default path: bf16 MXU operands (f32 accumulation; LN/softmax/GELU/residuals f32).
    out = run()
    jax.block_until_ready(out)
    assert out.shape == (B, N, C)
    assert jnp.allclose(out, ref, atol=3e-2, rtol=3e-2), "default (bf16) path mismatch"

    print("KERNEL_OK")
</pallas_src>

<mosaic_0001>
module attributes {stable_mosaic.version = 11 : i64} {
  func.func @kernel(%arg0: i32, %arg1: memref<2x8x32xf32, #tpu.memory_space<vmem>>, %arg2: memref<1x32xf32, #tpu.memory_space<vmem>>, %arg3: memref<1x32xf32, #tpu.memory_space<vmem>>, %arg4: memref<32x96xf32, #tpu.memory_space<vmem>>, %arg5: memref<32x32xf32, #tpu.memory_space<vmem>>, %arg6: memref<1x32xf32, #tpu.memory_space<vmem>>, %arg7: memref<1x32xf32, #tpu.memory_space<vmem>>, %arg8: memref<1x32xf32, #tpu.memory_space<vmem>>, %arg9: memref<32x128xf32, #tpu.memory_space<vmem>>, %arg10: memref<1x128xf32, #tpu.memory_space<vmem>>, %arg11: memref<128x32xf32, #tpu.memory_space<vmem>>, %arg12: memref<1x32xf32, #tpu.memory_space<vmem>>, %arg13: memref<2x8x32xf32, #tpu.memory_space<vmem>>, %arg14: memref<16x96xf32, #tpu.memory_space<vmem>>, %arg15: memref<16x32xf32, #tpu.memory_space<vmem>>) attributes {dimension_semantics = [#tpu.dimension_semantics<parallel>], iteration_bounds = array<i64: 2>, scalar_prefetch = 0 : i64, scratch_operands = 2 : i64, tpu.core_type = #tpu.core_type<tc>, window_params = [{transform_indices = @transform_0, window_bounds = array<i64: 2, 8, 32>}, {pipeline_mode = #tpu.pipeline_mode<synchronous>, transform_indices = @transform_1, window_bounds = array<i64: 1, 32>}, {pipeline_mode = #tpu.pipeline_mode<synchronous>, transform_indices = @transform_2, window_bounds = array<i64: 1, 32>}, {pipeline_mode = #tpu.pipeline_mode<synchronous>, transform_indices = @transform_3, window_bounds = array<i64: 32, 96>}, {pipeline_mode = #tpu.pipeline_mode<synchronous>, transform_indices = @transform_4, window_bounds = array<i64: 32, 32>}, {pipeline_mode = #tpu.pipeline_mode<synchronous>, transform_indices = @transform_5, window_bounds = array<i64: 1, 32>}, {pipeline_mode = #tpu.pipeline_mode<synchronous>, transform_indices = @transform_6, window_bounds = array<i64: 1, 32>}, {pipeline_mode = #tpu.pipeline_mode<synchronous>, transform_indices = @transform_7, window_bounds = array<i64: 1, 32>}, {pipeline_mode = #tpu.pipeline_mode<synchronous>, transform_indices = @transform_8, window_bounds = array<i64: 32, 128>}, {pipeline_mode = #tpu.pipeline_mode<synchronous>, transform_indices = @transform_9, window_bounds = array<i64: 1, 128>}, {pipeline_mode = #tpu.pipeline_mode<synchronous>, transform_indices = @transform_10, window_bounds = array<i64: 128, 32>}, {pipeline_mode = #tpu.pipeline_mode<synchronous>, transform_indices = @transform_11, window_bounds = array<i64: 1, 32>}, {transform_indices = @transform_12, window_bounds = array<i64: 2, 8, 32>}]} {
    %c0 = arith.constant 0 : index
    %c0_0 = arith.constant 0 : index
    %c0_1 = arith.constant 0 : index
    %0 = vector.load %arg1[%c0, %c0_0, %c0_1] : memref<2x8x32xf32, #tpu.memory_space<vmem>>, vector<2x8x32xf32>
    %1 = vector.shape_cast %0 : vector<2x8x32xf32> to vector<16x32xf32>
    %c0_2 = arith.constant 0 : index
    %c0_3 = arith.constant 0 : index
    %2 = vector.load %arg2[%c0_2, %c0_3] : memref<1x32xf32, #tpu.memory_space<vmem>>, vector<1x32xf32>
    %3 = vector.shape_cast %2 : vector<1x32xf32> to vector<32xf32>
    %c0_4 = arith.constant 0 : index
    %c0_5 = arith.constant 0 : index
    %4 = vector.load %arg3[%c0_4, %c0_5] : memref<1x32xf32, #tpu.memory_space<vmem>>, vector<1x32xf32>
    %5 = vector.shape_cast %4 : vector<1x32xf32> to vector<32xf32>
    %cst = arith.constant dense<0.000000e+00> : vector<16xf32>
    %6 = vector.multi_reduction <add>, %1, %cst [1] : vector<16x32xf32> to vector<16xf32>
    %7 = vector.shape_cast %6 : vector<16xf32> to vector<16x1xf32>
    %cst_6 = arith.constant 3.200000e+01 : f32
    %8 = vector.broadcast %cst_6 : f32 to vector<16x1xf32>
    %9 = arith.divf %7, %8 : vector<16x1xf32>
    %10 = vector.broadcast %9 : vector<16x1xf32> to vector<16x32xf32>
    %11 = arith.subf %1, %10 : vector<16x32xf32>
    %12 = arith.mulf %11, %11 : vector<16x32xf32>
    %cst_7 = arith.constant dense<0.000000e+00> : vector<16xf32>
    %13 = vector.multi_reduction <add>, %12, %cst_7 [1] : vector<16x32xf32> to vector<16xf32>
    %14 = vector.shape_cast %13 : vector<16xf32> to vector<16x1xf32>
    %cst_8 = arith.constant 3.200000e+01 : f32
    %15 = vector.broadcast %cst_8 : f32 to vector<16x1xf32>
    %16 = arith.divf %14, %15 : vector<16x1xf32>
    %17 = vector.broadcast %9 : vector<16x1xf32> to vector<16x32xf32>
    %18 = arith.subf %1, %17 : vector<16x32xf32>
    %cst_9 = arith.constant 9.99999974E-6 : f32
    %19 = vector.broadcast %cst_9 : f32 to vector<16x1xf32>
    %20 = arith.addf %16, %19 : vector<16x1xf32>
    %21 = math.rsqrt %20 : vector<16x1xf32>
    %22 = vector.broadcast %21 : vector<16x1xf32> to vector<16x32xf32>
    %23 = arith.mulf %18, %22 : vector<16x32xf32>
    %24 = vector.shape_cast %3 : vector<32xf32> to vector<1x32xf32>
    %25 = vector.broadcast %24 : vector<1x32xf32> to vector<16x32xf32>
    %26 = arith.mulf %23, %25 : vector<16x32xf32>
    %27 = vector.shape_cast %5 : vector<32xf32> to vector<1x32xf32>
    %28 = vector.broadcast %27 : vector<1x32xf32> to vector<16x32xf32>
    %29 = arith.addf %26, %28 : vector<16x32xf32>
    %c0_10 = arith.constant 0 : index
    %c0_11 = arith.constant 0 : index
    %30 = vector.load %arg4[%c0_10, %c0_11] : memref<32x96xf32, #tpu.memory_space<vmem>>, vector<32x96xf32>
    %cst_12 = arith.constant dense<0.000000e+00> : vector<16x96xf32>
    %31 = tpu.matmul %29, %30, %cst_12 {dimension_numbers = #tpu.dot_dimension_numbers<[1], [0], [0], [1], [0, 0, 1, 1], [], []>} : vector<16x32xf32>, vector<32x96xf32>, vector<16x96xf32> -> vector<16x96xf32>
    %c0_13 = arith.constant 0 : index
    %c0_14 = arith.constant 0 : index
    %32 = vector.load %arg14[%c0_13, %c0_14] : memref<16x96xf32, #tpu.memory_space<vmem>>, vector<16x96xf32>
    tpu.vector_store %arg14[%c0_13, %c0_14], %31 {strides = array<i32>} : memref<16x96xf32, #tpu.memory_space<vmem>>, vector<16x96xf32>,
    %c0_i32 = arith.constant 0 : i32
    %c2_i32 = arith.constant 2 : i32
    %33 = arith.addi %c0_i32, %c2_i32 : i32
    %c1_i32 = arith.constant 1 : i32
    scf.for %arg16 = %c0_i32 to %33 step %c1_i32  : i32 {
      %c8_i32 = arith.constant 8 : i32
      %96 = arith.muli %arg16, %c8_i32 : i32
      %97 = tpu.assume_multiple %96, 8 : i32
      %98 = arith.index_cast %97 : i32 to index
      %c0_48 = arith.constant 0 : index
      %99 = vector.load %arg14[%98, %c0_48] : memref<16x96xf32, #tpu.memory_space<vmem>>, vector<8x8xf32>
      %100 = arith.index_cast %97 : i32 to index
      %c32 = arith.constant 32 : index
      %101 = vector.load %arg14[%100, %c32] : memref<16x96xf32, #tpu.memory_space<vmem>>, vector<8x8xf32>
      %102 = arith.index_cast %97 : i32 to index
      %c64 = arith.constant 64 : index
      %103 = vector.load %arg14[%102, %c64] : memref<16x96xf32, #tpu.memory_space<vmem>>, vector<8x8xf32>
      %cst_49 = arith.constant dense<0.000000e+00> : vector<8x8xf32>
      %104 = tpu.matmul %99, %101, %cst_49 {dimension_numbers = #tpu.dot_dimension_numbers<[1], [1], [0], [0], [0, 0, 1, 0], [], []>} : vector<8x8xf32>, vector<8x8xf32>, vector<8x8xf32> -> vector<8x8xf32>
      %cst_50 = arith.constant dense<0xFF800000> : vector<8xf32>
      %105 = vector.multi_reduction <maximumf>, %104, %cst_50 [1] : vector<8x8xf32> to vector<8xf32>
      %106 = vector.shape_cast %105 : vector<8xf32> to vector<8x1xf32>
      %107 = vector.broadcast %106 : vector<8x1xf32> to vector<8x8xf32>
      %108 = arith.subf %104, %107 : vector<8x8xf32>
      %109 = math.exp %108 : vector<8x8xf32>
      %cst_51 = arith.constant dense<0.000000e+00> : vector<8xf32>
      %110 = vector.multi_reduction <add>, %109, %cst_51 [1] : vector<8x8xf32> to vector<8xf32>
      %111 = vector.shape_cast %110 : vector<8xf32> to vector<8x1xf32>
      %112 = vector.broadcast %111 : vector<8x1xf32> to vector<8x8xf32>
      %113 = arith.divf %109, %112 : vector<8x8xf32>
      %cst_52 = arith.constant dense<0.000000e+00> : vector<8x8xf32>
      %114 = tpu.matmul %113, %103, %cst_52 {dimension_numbers = #tpu.dot_dimension_numbers<[1], [0], [0], [1], [0, 0, 1, 1], [], []>} : vector<8x8xf32>, vector<8x8xf32>, vector<8x8xf32> -> vector<8x8xf32>
      %115 = arith.index_cast %97 : i32 to index
      %c0_53 = arith.constant 0 : index
      %116 = vector.load %arg15[%115, %c0_53] : memref<16x32xf32, #tpu.memory_space<vmem>>, vector<8x8xf32>
      tpu.vector_store %arg15[%115, %c0_53], %114 {strides = array<i32>} : memref<16x32xf32, #tpu.memory_space<vmem>>, vector<8x8xf32>,
      %117 = arith.index_cast %97 : i32 to index
      %c8 = arith.constant 8 : index
      %118 = vector.load %arg14[%117, %c8] : memref<16x96xf32, #tpu.memory_space<vmem>>, vector<8x8xf32>
      %119 = arith.index_cast %97 : i32 to index
      %c40 = arith.constant 40 : index
      %120 = vector.load %arg14[%119, %c40] : memref<16x96xf32, #tpu.memory_space<vmem>>, vector<8x8xf32>
      %121 = arith.index_cast %97 : i32 to index
      %c72 = arith.constant 72 : index
      %122 = vector.load %arg14[%121, %c72] : memref<16x96xf32, #tpu.memory_space<vmem>>, vector<8x8xf32>
      %cst_54 = arith.constant dense<0.000000e+00> : vector<8x8xf32>
      %123 = tpu.matmul %118, %120, %cst_54 {dimension_numbers = #tpu.dot_dimension_numbers<[1], [1], [0], [0], [0, 0, 1, 0], [], []>} : vector<8x8xf32>, vector<8x8xf32>, vector<8x8xf32> -> vector<8x8xf32>
      %cst_55 = arith.constant dense<0xFF800000> : vector<8xf32>
      %124 = vector.multi_reduction <maximumf>, %123, %cst_55 [1] : vector<8x8xf32> to vector<8xf32>
      %125 = vector.shape_cast %124 : vector<8xf32> to vector<8x1xf32>
      %126 = vector.broadcast %125 : vector<8x1xf32> to vector<8x8xf32>
      %127 = arith.subf %123, %126 : vector<8x8xf32>
      %128 = math.exp %127 : vector<8x8xf32>
      %cst_56 = arith.constant dense<0.000000e+00> : vector<8xf32>
      %129 = vector.multi_reduction <add>, %128, %cst_56 [1] : vector<8x8xf32> to vector<8xf32>
      %130 = vector.shape_cast %129 : vector<8xf32> to vector<8x1xf32>
      %131 = vector.broadcast %130 : vector<8x1xf32> to vector<8x8xf32>
      %132 = arith.divf %128, %131 : vector<8x8xf32>
      %cst_57 = arith.constant dense<0.000000e+00> : vector<8x8xf32>
      %133 = tpu.matmul %132, %122, %cst_57 {dimension_numbers = #tpu.dot_dimension_numbers<[1], [0], [0], [1], [0, 0, 1, 1], [], []>} : vector<8x8xf32>, vector<8x8xf32>, vector<8x8xf32> -> vector<8x8xf32>
      %134 = arith.index_cast %97 : i32 to index
      %c8_58 = arith.constant 8 : index
      %135 = vector.load %arg15[%134, %c8_58] : memref<16x32xf32, #tpu.memory_space<vmem>>, vector<8x8xf32>
      tpu.vector_store %arg15[%134, %c8_58], %133 {strides = array<i32>} : memref<16x32xf32, #tpu.memory_space<vmem>>, vector<8x8xf32>,
      %136 = arith.index_cast %97 : i32 to index
      %c16 = arith.constant 16 : index
      %137 = vector.load %arg14[%136, %c16] : memref<16x96xf32, #tpu.memory_space<vmem>>, vector<8x8xf32>
      %138 = arith.index_cast %97 : i32 to index
      %c48 = arith.constant 48 : index
      %139 = vector.load %arg14[%138, %c48] : memref<16x96xf32, #tpu.memory_space<vmem>>, vector<8x8xf32>
      %140 = arith.index_cast %97 : i32 to index
      %c80 = arith.constant 80 : index
      %141 = vector.load %arg14[%140, %c80] : memref<16x96xf32, #tpu.memory_space<vmem>>, vector<8x8xf32>
      %cst_59 = arith.constant dense<0.000000e+00> : vector<8x8xf32>
      %142 = tpu.matmul %137, %139, %cst_59 {dimension_numbers = #tpu.dot_dimension_numbers<[1], [1], [0], [0], [0, 0, 1, 0], [], []>} : vector<8x8xf32>, vector<8x8xf32>, vector<8x8xf32> -> vector<8x8xf32>
      %cst_60 = arith.constant dense<0xFF800000> : vector<8xf32>
      %143 = vector.multi_reduction <maximumf>, %142, %cst_60 [1] : vector<8x8xf32> to vector<8xf32>
      %144 = vector.shape_cast %143 : vector<8xf32> to vector<8x1xf32>
      %145 = vector.broadcast %144 : vector<8x1xf32> to vector<8x8xf32>
      %146 = arith.subf %142, %145 : vector<8x8xf32>
      %147 = math.exp %146 : vector<8x8xf32>
      %cst_61 = arith.constant dense<0.000000e+00> : vector<8xf32>
      %148 = vector.multi_reduction <add>, %147, %cst_61 [1] : vector<8x8xf32> to vector<8xf32>
      %149 = vector.shape_cast %148 : vector<8xf32> to vector<8x1xf32>
      %150 = vector.broadcast %149 : vector<8x1xf32> to vector<8x8xf32>
      %151 = arith.divf %147, %150 : vector<8x8xf32>
      %cst_62 = arith.constant dense<0.000000e+00> : vector<8x8xf32>
      %152 = tpu.matmul %151, %141, %cst_62 {dimension_numbers = #tpu.dot_dimension_numbers<[1], [0], [0], [1], [0, 0, 1, 1], [], []>} : vector<8x8xf32>, vector<8x8xf32>, vector<8x8xf32> -> vector<8x8xf32>
      %153 = arith.index_cast %97 : i32 to index
      %c16_63 = arith.constant 16 : index
      %154 = vector.load %arg15[%153, %c16_63] : memref<16x32xf32, #tpu.memory_space<vmem>>, vector<8x8xf32>
      tpu.vector_store %arg15[%153, %c16_63], %152 {strides = array<i32>} : memref<16x32xf32, #tpu.memory_space<vmem>>, vector<8x8xf32>,
      %155 = arith.index_cast %97 : i32 to index
      %c24 = arith.constant 24 : index
      %156 = vector.load %arg14[%155, %c24] : memref<16x96xf32, #tpu.memory_space<vmem>>, vector<8x8xf32>
      %157 = arith.index_cast %97 : i32 to index
      %c56 = arith.constant 56 : index
      %158 = vector.load %arg14[%157, %c56] : memref<16x96xf32, #tpu.memory_space<vmem>>, vector<8x8xf32>
      %159 = arith.index_cast %97 : i32 to index
      %c88 = arith.constant 88 : index
      %160 = vector.load %arg14[%159, %c88] : memref<16x96xf32, #tpu.memory_space<vmem>>, vector<8x8xf32>
      %cst_64 = arith.constant dense<0.000000e+00> : vector<8x8xf32>
      %161 = tpu.matmul %156, %158, %cst_64 {dimension_numbers = #tpu.dot_dimension_numbers<[1], [1], [0], [0], [0, 0, 1, 0], [], []>} : vector<8x8xf32>, vector<8x8xf32>, vector<8x8xf32> -> vector<8x8xf32>
      %cst_65 = arith.constant dense<0xFF800000> : vector<8xf32>
      %162 = vector.multi_reduction <maximumf>, %161, %cst_65 [1] : vector<8x8xf32> to vector<8xf32>
      %163 = vector.shape_cast %162 : vector<8xf32> to vector<8x1xf32>
      %164 = vector.broadcast %163 : vector<8x1xf32> to vector<8x8xf32>
      %165 = arith.subf %161, %164 : vector<8x8xf32>
      %166 = math.exp %165 : vector<8x8xf32>
      %cst_66 = arith.constant dense<0.000000e+00> : vector<8xf32>
      %167 = vector.multi_reduction <add>, %166, %cst_66 [1] : vector<8x8xf32> to vector<8xf32>
      %168 = vector.shape_cast %167 : vector<8xf32> to vector<8x1xf32>
      %169 = vector.broadcast %168 : vector<8x1xf32> to vector<8x8xf32>
      %170 = arith.divf %166, %169 : vector<8x8xf32>
      %cst_67 = arith.constant dense<0.000000e+00> : vector<8x8xf32>
      %171 = tpu.matmul %170, %160, %cst_67 {dimension_numbers = #tpu.dot_dimension_numbers<[1], [0], [0], [1], [0, 0, 1, 1], [], []>} : vector<8x8xf32>, vector<8x8xf32>, vector<8x8xf32> -> vector<8x8xf32>
      %172 = arith.index_cast %97 : i32 to index
      %c24_68 = arith.constant 24 : index
      %173 = vector.load %arg15[%172, %c24_68] : memref<16x32xf32, #tpu.memory_space<vmem>>, vector<8x8xf32>
      tpu.vector_store %arg15[%172, %c24_68], %171 {strides = array<i32>} : memref<16x32xf32, #tpu.memory_space<vmem>>, vector<8x8xf32>,
    }
    %c2_i32_15 = arith.constant 2 : i32
    %c0_16 = arith.constant 0 : index
    %c0_17 = arith.constant 0 : index
    %34 = vector.load %arg15[%c0_16, %c0_17] : memref<16x32xf32, #tpu.memory_space<vmem>>, vector<16x32xf32>
    %c0_18 = arith.constant 0 : index
    %c0_19 = arith.constant 0 : index
    %35 = vector.load %arg5[%c0_18, %c0_19] : memref<32x32xf32, #tpu.memory_space<vmem>>, vector<32x32xf32>
    %cst_20 = arith.constant dense<0.000000e+00> : vector<16x32xf32>
    %36 = tpu.matmul %34, %35, %cst_20 {dimension_numbers = #tpu.dot_dimension_numbers<[1], [0], [0], [1], [0, 0, 1, 1], [], []>} : vector<16x32xf32>, vector<32x32xf32>, vector<16x32xf32> -> vector<16x32xf32>
    %37 = arith.addf %1, %36 : vector<16x32xf32>
    %c0_21 = arith.constant 0 : index
    %c0_22 = arith.constant 0 : index
    %38 = vector.load %arg6[%c0_21, %c0_22] : memref<1x32xf32, #tpu.memory_space<vmem>>, vector<1x32xf32>
    %39 = vector.shape_cast %38 : vector<1x32xf32> to vector<32xf32>
    %40 = vector.shape_cast %39 : vector<32xf32> to vector<1x32xf32>
    %41 = vector.broadcast %40 : vector<1x32xf32> to vector<16x32xf32>
    %42 = arith.addf %37, %41 : vector<16x32xf32>
    %c0_23 = arith.constant 0 : index
    %c0_24 = arith.constant 0 : index
    %43 = vector.load %arg7[%c0_23, %c0_24] : memref<1x32xf32, #tpu.memory_space<vmem>>, vector<1x32xf32>
    %44 = vector.shape_cast %43 : vector<1x32xf32> to vector<32xf32>
    %c0_25 = arith.constant 0 : index
    %c0_26 = arith.constant 0 : index
    %45 = vector.load %arg8[%c0_25, %c0_26] : memref<1x32xf32, #tpu.memory_space<vmem>>, vector<1x32xf32>
    %46 = vector.shape_cast %45 : vector<1x32xf32> to vector<32xf32>
    %cst_27 = arith.constant dense<0.000000e+00> : vector<16xf32>
    %47 = vector.multi_reduction <add>, %42, %cst_27 [1] : vector<16x32xf32> to vector<16xf32>
    %48 = vector.shape_cast %47 : vector<16xf32> to vector<16x1xf32>
    %cst_28 = arith.constant 3.200000e+01 : f32
    %49 = vector.broadcast %cst_28 : f32 to vector<16x1xf32>
    %50 = arith.divf %48, %49 : vector<16x1xf32>
    %51 = vector.broadcast %50 : vector<16x1xf32> to vector<16x32xf32>
    %52 = arith.subf %42, %51 : vector<16x32xf32>
    %53 = arith.mulf %52, %52 : vector<16x32xf32>
    %cst_29 = arith.constant dense<0.000000e+00> : vector<16xf32>
    %54 = vector.multi_reduction <add>, %53, %cst_29 [1] : vector<16x32xf32> to vector<16xf32>
    %55 = vector.shape_cast %54 : vector<16xf32> to vector<16x1xf32>
    %cst_30 = arith.constant 3.200000e+01 : f32
    %56 = vector.broadcast %cst_30 : f32 to vector<16x1xf32>
    %57 = arith.divf %55, %56 : vector<16x1xf32>
    %58 = vector.broadcast %50 : vector<16x1xf32> to vector<16x32xf32>
    %59 = arith.subf %42, %58 : vector<16x32xf32>
    %cst_31 = arith.constant 9.99999974E-6 : f32
    %60 = vector.broadcast %cst_31 : f32 to vector<16x1xf32>
    %61 = arith.addf %57, %60 : vector<16x1xf32>
    %62 = math.rsqrt %61 : vector<16x1xf32>
    %63 = vector.broadcast %62 : vector<16x1xf32> to vector<16x32xf32>
    %64 = arith.mulf %59, %63 : vector<16x32xf32>
    %65 = vector.shape_cast %44 : vector<32xf32> to vector<1x32xf32>
    %66 = vector.broadcast %65 : vector<1x32xf32> to vector<16x32xf32>
    %67 = arith.mulf %64, %66 : vector<16x32xf32>
    %68 = vector.shape_cast %46 : vector<32xf32> to vector<1x32xf32>
    %69 = vector.broadcast %68 : vector<1x32xf32> to vector<16x32xf32>
    %70 = arith.addf %67, %69 : vector<16x32xf32>
    %c0_32 = arith.constant 0 : index
    %c0_33 = arith.constant 0 : index
    %71 = vector.load %arg9[%c0_32, %c0_33] : memref<32x128xf32, #tpu.memory_space<vmem>>, vector<32x128xf32>
    %cst_34 = arith.constant dense<0.000000e+00> : vector<16x128xf32>
    %72 = tpu.matmul %70, %71, %cst_34 {dimension_numbers = #tpu.dot_dimension_numbers<[1], [0], [0], [1], [0, 0, 1, 1], [], []>} : vector<16x32xf32>, vector<32x128xf32>, vector<16x128xf32> -> vector<16x128xf32>
    %c0_35 = arith.constant 0 : index
    %c0_36 = arith.constant 0 : index
    %73 = vector.load %arg10[%c0_35, %c0_36] : memref<1x128xf32, #tpu.memory_space<vmem>>, vector<1x128xf32>
    %74 = vector.shape_cast %73 : vector<1x128xf32> to vector<128xf32>
    %75 = vector.shape_cast %74 : vector<128xf32> to vector<1x128xf32>
    %76 = vector.broadcast %75 : vector<1x128xf32> to vector<16x128xf32>
    %77 = arith.addf %72, %76 : vector<16x128xf32>
    %cst_37 = arith.constant 5.000000e-01 : f32
    %78 = vector.broadcast %cst_37 : f32 to vector<16x128xf32>
    %79 = arith.mulf %78, %77 : vector<16x128xf32>
    %cst_38 = arith.constant 0.707106769 : f32
    %80 = vector.broadcast %cst_38 : f32 to vector<16x128xf32>
    %81 = arith.mulf %77, %80 : vector<16x128xf32>
    %82 = math.erf %81 : vector<16x128xf32>
    %cst_39 = arith.constant 1.000000e+00 : f32
    %83 = vector.broadcast %cst_39 : f32 to vector<16x128xf32>
    %84 = arith.addf %83, %82 : vector<16x128xf32>
    %85 = arith.mulf %79, %84 : vector<16x128xf32>
    %c0_40 = arith.constant 0 : index
    %c0_41 = arith.constant 0 : index
    %86 = vector.load %arg11[%c0_40, %c0_41] : memref<128x32xf32, #tpu.memory_space<vmem>>, vector<128x32xf32>
    %cst_42 = arith.constant dense<0.000000e+00> : vector<16x32xf32>
    %87 = tpu.matmul %85, %86, %cst_42 {dimension_numbers = #tpu.dot_dimension_numbers<[1], [0], [0], [1], [0, 0, 1, 1], [], []>} : vector<16x128xf32>, vector<128x32xf32>, vector<16x32xf32> -> vector<16x32xf32>
    %c0_43 = arith.constant 0 : index
    %c0_44 = arith.constant 0 : index
    %88 = vector.load %arg12[%c0_43, %c0_44] : memref<1x32xf32, #tpu.memory_space<vmem>>, vector<1x32xf32>
    %89 = vector.shape_cast %88 : vector<1x32xf32> to vector<32xf32>
    %90 = vector.shape_cast %89 : vector<32xf32> to vector<1x32xf32>
    %91 = vector.broadcast %90 : vector<1x32xf32> to vector<16x32xf32>
    %92 = arith.addf %87, %91 : vector<16x32xf32>
    %93 = arith.addf %42, %92 : vector<16x32xf32>
    %94 = vector.shape_cast %93 : vector<16x32xf32> to vector<2x8x32xf32>
    %c0_45 = arith.constant 0 : index
    %c0_46 = arith.constant 0 : index
    %c0_47 = arith.constant 0 : index
    %95 = vector.load %arg13[%c0_45, %c0_46, %c0_47] : memref<2x8x32xf32, #tpu.memory_space<vmem>>, vector<2x8x32xf32>
    tpu.vector_store %arg13[%c0_45, %c0_46, %c0_47], %94 {strides = array<i32>} : memref<2x8x32xf32, #tpu.memory_space<vmem>>, vector<2x8x32xf32>,
    return
  }
  func.func @transform_0(%arg0: i32) -> (i32, i32, i32) {
    %c0_i32 = arith.constant 0 : i32
    %c0_i32_0 = arith.constant 0 : i32
    %c0_i32_1 = arith.constant 0 : i32
    return %arg0, %c0_i32, %c0_i32_0 : i32, i32, i32
  }
  func.func @transform_1(%arg0: i32) -> (i32, i32) {
    %c0_i32 = arith.constant 0 : i32
    %c0_i32_0 = arith.constant 0 : i32
    %c0_i32_1 = arith.constant 0 : i32
    return %c0_i32, %c0_i32_0 : i32, i32
  }
  func.func @transform_2(%arg0: i32) -> (i32, i32) {
    %c0_i32 = arith.constant 0 : i32
    %c0_i32_0 = arith.constant 0 : i32
    %c0_i32_1 = arith.constant 0 : i32
    return %c0_i32, %c0_i32_0 : i32, i32
  }
  func.func @transform_3(%arg0: i32) -> (i32, i32) {
    %c0_i32 = arith.constant 0 : i32
    %c0_i32_0 = arith.constant 0 : i32
    %c0_i32_1 = arith.constant 0 : i32
    return %c0_i32, %c0_i32_0 : i32, i32
  }
  func.func @transform_4(%arg0: i32) -> (i32, i32) {
    %c0_i32 = arith.constant 0 : i32
    %c0_i32_0 = arith.constant 0 : i32
    %c0_i32_1 = arith.constant 0 : i32
    return %c0_i32, %c0_i32_0 : i32, i32
  }
  func.func @transform_5(%arg0: i32) -> (i32, i32) {
    %c0_i32 = arith.constant 0 : i32
    %c0_i32_0 = arith.constant 0 : i32
    %c0_i32_1 = arith.constant 0 : i32
    return %c0_i32, %c0_i32_0 : i32, i32
  }
  func.func @transform_6(%arg0: i32) -> (i32, i32) {
    %c0_i32 = arith.constant 0 : i32
    %c0_i32_0 = arith.constant 0 : i32
    %c0_i32_1 = arith.constant 0 : i32
    return %c0_i32, %c0_i32_0 : i32, i32
  }
  func.func @transform_7(%arg0: i32) -> (i32, i32) {
    %c0_i32 = arith.constant 0 : i32
    %c0_i32_0 = arith.constant 0 : i32
    %c0_i32_1 = arith.constant 0 : i32
    return %c0_i32, %c0_i32_0 : i32, i32
  }
  func.func @transform_8(%arg0: i32) -> (i32, i32) {
    %c0_i32 = arith.constant 0 : i32
    %c0_i32_0 = arith.constant 0 : i32
    %c0_i32_1 = arith.constant 0 : i32
    return %c0_i32, %c0_i32_0 : i32, i32
  }
  func.func @transform_9(%arg0: i32) -> (i32, i32) {
    %c0_i32 = arith.constant 0 : i32
    %c0_i32_0 = arith.constant 0 : i32
    %c0_i32_1 = arith.constant 0 : i32
    return %c0_i32, %c0_i32_0 : i32, i32
  }
  func.func @transform_10(%arg0: i32) -> (i32, i32) {
    %c0_i32 = arith.constant 0 : i32
    %c0_i32_0 = arith.constant 0 : i32
    %c0_i32_1 = arith.constant 0 : i32
    return %c0_i32, %c0_i32_0 : i32, i32
  }
  func.func @transform_11(%arg0: i32) -> (i32, i32) {
    %c0_i32 = arith.constant 0 : i32
    %c0_i32_0 = arith.constant 0 : i32
    %c0_i32_1 = arith.constant 0 : i32
    return %c0_i32, %c0_i32_0 : i32, i32
  }
  func.func @transform_12(%arg0: i32) -> (i32, i32, i32) {
    %c0_i32 = arith.constant 0 : i32
    %c0_i32_0 = arith.constant 0 : i32
    %c0_i32_1 = arith.constant 0 : i32
    return %arg0, %c0_i32, %c0_i32_0 : i32, i32, i32
  }
}

module attributes {stable_mosaic.version = 11 : i64} {
  func.func @kernel(%arg0: i32, %arg1: memref<2x8x32xf32, #tpu.memory_space<vmem>>, %arg2: memref<1x32xf32, #tpu.memory_space<vmem>>, %arg3: memref<1x32xf32, #tpu.memory_space<vmem>>, %arg4: memref<32x96xf32, #tpu.memory_space<vmem>>, %arg5: memref<32x32xf32, #tpu.memory_space<vmem>>, %arg6: memref<1x32xf32, #tpu.memory_space<vmem>>, %arg7: memref<1x32xf32, #tpu.memory_space<vmem>>, %arg8: memref<1x32xf32, #tpu.memory_space<vmem>>, %arg9: memref<32x128xf32, #tpu.memory_space<vmem>>, %arg10: memref<1x128xf32, #tpu.memory_space<vmem>>, %arg11: memref<128x32xf32, #tpu.memory_space<vmem>>, %arg12: memref<1x32xf32, #tpu.memory_space<vmem>>, %arg13: memref<2x8x32xf32, #tpu.memory_space<vmem>>, %arg14: memref<16x96xf32, #tpu.memory_space<vmem>>, %arg15: memref<16x32xf32, #tpu.memory_space<vmem>>) attributes {dimension_semantics = [#tpu.dimension_semantics<parallel>], iteration_bounds = array<i64: 2>, scalar_prefetch = 0 : i64, scratch_operands = 2 : i64, tpu.core_type = #tpu.core_type<tc>, window_params = [{transform_indices = @transform_0, window_bounds = array<i64: 2, 8, 32>}, {pipeline_mode = #tpu.pipeline_mode<synchronous>, transform_indices = @transform_1, window_bounds = array<i64: 1, 32>}, {pipeline_mode = #tpu.pipeline_mode<synchronous>, transform_indices = @transform_2, window_bounds = array<i64: 1, 32>}, {pipeline_mode = #tpu.pipeline_mode<synchronous>, transform_indices = @transform_3, window_bounds = array<i64: 32, 96>}, {pipeline_mode = #tpu.pipeline_mode<synchronous>, transform_indices = @transform_4, window_bounds = array<i64: 32, 32>}, {pipeline_mode = #tpu.pipeline_mode<synchronous>, transform_indices = @transform_5, window_bounds = array<i64: 1, 32>}, {pipeline_mode = #tpu.pipeline_mode<synchronous>, transform_indices = @transform_6, window_bounds = array<i64: 1, 32>}, {pipeline_mode = #tpu.pipeline_mode<synchronous>, transform_indices = @transform_7, window_bounds = array<i64: 1, 32>}, {pipeline_mode = #tpu.pipeline_mode<synchronous>, transform_indices = @transform_8, window_bounds = array<i64: 32, 128>}, {pipeline_mode = #tpu.pipeline_mode<synchronous>, transform_indices = @transform_9, window_bounds = array<i64: 1, 128>}, {pipeline_mode = #tpu.pipeline_mode<synchronous>, transform_indices = @transform_10, window_bounds = array<i64: 128, 32>}, {pipeline_mode = #tpu.pipeline_mode<synchronous>, transform_indices = @transform_11, window_bounds = array<i64: 1, 32>}, {transform_indices = @transform_12, window_bounds = array<i64: 2, 8, 32>}]} {
    %c0 = arith.constant 0 : index
    %c0_0 = arith.constant 0 : index
    %c0_1 = arith.constant 0 : index
    %0 = vector.load %arg1[%c0, %c0_0, %c0_1] : memref<2x8x32xf32, #tpu.memory_space<vmem>>, vector<2x8x32xf32>
    %1 = vector.shape_cast %0 : vector<2x8x32xf32> to vector<16x32xf32>
    %c0_2 = arith.constant 0 : index
    %c0_3 = arith.constant 0 : index
    %2 = vector.load %arg2[%c0_2, %c0_3] : memref<1x32xf32, #tpu.memory_space<vmem>>, vector<1x32xf32>
    %3 = vector.shape_cast %2 : vector<1x32xf32> to vector<32xf32>
    %c0_4 = arith.constant 0 : index
    %c0_5 = arith.constant 0 : index
    %4 = vector.load %arg3[%c0_4, %c0_5] : memref<1x32xf32, #tpu.memory_space<vmem>>, vector<1x32xf32>
    %5 = vector.shape_cast %4 : vector<1x32xf32> to vector<32xf32>
    %cst = arith.constant dense<0.000000e+00> : vector<16xf32>
    %6 = vector.multi_reduction <add>, %1, %cst [1] : vector<16x32xf32> to vector<16xf32>
    %7 = vector.shape_cast %6 : vector<16xf32> to vector<16x1xf32>
    %cst_6 = arith.constant 3.200000e+01 : f32
    %8 = vector.broadcast %cst_6 : f32 to vector<16x1xf32>
    %9 = arith.divf %7, %8 : vector<16x1xf32>
    %10 = vector.broadcast %9 : vector<16x1xf32> to vector<16x32xf32>
    %11 = arith.subf %1, %10 : vector<16x32xf32>
    %12 = arith.mulf %11, %11 : vector<16x32xf32>
    %cst_7 = arith.constant dense<0.000000e+00> : vector<16xf32>
    %13 = vector.multi_reduction <add>, %12, %cst_7 [1] : vector<16x32xf32> to vector<16xf32>
    %14 = vector.shape_cast %13 : vector<16xf32> to vector<16x1xf32>
    %cst_8 = arith.constant 3.200000e+01 : f32
    %15 = vector.broadcast %cst_8 : f32 to vector<16x1xf32>
    %16 = arith.divf %14, %15 : vector<16x1xf32>
    %17 = vector.broadcast %9 : vector<16x1xf32> to vector<16x32xf32>
    %18 = arith.subf %1, %17 : vector<16x32xf32>
    %cst_9 = arith.constant 9.99999974E-6 : f32
    %19 = vector.broadcast %cst_9 : f32 to vector<16x1xf32>
    %20 = arith.addf %16, %19 : vector<16x1xf32>
    %21 = math.rsqrt %20 : vector<16x1xf32>
    %22 = vector.broadcast %21 : vector<16x1xf32> to vector<16x32xf32>
    %23 = arith.mulf %18, %22 : vector<16x32xf32>
    %24 = vector.shape_cast %3 : vector<32xf32> to vector<1x32xf32>
    %25 = vector.broadcast %24 : vector<1x32xf32> to vector<16x32xf32>
    %26 = arith.mulf %23, %25 : vector<16x32xf32>
    %27 = vector.shape_cast %5 : vector<32xf32> to vector<1x32xf32>
    %28 = vector.broadcast %27 : vector<1x32xf32> to vector<16x32xf32>
    %29 = arith.addf %26, %28 : vector<16x32xf32>
    %c0_10 = arith.constant 0 : index
    %c0_11 = arith.constant 0 : index
    %30 = vector.load %arg4[%c0_10, %c0_11] : memref<32x96xf32, #tpu.memory_space<vmem>>, vector<32x96xf32>
    %cst_12 = arith.constant dense<0.000000e+00> : vector<16x96xf32>
    %31 = tpu.matmul %29, %30, %cst_12 {dimension_numbers = #tpu.dot_dimension_numbers<[1], [0], [0], [1], [0, 0, 1, 1], [], []>} : vector<16x32xf32>, vector<32x96xf32>, vector<16x96xf32> -> vector<16x96xf32>
    %c0_13 = arith.constant 0 : index
    %c0_14 = arith.constant 0 : index
    %32 = vector.load %arg14[%c0_13, %c0_14] : memref<16x96xf32, #tpu.memory_space<vmem>>, vector<16x96xf32>
    tpu.vector_store %arg14[%c0_13, %c0_14], %31 {strides = array<i32>} : memref<16x96xf32, #tpu.memory_space<vmem>>, vector<16x96xf32>,
    %c0_i32 = arith.constant 0 : i32
    %c2_i32 = arith.constant 2 : i32
    %33 = arith.addi %c0_i32, %c2_i32 : i32
    %c1_i32 = arith.constant 1 : i32
    scf.for %arg16 = %c0_i32 to %33 step %c1_i32  : i32 {
      %c8_i32 = arith.constant 8 : i32
      %96 = arith.muli %arg16, %c8_i32 : i32
      %97 = tpu.assume_multiple %96, 8 : i32
      %98 = arith.index_cast %97 : i32 to index
      %c0_48 = arith.constant 0 : index
      %99 = vector.load %arg14[%98, %c0_48] : memref<16x96xf32, #tpu.memory_space<vmem>>, vector<8x8xf32>
      %100 = arith.index_cast %97 : i32 to index
      %c32 = arith.constant 32 : index
      %101 = vector.load %arg14[%100, %c32] : memref<16x96xf32, #tpu.memory_space<vmem>>, vector<8x8xf32>
      %102 = arith.index_cast %97 : i32 to index
      %c64 = arith.constant 64 : index
      %103 = vector.load %arg14[%102, %c64] : memref<16x96xf32, #tpu.memory_space<vmem>>, vector<8x8xf32>
      %cst_49 = arith.constant dense<0.000000e+00> : vector<8x8xf32>
      %104 = tpu.matmul %99, %101, %cst_49 {dimension_numbers = #tpu.dot_dimension_numbers<[1], [1], [0], [0], [0, 0, 1, 0], [], []>} : vector<8x8xf32>, vector<8x8xf32>, vector<8x8xf32> -> vector<8x8xf32>
      %cst_50 = arith.constant dense<0xFF800000> : vector<8xf32>
      %105 = vector.multi_reduction <maximumf>, %104, %cst_50 [1] : vector<8x8xf32> to vector<8xf32>
      %106 = vector.shape_cast %105 : vector<8xf32> to vector<8x1xf32>
      %107 = vector.broadcast %106 : vector<8x1xf32> to vector<8x8xf32>
      %108 = arith.subf %104, %107 : vector<8x8xf32>
      %109 = math.exp %108 : vector<8x8xf32>
      %cst_51 = arith.constant dense<0.000000e+00> : vector<8xf32>
      %110 = vector.multi_reduction <add>, %109, %cst_51 [1] : vector<8x8xf32> to vector<8xf32>
      %111 = vector.shape_cast %110 : vector<8xf32> to vector<8x1xf32>
      %112 = vector.broadcast %111 : vector<8x1xf32> to vector<8x8xf32>
      %113 = arith.divf %109, %112 : vector<8x8xf32>
      %cst_52 = arith.constant dense<0.000000e+00> : vector<8x8xf32>
      %114 = tpu.matmul %113, %103, %cst_52 {dimension_numbers = #tpu.dot_dimension_numbers<[1], [0], [0], [1], [0, 0, 1, 1], [], []>} : vector<8x8xf32>, vector<8x8xf32>, vector<8x8xf32> -> vector<8x8xf32>
      %115 = arith.index_cast %97 : i32 to index
      %c0_53 = arith.constant 0 : index
      %116 = vector.load %arg15[%115, %c0_53] : memref<16x32xf32, #tpu.memory_space<vmem>>, vector<8x8xf32>
      tpu.vector_store %arg15[%115, %c0_53], %114 {strides = array<i32>} : memref<16x32xf32, #tpu.memory_space<vmem>>, vector<8x8xf32>,
      %117 = arith.index_cast %97 : i32 to index
      %c8 = arith.constant 8 : index
      %118 = vector.load %arg14[%117, %c8] : memref<16x96xf32, #tpu.memory_space<vmem>>, vector<8x8xf32>
      %119 = arith.index_cast %97 : i32 to index
      %c40 = arith.constant 40 : index
      %120 = vector.load %arg14[%119, %c40] : memref<16x96xf32, #tpu.memory_space<vmem>>, vector<8x8xf32>
      %121 = arith.index_cast %97 : i32 to index
      %c72 = arith.constant 72 : index
      %122 = vector.load %arg14[%121, %c72] : memref<16x96xf32, #tpu.memory_space<vmem>>, vector<8x8xf32>
      %cst_54 = arith.constant dense<0.000000e+00> : vector<8x8xf32>
      %123 = tpu.matmul %118, %120, %cst_54 {dimension_numbers = #tpu.dot_dimension_numbers<[1], [1], [0], [0], [0, 0, 1, 0], [], []>} : vector<8x8xf32>, vector<8x8xf32>, vector<8x8xf32> -> vector<8x8xf32>
      %cst_55 = arith.constant dense<0xFF800000> : vector<8xf32>
      %124 = vector.multi_reduction <maximumf>, %123, %cst_55 [1] : vector<8x8xf32> to vector<8xf32>
      %125 = vector.shape_cast %124 : vector<8xf32> to vector<8x1xf32>
      %126 = vector.broadcast %125 : vector<8x1xf32> to vector<8x8xf32>
      %127 = arith.subf %123, %126 : vector<8x8xf32>
      %128 = math.exp %127 : vector<8x8xf32>
      %cst_56 = arith.constant dense<0.000000e+00> : vector<8xf32>
      %129 = vector.multi_reduction <add>, %128, %cst_56 [1] : vector<8x8xf32> to vector<8xf32>
      %130 = vector.shape_cast %129 : vector<8xf32> to vector<8x1xf32>
      %131 = vector.broadcast %130 : vector<8x1xf32> to vector<8x8xf32>
      %132 = arith.divf %128, %131 : vector<8x8xf32>
      %cst_57 = arith.constant dense<0.000000e+00> : vector<8x8xf32>
      %133 = tpu.matmul %132, %122, %cst_57 {dimension_numbers = #tpu.dot_dimension_numbers<[1], [0], [0], [1], [0, 0, 1, 1], [], []>} : vector<8x8xf32>, vector<8x8xf32>, vector<8x8xf32> -> vector<8x8xf32>
      %134 = arith.index_cast %97 : i32 to index
      %c8_58 = arith.constant 8 : index
      %135 = vector.load %arg15[%134, %c8_58] : memref<16x32xf32, #tpu.memory_space<vmem>>, vector<8x8xf32>
      tpu.vector_store %arg15[%134, %c8_58], %133 {strides = array<i32>} : memref<16x32xf32, #tpu.memory_space<vmem>>, vector<8x8xf32>,
      %136 = arith.index_cast %97 : i32 to index
      %c16 = arith.constant 16 : index
      %137 = vector.load %arg14[%136, %c16] : memref<16x96xf32, #tpu.memory_space<vmem>>, vector<8x8xf32>
      %138 = arith.index_cast %97 : i32 to index
      %c48 = arith.constant 48 : index
      %139 = vector.load %arg14[%138, %c48] : memref<16x96xf32, #tpu.memory_space<vmem>>, vector<8x8xf32>
      %140 = arith.index_cast %97 : i32 to index
      %c80 = arith.constant 80 : index
      %141 = vector.load %arg14[%140, %c80] : memref<16x96xf32, #tpu.memory_space<vmem>>, vector<8x8xf32>
      %cst_59 = arith.constant dense<0.000000e+00> : vector<8x8xf32>
      %142 = tpu.matmul %137, %139, %cst_59 {dimension_numbers = #tpu.dot_dimension_numbers<[1], [1], [0], [0], [0, 0, 1, 0], [], []>} : vector<8x8xf32>, vector<8x8xf32>, vector<8x8xf32> -> vector<8x8xf32>
      %cst_60 = arith.constant dense<0xFF800000> : vector<8xf32>
      %143 = vector.multi_reduction <maximumf>, %142, %cst_60 [1] : vector<8x8xf32> to vector<8xf32>
      %144 = vector.shape_cast %143 : vector<8xf32> to vector<8x1xf32>
      %145 = vector.broadcast %144 : vector<8x1xf32> to vector<8x8xf32>
      %146 = arith.subf %142, %145 : vector<8x8xf32>
      %147 = math.exp %146 : vector<8x8xf32>
      %cst_61 = arith.constant dense<0.000000e+00> : vector<8xf32>
      %148 = vector.multi_reduction <add>, %147, %cst_61 [1] : vector<8x8xf32> to vector<8xf32>
      %149 = vector.shape_cast %148 : vector<8xf32> to vector<8x1xf32>
      %150 = vector.broadcast %149 : vector<8x1xf32> to vector<8x8xf32>
      %151 = arith.divf %147, %150 : vector<8x8xf32>
      %cst_62 = arith.constant dense<0.000000e+00> : vector<8x8xf32>
      %152 = tpu.matmul %151, %141, %cst_62 {dimension_numbers = #tpu.dot_dimension_numbers<[1], [0], [0], [1], [0, 0, 1, 1], [], []>} : vector<8x8xf32>, vector<8x8xf32>, vector<8x8xf32> -> vector<8x8xf32>
      %153 = arith.index_cast %97 : i32 to index
      %c16_63 = arith.constant 16 : index
      %154 = vector.load %arg15[%153, %c16_63] : memref<16x32xf32, #tpu.memory_space<vmem>>, vector<8x8xf32>
      tpu.vector_store %arg15[%153, %c16_63], %152 {strides = array<i32>} : memref<16x32xf32, #tpu.memory_space<vmem>>, vector<8x8xf32>,
      %155 = arith.index_cast %97 : i32 to index
      %c24 = arith.constant 24 : index
      %156 = vector.load %arg14[%155, %c24] : memref<16x96xf32, #tpu.memory_space<vmem>>, vector<8x8xf32>
      %157 = arith.index_cast %97 : i32 to index
      %c56 = arith.constant 56 : index
      %158 = vector.load %arg14[%157, %c56] : memref<16x96xf32, #tpu.memory_space<vmem>>, vector<8x8xf32>
      %159 = arith.index_cast %97 : i32 to index
      %c88 = arith.constant 88 : index
      %160 = vector.load %arg14[%159, %c88] : memref<16x96xf32, #tpu.memory_space<vmem>>, vector<8x8xf32>
      %cst_64 = arith.constant dense<0.000000e+00> : vector<8x8xf32>
      %161 = tpu.matmul %156, %158, %cst_64 {dimension_numbers = #tpu.dot_dimension_numbers<[1], [1], [0], [0], [0, 0, 1, 0], [], []>} : vector<8x8xf32>, vector<8x8xf32>, vector<8x8xf32> -> vector<8x8xf32>
      %cst_65 = arith.constant dense<0xFF800000> : vector<8xf32>
      %162 = vector.multi_reduction <maximumf>, %161, %cst_65 [1] : vector<8x8xf32> to vector<8xf32>
      %163 = vector.shape_cast %162 : vector<8xf32> to vector<8x1xf32>
      %164 = vector.broadcast %163 : vector<8x1xf32> to vector<8x8xf32>
      %165 = arith.subf %161, %164 : vector<8x8xf32>
      %166 = math.exp %165 : vector<8x8xf32>
      %cst_66 = arith.constant dense<0.000000e+00> : vector<8xf32>
      %167 = vector.multi_reduction <add>, %166, %cst_66 [1] : vector<8x8xf32> to vector<8xf32>
      %168 = vector.shape_cast %167 : vector<8xf32> to vector<8x1xf32>
      %169 = vector.broadcast %168 : vector<8x1xf32> to vector<8x8xf32>
      %170 = arith.divf %166, %169 : vector<8x8xf32>
      %cst_67 = arith.constant dense<0.000000e+00> : vector<8x8xf32>
      %171 = tpu.matmul %170, %160, %cst_67 {dimension_numbers = #tpu.dot_dimension_numbers<[1], [0], [0], [1], [0, 0, 1, 1], [], []>} : vector<8x8xf32>, vector<8x8xf32>, vector<8x8xf32> -> vector<8x8xf32>
      %172 = arith.index_cast %97 : i32 to index
      %c24_68 = arith.constant 24 : index
      %173 = vector.load %arg15[%172, %c24_68] : memref<16x32xf32, #tpu.memory_space<vmem>>, vector<8x8xf32>
      tpu.vector_store %arg15[%172, %c24_68], %171 {strides = array<i32>} : memref<16x32xf32, #tpu.memory_space<vmem>>, vector<8x8xf32>,
    }
    %c2_i32_15 = arith.constant 2 : i32
    %c0_16 = arith.constant 0 : index
    %c0_17 = arith.constant 0 : index
    %34 = vector.load %arg15[%c0_16, %c0_17] : memref<16x32xf32, #tpu.memory_space<vmem>>, vector<16x32xf32>
    %c0_18 = arith.constant 0 : index
    %c0_19 = arith.constant 0 : index
    %35 = vector.load %arg5[%c0_18, %c0_19] : memref<32x32xf32, #tpu.memory_space<vmem>>, vector<32x32xf32>
    %cst_20 = arith.constant dense<0.000000e+00> : vector<16x32xf32>
    %36 = tpu.matmul %34, %35, %cst_20 {dimension_numbers = #tpu.dot_dimension_numbers<[1], [0], [0], [1], [0, 0, 1, 1], [], []>} : vector<16x32xf32>, vector<32x32xf32>, vector<16x32xf32> -> vector<16x32xf32>
    %37 = arith.addf %1, %36 : vector<16x32xf32>
    %c0_21 = arith.constant 0 : index
    %c0_22 = arith.constant 0 : index
    %38 = vector.load %arg6[%c0_21, %c0_22] : memref<1x32xf32, #tpu.memory_space<vmem>>, vector<1x32xf32>
    %39 = vector.shape_cast %38 : vector<1x32xf32> to vector<32xf32>
    %40 = vector.shape_cast %39 : vector<32xf32> to vector<1x32xf32>
    %41 = vector.broadcast %40 : vector<1x32xf32> to vector<16x32xf32>
    %42 = arith.addf %37, %41 : vector<16x32xf32>
    %c0_23 = arith.constant 0 : index
    %c0_24 = arith.constant 0 : index
    %43 = vector.load %arg7[%c0_23, %c0_24] : memref<1x32xf32, #tpu.memory_space<vmem>>, vector<1x32xf32>
    %44 = vector.shape_cast %43 : vector<1x32xf32> to vector<32xf32>
    %c0_25 = arith.constant 0 : index
    %c0_26 = arith.constant 0 : index
    %45 = vector.load %arg8[%c0_25, %c0_26] : memref<1x32xf32, #tpu.memory_space<vmem>>, vector<1x32xf32>
    %46 = vector.shape_cast %45 : vector<1x32xf32> to vector<32xf32>
    %cst_27 = arith.constant dense<0.000000e+00> : vector<16xf32>
    %47 = vector.multi_reduction <add>, %42, %cst_27 [1] : vector<16x32xf32> to vector<16xf32>
    %48 = vector.shape_cast %47 : vector<16xf32> to vector<16x1xf32>
    %cst_28 = arith.constant 3.200000e+01 : f32
    %49 = vector.broadcast %cst_28 : f32 to vector<16x1xf32>
    %50 = arith.divf %48, %49 : vector<16x1xf32>
    %51 = vector.broadcast %50 : vector<16x1xf32> to vector<16x32xf32>
    %52 = arith.subf %42, %51 : vector<16x32xf32>
    %53 = arith.mulf %52, %52 : vector<16x32xf32>
    %cst_29 = arith.constant dense<0.000000e+00> : vector<16xf32>
    %54 = vector.multi_reduction <add>, %53, %cst_29 [1] : vector<16x32xf32> to vector<16xf32>
    %55 = vector.shape_cast %54 : vector<16xf32> to vector<16x1xf32>
    %cst_30 = arith.constant 3.200000e+01 : f32
    %56 = vector.broadcast %cst_30 : f32 to vector<16x1xf32>
    %57 = arith.divf %55, %56 : vector<16x1xf32>
    %58 = vector.broadcast %50 : vector<16x1xf32> to vector<16x32xf32>
    %59 = arith.subf %42, %58 : vector<16x32xf32>
    %cst_31 = arith.constant 9.99999974E-6 : f32
    %60 = vector.broadcast %cst_31 : f32 to vector<16x1xf32>
    %61 = arith.addf %57, %60 : vector<16x1xf32>
    %62 = math.rsqrt %61 : vector<16x1xf32>
    %63 = vector.broadcast %62 : vector<16x1xf32> to vector<16x32xf32>
    %64 = arith.mulf %59, %63 : vector<16x32xf32>
    %65 = vector.shape_cast %44 : vector<32xf32> to vector<1x32xf32>
    %66 = vector.broadcast %65 : vector<1x32xf32> to vector<16x32xf32>
    %67 = arith.mulf %64, %66 : vector<16x32xf32>
    %68 = vector.shape_cast %46 : vector<32xf32> to vector<1x32xf32>
    %69 = vector.broadcast %68 : vector<1x32xf32> to vector<16x32xf32>
    %70 = arith.addf %67, %69 : vector<16x32xf32>
    %c0_32 = arith.constant 0 : index
    %c0_33 = arith.constant 0 : index
    %71 = vector.load %arg9[%c0_32, %c0_33] : memref<32x128xf32, #tpu.memory_space<vmem>>, vector<32x128xf32>
    %cst_34 = arith.constant dense<0.000000e+00> : vector<16x128xf32>
    %72 = tpu.matmul %70, %71, %cst_34 {dimension_numbers = #tpu.dot_dimension_numbers<[1], [0], [0], [1], [0, 0, 1, 1], [], []>} : vector<16x32xf32>, vector<32x128xf32>, vector<16x128xf32> -> vector<16x128xf32>
    %c0_35 = arith.constant 0 : index
    %c0_36 = arith.constant 0 : index
    %73 = vector.load %arg10[%c0_35, %c0_36] : memref<1x128xf32, #tpu.memory_space<vmem>>, vector<1x128xf32>
    %74 = vector.shape_cast %73 : vector<1x128xf32> to vector<128xf32>
    %75 = vector.shape_cast %74 : vector<128xf32> to vector<1x128xf32>
    %76 = vector.broadcast %75 : vector<1x128xf32> to vector<16x128xf32>
    %77 = arith.addf %72, %76 : vector<16x128xf32>
    %cst_37 = arith.constant 5.000000e-01 : f32
    %78 = vector.broadcast %cst_37 : f32 to vector<16x128xf32>
    %79 = arith.mulf %78, %77 : vector<16x128xf32>
    %cst_38 = arith.constant 0.707106769 : f32
    %80 = vector.broadcast %cst_38 : f32 to vector<16x128xf32>
    %81 = arith.mulf %77, %80 : vector<16x128xf32>
    %82 = math.erf %81 : vector<16x128xf32>
    %cst_39 = arith.constant 1.000000e+00 : f32
    %83 = vector.broadcast %cst_39 : f32 to vector<16x128xf32>
    %84 = arith.addf %83, %82 : vector<16x128xf32>
    %85 = arith.mulf %79, %84 : vector<16x128xf32>
    %c0_40 = arith.constant 0 : index
    %c0_41 = arith.constant 0 : index
    %86 = vector.load %arg11[%c0_40, %c0_41] : memref<128x32xf32, #tpu.memory_space<vmem>>, vector<128x32xf32>
    %cst_42 = arith.constant dense<0.000000e+00> : vector<16x32xf32>
    %87 = tpu.matmul %85, %86, %cst_42 {dimension_numbers = #tpu.dot_dimension_numbers<[1], [0], [0], [1], [0, 0, 1, 1], [], []>} : vector<16x128xf32>, vector<128x32xf32>, vector<16x32xf32> -> vector<16x32xf32>
    %c0_43 = arith.constant 0 : index
    %c0_44 = arith.constant 0 : index
    %88 = vector.load %arg12[%c0_43, %c0_44] : memref<1x32xf32, #tpu.memory_space<vmem>>, vector<1x32xf32>
    %89 = vector.shape_cast %88 : vector<1x32xf32> to vector<32xf32>
    %90 = vector.shape_cast %89 : vector<32xf32> to vector<1x32xf32>
    %91 = vector.broadcast %90 : vector<1x32xf32> to vector<16x32xf32>
    %92 = arith.addf %87, %91 : vector<16x32xf32>
    %93 = arith.addf %42, %92 : vector<16x32xf32>
    %94 = vector.shape_cast %93 : vector<16x32xf32> to vector<2x8x32xf32>
    %c0_45 = arith.constant 0 : index
    %c0_46 = arith.constant 0 : index
    %c0_47 = arith.constant 0 : index
    %95 = vector.load %arg13[%c0_45, %c0_46, %c0_47] : memref<2x8x32xf32, #tpu.memory_space<vmem>>, vector<2x8x32xf32>
    tpu.vector_store %arg13[%c0_45, %c0_46, %c0_47], %94 {strides = array<i32>} : memref<2x8x32xf32, #tpu.memory_space<vmem>>, vector<2x8x32xf32>,
    return
  }
  func.func @transform_0(%arg0: i32) -> (i32, i32, i32) {
    %c0_i32 = arith.constant 0 : i32
    %c0_i32_0 = arith.constant 0 : i32
    %c0_i32_1 = arith.constant 0 : i32
    return %arg0, %c0_i32, %c0_i32_0 : i32, i32, i32
  }
  func.func @transform_1(%arg0: i32) -> (i32, i32) {
    %c0_i32 = arith.constant 0 : i32
    %c0_i32_0 = arith.constant 0 : i32
    %c0_i32_1 = arith.constant 0 : i32
    return %c0_i32, %c0_i32_0 : i32, i32
  }
  func.func @transform_2(%arg0: i32) -> (i32, i32) {
    %c0_i32 = arith.constant 0 : i32
    %c0_i32_0 = arith.constant 0 : i32
    %c0_i32_1 = arith.constant 0 : i32
    return %c0_i32, %c0_i32_0 : i32, i32
  }
  func.func @transform_3(%arg0: i32) -> (i32, i32) {
    %c0_i32 = arith.constant 0 : i32
    %c0_i32_0 = arith.constant 0 : i32
    %c0_i32_1 = arith.constant 0 : i32
    return %c0_i32, %c0_i32_0 : i32, i32
  }
  func.func @transform_4(%arg0: i32) -> (i32, i32) {
    %c0_i32 = arith.constant 0 : i32
    %c0_i32_0 = arith.constant 0 : i32
    %c0_i32_1 = arith.constant 0 : i32
    return %c0_i32, %c0_i32_0 : i32, i32
  }
  func.func @transform_5(%arg0: i32) -> (i32, i32) {
    %c0_i32 = arith.constant 0 : i32
    %c0_i32_0 = arith.constant 0 : i32
    %c0_i32_1 = arith.constant 0 : i32
    return %c0_i32, %c0_i32_0 : i32, i32
  }
  func.func @transform_6(%arg0: i32) -> (i32, i32) {
    %c0_i32 = arith.constant 0 : i32
    %c0_i32_0 = arith.constant 0 : i32
    %c0_i32_1 = arith.constant 0 : i32
    return %c0_i32, %c0_i32_0 : i32, i32
  }
  func.func @transform_7(%arg0: i32) -> (i32, i32) {
    %c0_i32 = arith.constant 0 : i32
    %c0_i32_0 = arith.constant 0 : i32
    %c0_i32_1 = arith.constant 0 : i32
    return %c0_i32, %c0_i32_0 : i32, i32
  }
  func.func @transform_8(%arg0: i32) -> (i32, i32) {
    %c0_i32 = arith.constant 0 : i32
    %c0_i32_0 = arith.constant 0 : i32
    %c0_i32_1 = arith.constant 0 : i32
    return %c0_i32, %c0_i32_0 : i32, i32
  }
  func.func @transform_9(%arg0: i32) -> (i32, i32) {
    %c0_i32 = arith.constant 0 : i32
    %c0_i32_0 = arith.constant 0 : i32
    %c0_i32_1 = arith.constant 0 : i32
    return %c0_i32, %c0_i32_0 : i32, i32
  }
  func.func @transform_10(%arg0: i32) -> (i32, i32) {
    %c0_i32 = arith.constant 0 : i32
    %c0_i32_0 = arith.constant 0 : i32
    %c0_i32_1 = arith.constant 0 : i32
    return %c0_i32, %c0_i32_0 : i32, i32
  }
  func.func @transform_11(%arg0: i32) -> (i32, i32) {
    %c0_i32 = arith.constant 0 : i32
    %c0_i32_0 = arith.constant 0 : i32
    %c0_i32_1 = arith.constant 0 : i32
    return %c0_i32, %c0_i32_0 : i32, i32
  }
  func.func @transform_12(%arg0: i32) -> (i32, i32, i32) {
    %c0_i32 = arith.constant 0 : i32
    %c0_i32_0 = arith.constant 0 : i32
    %c0_i32_1 = arith.constant 0 : i32
    return %arg0, %c0_i32, %c0_i32_0 : i32, i32, i32
  }
}

</mosaic_0001>

<llo_original>
// kernel: tpu_custom_call.1
$region0: #{tpu_custom_call.1}
  #allocation0 [shape = 'u32[]', space=smem, size = 0x4, offset = 0x4, fixed_abs, tag = 'smem constant byte address 0x4 - core index']
  #allocation1 [shape = 'u32[144,128]{1,0:T(1,128)}', space=vmem, size = 0x12000, scoped, tag = 'internal scratch']
  #allocation2 [shape = 'f32[16,96]{1,0:T(8,128)}', space=vmem, size = 0x2000, scoped, tag = 'scratch operand']
  #allocation3 [shape = 'f32[16,32]{1,0:T(8,128)}', space=vmem, size = 0x2000, scoped, tag = 'scratch operand']
  %s0 = inlined_call_operand.vmem [shape: f32[4,8,32], index: 0, kind: input, shape index: {}]
  %s1 = inlined_call_operand.vmem [shape: f32[1,32], index: 1, kind: input, shape index: {}]
  %s2 = inlined_call_operand.vmem [shape: f32[1,32], index: 2, kind: input, shape index: {}]
  %s3 = inlined_call_operand.vmem [shape: f32[32,96], index: 3, kind: input, shape index: {}]
  %s4 = inlined_call_operand.vmem [shape: f32[32,32], index: 4, kind: input, shape index: {}]
  %s5 = inlined_call_operand.vmem [shape: f32[1,32], index: 5, kind: input, shape index: {}]
  %s6 = inlined_call_operand.vmem [shape: f32[1,32], index: 6, kind: input, shape index: {}]
  %s7 = inlined_call_operand.vmem [shape: f32[1,32], index: 7, kind: input, shape index: {}]
  %s8 = inlined_call_operand.vmem [shape: f32[32,128], index: 8, kind: input, shape index: {}]
  %s9 = inlined_call_operand.vmem [shape: f32[1,128], index: 9, kind: input, shape index: {}]
  %s10 = inlined_call_operand.vmem [shape: f32[128,32], index: 10, kind: input, shape index: {}]
  %s11 = inlined_call_operand.vmem [shape: f32[1,32], index: 11, kind: input, shape index: {}]
  %s12 = inlined_call_operand.hbm [shape: f32[4,8,32], index: 12, kind: output, shape index: {}]
  %s13 = sld [smem:[#allocation0]]
  $region88: #{tpu_custom_call.1} parent=0
    _
  %s15 = ssub.s32 1, %s13
  %s16 = scalar_select 0, %s15, %s13
  $region1: #{tpu_custom_call.1} parent=0
    #allocation4 [shape = 'u8[16384]{0}', space=vmem, size = 0x4000, scoped, tag = 'output window, operand 0']
    #allocation5 [shape = 's32[2]{0}', space=sflag, size = 0x8, scoped, tag = 'scoped memory for tpu_custom_call.1']
    %17 = vsyncpa [#allocation5], 0
    %s18 = scalar_lea.sflag [#allocation5], 1
    %19 = vsyncpa %s18, 0
    loop: start=0, step=1, limit=4
    $region2: #{tpu_custom_call.1} parent=1 // loop_pre_header
      _
    $region3: #{tpu_custom_call.1} parent=1 // loop_header
      %s21 = sphi 0, %s25
      %p22 = scmp.ge.s32.totalorder %s21, 4
      %s31 = sphi 0, %s33
      %s34 = sphi 0, %s31
      %s35 = sphi 0, %s34
      %s51 = sphi 0, %s35
      %s55 = sphi 0, %s55
      %s57 = sphi 0, %s55
      %s58 = sphi 0, %s57
      %s72 = sphi 0, %s58
      %s76 = sphi 0, %s76
      %s78 = sphi 0, %s76
      %s79 = sphi 0, %s78
      %s93 = sphi 0, %s79
      %s97 = sphi 0, %s97
      %s99 = sphi 0, %s97
      %s100 = sphi 0, %s99
      %s114 = sphi 0, %s100
      %s118 = sphi 0, %s118
      %s120 = sphi 0, %s118
      %s121 = sphi 0, %s120
      %s135 = sphi 0, %s121
      %s139 = sphi 0, %s139
      %s141 = sphi 0, %s139
      %s142 = sphi 0, %s141
      %s156 = sphi 0, %s142
      %s160 = sphi 0, %s160
      %s162 = sphi 0, %s160
      %s163 = sphi 0, %s162
      %s177 = sphi 0, %s163
      %s181 = sphi 0, %s181
      %s183 = sphi 0, %s181
      %s184 = sphi 0, %s183
      %s198 = sphi 0, %s184
      %s202 = sphi 0, %s202
      %s204 = sphi 0, %s202
      %s205 = sphi 0, %s204
      %s219 = sphi 0, %s205
      %s223 = sphi 0, %s223
      %s225 = sphi 0, %s223
      %s226 = sphi 0, %s225
      %s240 = sphi 0, %s226
      %s244 = sphi 0, %s244
      %s246 = sphi 0, %s244
      %s247 = sphi 0, %s246
      %s261 = sphi 0, %s247
      %s265 = sphi 0, %s265
      %s267 = sphi 0, %s265
      %s268 = sphi 0, %s267
      %s282 = sphi 0, %s268
      %s288 = sphi 0, %s290
      %s291 = sphi 0, %s288
      %s292 = sphi 0, %s291
      %s308 = sphi 0, %s292
    $region4: #{tpu_custom_call.1} parent=1 // loop_header_branch
      %24 = sbr.rel (%p22) target = $region8
    $region5: #{tpu_custom_call.1} parent=1 // loop_body
      %s26 = ssub.s32 %s21, 1
      %s27 = ssub.s32 %s21, 2
      %s28 = sadd.s32 %s21, 1
      %s29 = ssub.s32 %s21, %s28
      %p30 = scmp.eq.s32.totalorder %s29, 0
      %s32 = sadd.s32 %s31, 1
      %s33 = scalar_select %p30, %s31, %s32
      %p36 = pneg %p30
      %p37 = scmp.eq.s32.totalorder %s21, 1
      %p38 = por %p36, %p37
      %p39 = scmp.ne.s32.totalorder %s31, %s34
      %p40 = scmp.eq.s32.totalorder %s21, 0
      %p41 = por %p39, %p40
      %p42 = scmp.ne.s32.totalorder %s31, %s34
      %p43 = scmp.eq.s32.totalorder %s26, 1
      %p44 = por %p42, %p43
      %p45 = scmp.ne.s32.totalorder %s34, %s35
      %p46 = scmp.eq.s32.totalorder %s26, 0
      %p47 = por %p45, %p46
      %p48 = scmp.ne.s32.totalorder %s34, %s35
      %p49 = scmp.eq.s32.totalorder %s27, 1
      %p50 = por %p48, %p49
      %p52 = scmp.ne.s32.totalorder %s35, %s51
      %p53 = scmp.eq.s32.totalorder %s27, 0
      %p54 = por %p52, %p53
      %s56 = sadd.s32 %s55, 1
      %p59 = scmp.eq.s32.totalorder %s21, 1
      %p60 = scmp.ne.s32.totalorder %s55, %s57
      %p61 = scmp.eq.s32.totalorder %s21, 0
      %p62 = por %p60, %p61
      %p63 = scmp.ne.s32.totalorder %s55, %s57
      %p64 = scmp.eq.s32.totalorder %s26, 1
      %p65 = por %p63, %p64
      %p66 = scmp.ne.s32.totalorder %s57, %s58
      %p67 = scmp.eq.s32.totalorder %s26, 0
      %p68 = por %p66, %p67
      %p69 = scmp.ne.s32.totalorder %s57, %s58
      %p70 = scmp.eq.s32.totalorder %s27, 1
      %p71 = por %p69, %p70
      %p73 = scmp.ne.s32.totalorder %s58, %s72
      %p74 = scmp.eq.s32.totalorder %s27, 0
      %p75 = por %p73, %p74
      %s77 = sadd.s32 %s76, 1
      %p80 = scmp.eq.s32.totalorder %s21, 1
      %p81 = scmp.ne.s32.totalorder %s76, %s78
      %p82 = scmp.eq.s32.totalorder %s21, 0
      %p83 = por %p81, %p82
      %p84 = scmp.ne.s32.totalorder %s76, %s78
      %p85 = scmp.eq.s32.totalorder %s26, 1
      %p86 = por %p84, %p85
      %p87 = scmp.ne.s32.totalorder %s78, %s79
      %p88 = scmp.eq.s32.totalorder %s26, 0
      %p89 = por %p87, %p88
      %p90 = scmp.ne.s32.totalorder %s78, %s79
      %p91 = scmp.eq.s32.totalorder %s27, 1
      %p92 = por %p90, %p91
      %p94 = scmp.ne.s32.totalorder %s79, %s93
      %p95 = scmp.eq.s32.totalorder %s27, 0
      %p96 = por %p94, %p95
      %s98 = sadd.s32 %s97, 1
      %p101 = scmp.eq.s32.totalorder %s21, 1
      %p102 = scmp.ne.s32.totalorder %s97, %s99
      %p103 = scmp.eq.s32.totalorder %s21, 0
      %p104 = por %p102, %p103
      %p105 = scmp.ne.s32.totalorder %s97, %s99
      %p106 = scmp.eq.s32.totalorder %s26, 1
      %p107 = por %p105, %p106
      %p108 = scmp.ne.s32.totalorder %s99, %s100
      %p109 = scmp.eq.s32.totalorder %s26, 0
      %p110 = por %p108, %p109
      %p111 = scmp.ne.s32.totalorder %s99, %s100
      %p112 = scmp.eq.s32.totalorder %s27, 1
      %p113 = por %p111, %p112
      %p115 = scmp.ne.s32.totalorder %s100, %s114
      %p116 = scmp.eq.s32.totalorder %s27, 0
      %p117 = por %p115, %p116
      %s119 = sadd.s32 %s118, 1
      %p122 = scmp.eq.s32.totalorder %s21, 1
      %p123 = scmp.ne.s32.totalorder %s118, %s120
      %p124 = scmp.eq.s32.totalorder %s21, 0
      %p125 = por %p123, %p124
      %p126 = scmp.ne.s32.totalorder %s118, %s120
      %p127 = scmp.eq.s32.totalorder %s26, 1
      %p128 = por %p126, %p127
      %p129 = scmp.ne.s32.totalorder %s120, %s121
      %p130 = scmp.eq.s32.totalorder %s26, 0
      %p131 = por %p129, %p130
      %p132 = scmp.ne.s32.totalorder %s120, %s121
      %p133 = scmp.eq.s32.totalorder %s27, 1
      %p134 = por %p132, %p133
      %p136 = scmp.ne.s32.totalorder %s121, %s135
      %p137 = scmp.eq.s32.totalorder %s27, 0
      %p138 = por %p136, %p137
      %s140 = sadd.s32 %s139, 1
      %p143 = scmp.eq.s32.totalorder %s21, 1
      %p144 = scmp.ne.s32.totalorder %s139, %s141
      %p145 = scmp.eq.s32.totalorder %s21, 0
      %p146 = por %p144, %p145
      %p147 = scmp.ne.s32.totalorder %s139, %s141
      %p148 = scmp.eq.s32.totalorder %s26, 1
      %p149 = por %p147, %p148
      %p150 = scmp.ne.s32.totalorder %s141, %s142
      %p151 = scmp.eq.s32.totalorder %s26, 0
      %p152 = por %p150, %p151
      %p153 = scmp.ne.s32.totalorder %s141, %s142
      %p154 = scmp.eq.s32.totalorder %s27, 1
      %p155 = por %p153, %p154
      %p157 = scmp.ne.s32.totalorder %s142, %s156
      %p158 = scmp.eq.s32.totalorder %s27, 0
      %p159 = por %p157, %p158
      %s161 = sadd.s32 %s160, 1
      %p164 = scmp.eq.s32.totalorder %s21, 1
      %p165 = scmp.ne.s32.totalorder %s160, %s162
      %p166 = scmp.eq.s32.totalorder %s21, 0
      %p167 = por %p165, %p166
      %p168 = scmp.ne.s32.totalorder %s160, %s162
      %p169 = scmp.eq.s32.totalorder %s26, 1
      %p170 = por %p168, %p169
      %p171 = scmp.ne.s32.totalorder %s162, %s163
      %p172 = scmp.eq.s32.totalorder %s26, 0
      %p173 = por %p171, %p172
      %p174 = scmp.ne.s32.totalorder %s162, %s163
      %p175 = scmp.eq.s32.totalorder %s27, 1
      %p176 = por %p174, %p175
      %p178 = scmp.ne.s32.totalorder %s163, %s177
      %p179 = scmp.eq.s32.totalorder %s27, 0
      %p180 = por %p178, %p179
      %s182 = sadd.s32 %s181, 1
      %p185 = scmp.eq.s32.totalorder %s21, 1
      %p186 = scmp.ne.s32.totalorder %s181, %s183
      %p187 = scmp.eq.s32.totalorder %s21, 0
      %p188 = por %p186, %p187
      %p189 = scmp.ne.s32.totalorder %s181, %s183
      %p190 = scmp.eq.s32.totalorder %s26, 1
      %p191 = por %p189, %p190
      %p192 = scmp.ne.s32.totalorder %s183, %s184
      %p193 = scmp.eq.s32.totalorder %s26, 0
      %p194 = por %p192, %p193
      %p195 = scmp.ne.s32.totalorder %s183, %s184
      %p196 = scmp.eq.s32.totalorder %s27, 1
      %p197 = por %p195, %p196
      %p199 = scmp.ne.s32.totalorder %s184, %s198
      %p200 = scmp.eq.s32.totalorder %s27, 0
      %p201 = por %p199, %p200
      %s203 = sadd.s32 %s202, 1
      %p206 = scmp.eq.s32.totalorder %s21, 1
      %p207 = scmp.ne.s32.totalorder %s202, %s204
      %p208 = scmp.eq.s32.totalorder %s21, 0
      %p209 = por %p207, %p208
      %p210 = scmp.ne.s32.totalorder %s202, %s204
      %p211 = scmp.eq.s32.totalorder %s26, 1
      %p212 = por %p210, %p211
      %p213 = scmp.ne.s32.totalorder %s204, %s205
      %p214 = scmp.eq.s32.totalorder %s26, 0
      %p215 = por %p213, %p214
      %p216 = scmp.ne.s32.totalorder %s204, %s205
      %p217 = scmp.eq.s32.totalorder %s27, 1
      %p218 = por %p216, %p217
      %p220 = scmp.ne.s32.totalorder %s205, %s219
      %p221 = scmp.eq.s32.totalorder %s27, 0
      %p222 = por %p220, %p221
      %s224 = sadd.s32 %s223, 1
      %p227 = scmp.eq.s32.totalorder %s21, 1
      %p228 = scmp.ne.s32.totalorder %s223, %s225
      %p229 = scmp.eq.s32.totalorder %s21, 0
      %p230 = por %p228, %p229
      %p231 = scmp.ne.s32.totalorder %s223, %s225
      %p232 = scmp.eq.s32.totalorder %s26, 1
      %p233 = por %p231, %p232
      %p234 = scmp.ne.s32.totalorder %s225, %s226
      %p235 = scmp.eq.s32.totalorder %s26, 0
      %p236 = por %p234, %p235
      %p237 = scmp.ne.s32.totalorder %s225, %s226
      %p238 = scmp.eq.s32.totalorder %s27, 1
      %p239 = por %p237, %p238
      %p241 = scmp.ne.s32.totalorder %s226, %s240
      %p242 = scmp.eq.s32.totalorder %s27, 0
      %p243 = por %p241, %p242
      %s245 = sadd.s32 %s244, 1
      %p248 = scmp.eq.s32.totalorder %s21, 1
      %p249 = scmp.ne.s32.totalorder %s244, %s246
      %p250 = scmp.eq.s32.totalorder %s21, 0
      %p251 = por %p249, %p250
      %p252 = scmp.ne.s32.totalorder %s244, %s246
      %p253 = scmp.eq.s32.totalorder %s26, 1
      %p254 = por %p252, %p253
      %p255 = scmp.ne.s32.totalorder %s246, %s247
      %p256 = scmp.eq.s32.totalorder %s26, 0
      %p257 = por %p255, %p256
      %p258 = scmp.ne.s32.totalorder %s246, %s247
      %p259 = scmp.eq.s32.totalorder %s27, 1
      %p260 = por %p258, %p259
      %p262 = scmp.ne.s32.totalorder %s247, %s261
      %p263 = scmp.eq.s32.totalorder %s27, 0
      %p264 = por %p262, %p263
      %s266 = sadd.s32 %s265, 1
      %p269 = scmp.eq.s32.totalorder %s21, 1
      %p270 = scmp.ne.s32.totalorder %s265, %s267
      %p271 = scmp.eq.s32.totalorder %s21, 0
      %p272 = por %p270, %p271
      %p273 = scmp.ne.s32.totalorder %s265, %s267
      %p274 = scmp.eq.s32.totalorder %s26, 1
      %p275 = por %p273, %p274
      %p276 = scmp.ne.s32.totalorder %s267, %s268
      %p277 = scmp.eq.s32.totalorder %s26, 0
      %p278 = por %p276, %p277
      %p279 = scmp.ne.s32.totalorder %s267, %s268
      %p280 = scmp.eq.s32.totalorder %s27, 1
      %p281 = por %p279, %p280
      %p283 = scmp.ne.s32.totalorder %s268, %s282
      %p284 = scmp.eq.s32.totalorder %s27, 0
      %p285 = por %p283, %p284
      %s286 = ssub.s32 %s21, %s28
      %p287 = scmp.eq.s32.totalorder %s286, 0
      %s289 = sadd.s32 %s288, 1
      %s290 = scalar_select %p287, %s288, %s289
      %p293 = pneg %p287
      %p294 = scmp.eq.s32.totalorder %s21, 1
      %p295 = por %p293, %p294
      %p296 = scmp.ne.s32.totalorder %s288, %s291
      %p297 = scmp.eq.s32.totalorder %s21, 0
      %p298 = por %p296, %p297
      %p299 = scmp.ne.s32.totalorder %s288, %s291
      %p300 = scmp.eq.s32.totalorder %s26, 1
      %p301 = por %p299, %p300
      %p302 = scmp.ne.s32.totalorder %s291, %s292
      %p303 = scmp.eq.s32.totalorder %s26, 0
      %p304 = por %p302, %p303
      %p305 = scmp.ne.s32.totalorder %s291, %s292
      %p306 = scmp.eq.s32.totalorder %s27, 1
      %p307 = por %p305, %p306
      %p309 = scmp.ne.s32.totalorder %s292, %s308
      %p310 = scmp.eq.s32.totalorder %s27, 0
      %p311 = por %p309, %p310
      %p312 = scmp.le.s32.totalorder 1, %s21
      %p313 = scmp.lt.s32.totalorder %s21, 3
      %p314 = pnand %p312, %p313
      %p315 = pneg %p314
      // Predicated region
      $region9: #{tpu_custom_call.1} parent=5 // pred_check
        _
      $region10: #{tpu_custom_call.1} parent=5 // pred_check_branch
        %317 = sbr.rel (%p314) target = $region12
      $region11: #{tpu_custom_call.1} parent=5 // pred_region
        %s318 = ssub.s32 %s21, 1
        // Predicated region
        $region13: #{tpu_custom_call.1} parent=11 // pred_check
          %p319 = pneg %p68
        $region14: #{tpu_custom_call.1} parent=11 // pred_check_branch
          %321 = sbr.rel (%p319) target = $region16
        $region15: #{tpu_custom_call.1} parent=11 // pred_region
          _
        $region16: #{tpu_custom_call.1} parent=11 // pred_fallthru
          _
        // Predicated region
        $region17: #{tpu_custom_call.1} parent=11 // pred_check
          %p322 = pneg %p89
        $region18: #{tpu_custom_call.1} parent=11 // pred_check_branch
          %324 = sbr.rel (%p322) target = $region20
        $region19: #{tpu_custom_call.1} parent=11 // pred_region
          _
        $region20: #{tpu_custom_call.1} parent=11 // pred_fallthru
          _
        // Predicated region
        $region21: #{tpu_custom_call.1} parent=11 // pred_check
          %p325 = pneg %p110
        $region22: #{tpu_custom_call.1} parent=11 // pred_check_branch
          %327 = sbr.rel (%p325) target = $region24
        $region23: #{tpu_custom_call.1} parent=11 // pred_region
          _
        $region24: #{tpu_custom_call.1} parent=11 // pred_fallthru
          _
        // Predicated region
        $region25: #{tpu_custom_call.1} parent=11 // pred_check
          %p328 = pneg %p131
        $region26: #{tpu_custom_call.1} parent=11 // pred_check_branch
          %330 = sbr.rel (%p328) target = $region28
        $region27: #{tpu_custom_call.1} parent=11 // pred_region
          _
        $region28: #{tpu_custom_call.1} parent=11 // pred_fallthru
          _
        // Predicated region
        $region29: #{tpu_custom_call.1} parent=11 // pred_check
          %p331 = pneg %p152
        $region30: #{tpu_custom_call.1} parent=11 // pred_check_branch
          %333 = sbr.rel (%p331) target = $region32
        $region31: #{tpu_custom_call.1} parent=11 // pred_region
          _
        $region32: #{tpu_custom_call.1} parent=11 // pred_fallthru
          _
        // Predicated region
        $region33: #{tpu_custom_call.1} parent=11 // pred_check
          %p334 = pneg %p173
        $region34: #{tpu_custom_call.1} parent=11 // pred_check_branch
          %336 = sbr.rel (%p334) target = $region36
        $region35: #{tpu_custom_call.1} parent=11 // pred_region
          _
        $region36: #{tpu_custom_call.1} parent=11 // pred_fallthru
          _
        // Predicated region
        $region37: #{tpu_custom_call.1} parent=11 // pred_check
          %p337 = pneg %p194
        $region38: #{tpu_custom_call.1} parent=11 // pred_check_branch
          %339 = sbr.rel (%p337) target = $region40
        $region39: #{tpu_custom_call.1} parent=11 // pred_region
          _
        $region40: #{tpu_custom_call.1} parent=11 // pred_fallthru
          _
        // Predicated region
        $region41: #{tpu_custom_call.1} parent=11 // pred_check
          %p340 = pneg %p215
        $region42: #{tpu_custom_call.1} parent=11 // pred_check_branch
          %342 = sbr.rel (%p340) target = $region44
        $region43: #{tpu_custom_call.1} parent=11 // pred_region
          _
        $region44: #{tpu_custom_call.1} parent=11 // pred_fallthru
          _
        // Predicated region
        $region45: #{tpu_custom_call.1} parent=11 // pred_check
          %p343 = pneg %p236
        $region46: #{tpu_custom_call.1} parent=11 // pred_check_branch
          %345 = sbr.rel (%p343) target = $region48
        $region47: #{tpu_custom_call.1} parent=11 // pred_region
          _
        $region48: #{tpu_custom_call.1} parent=11 // pred_fallthru
          _
        // Predicated region
        $region49: #{tpu_custom_call.1} parent=11 // pred_check
          %p346 = pneg %p257
        $region50: #{tpu_custom_call.1} parent=11 // pred_check_branch
          %348 = sbr.rel (%p346) target = $region52
        $region51: #{tpu_custom_call.1} parent=11 // pred_region
          _
        $region52: #{tpu_custom_call.1} parent=11 // pred_fallthru
          _
        // Predicated region
        $region53: #{tpu_custom_call.1} parent=11 // pred_check
          %p349 = pneg %p278
        $region54: #{tpu_custom_call.1} parent=11 // pred_check_branch
          %351 = sbr.rel (%p349) target = $region56
        $region55: #{tpu_custom_call.1} parent=11 // pred_region
          _
        $region56: #{tpu_custom_call.1} parent=11 // pred_fallthru
          _
      $region12: #{tpu_custom_call.1} parent=5 // pred_fallthru
        _
      %p352 = scmp.lt.s32.totalorder %s21, 2
      // Predicated region
      $region57: #{tpu_custom_call.1} parent=5 // pred_check
        %p353 = pneg %p352
      $region58: #{tpu_custom_call.1} parent=5 // pred_check_branch
        %355 = sbr.rel (%p353) target = $region60
      $region59: #{tpu_custom_call.1} parent=5 // pred_region
        // Predicated region
        $region61: #{tpu_custom_call.1} parent=59 // pred_check
          %p356 = pneg %p41
        $region62: #{tpu_custom_call.1} parent=59 // pred_check_branch
          %358 = sbr.rel (%p356) target = $region64
        $region63: #{tpu_custom_call.1} parent=59 // pred_region
          %s359 = smul.u32 2, %s21
          %p360 = scmp.lt.s32.totalorder %s359, 3
          %s361 = scalar_select %p360, %s359, 3
          %s362 = smul.addr %s361, 8
          %s363 = scalar_lea.vmem %s0, %s362
          %s364 = smul.u32 2, %s21
        $region64: #{tpu_custom_call.1} parent=59 // pred_fallthru
          _
      $region60: #{tpu_custom_call.1} parent=5 // pred_fallthru
        _
      %p365 = scmp.le.s32.totalorder 1, %s21
      %p366 = scmp.lt.s32.totalorder %s21, 3
      %p367 = pnand %p365, %p366
      %p368 = pneg %p367
      // Predicated region
      $region65: #{tpu_custom_call.1} parent=5 // pred_check
        _
      $region66: #{tpu_custom_call.1} parent=5 // pred_check_branch
        %370 = sbr.rel (%p367) target = $region68
      $region67: #{tpu_custom_call.1} parent=5 // pred_region
        %s371 = ssub.s32 %s21, 1
        %s372 = smul.u32 2, %s26
        %p373 = scmp.lt.s32.totalorder %s372, 3
        %s374 = scalar_select %p373, %s372, 3
        %s375 = smul.addr %s374, 8
        %s376 = scalar_lea.vmem %s0, %s375
        %p377 = pneg %p47
        %p378 = pneg %p44
        %p379 = pneg %p68
        %p380 = pneg %p65
        %p381 = pneg %p89
        %p382 = pneg %p86
        %p383 = pneg %p110
        %p384 = pneg %p107
        %p385 = pneg %p131
        %p386 = pneg %p128
        %p387 = pneg %p152
        %p388 = pneg %p149
        %p389 = pneg %p173
        %p390 = pneg %p170
        %p391 = pneg %p194
        %p392 = pneg %p191
        %p393 = pneg %p215
        %p394 = pneg %p212
        %p395 = pneg %p236
        %p396 = pneg %p233
        %p397 = pneg %p257
        %p398 = pneg %p254
        %p399 = pneg %p278
        %p400 = pneg %p275
        %p401 = pneg %p304
        %p402 = pneg %p301
        %s403 = sand.u32 %s291, 1
        %s404 = scalar_lea.sflag [#allocation5], %s403
        %s405 = sand.u32 %s291, 1
        %s406 = smul.addr %s405, 16
        %s407 = scalar_lea.vmem [#allocation4], %s406
        %s408 = smul.u32 2, %s26
        %p409 = scmp.lt.s32.totalorder %s408, 3
        %s410 = scalar_select %p409, %s408, 3
        %s411 = smul.addr %s410, 8
        %s412 = scalar_lea.vmem %s0, %s411
        %s413 = smul.u32 2, %s26
        %s414 = smul.u32 2, %s26
        %v415 = vld [vmem:[%s412] sm:$0xff]
        %v416 = vld [vmem:[%s412 + $0x8] sm:$0xff]
        %v417 = vld [vmem:[%s1] sm:$0x1]
        %v418 = vld [vmem:[%s2] sm:$0x1]
        %vm419 = vcmask 261120
        %v420 = vsel %vm419, %v415, 0.0
        %421 = vadd.xlane.f32.xlu0 %v420
        %v422 = vpop.xlane.xlu0 %421
        %v423 = vsel %vm419, %v416, 0.0
        %424 = vadd.xlane.f32.xlu0 %v423
        %v425 = vpop.xlane.xlu0 %424
        %v426 = vrcp.pop 32.0
        %v427 = vmul.f32 %v422, %v426
        %v428 = vmul.f32 %v425, %v426
        %v429 = vsub.f32 %v415, %v427
        %v430 = vsub.f32 %v416, %v428
        %v431 = vmul.f32 %v429, %v429
        %v432 = vmul.f32 %v430, %v430
        %v433 = vsel %vm419, %v431, 0.0
        %434 = vadd.xlane.f32.xlu0 %v433
        %v435 = vpop.xlane.xlu0 %434
        %v436 = vsel %vm419, %v432, 0.0
        %437 = vadd.xlane.f32.xlu0 %v436
        %v438 = vpop.xlane.xlu0 %437
        %v439 = vmul.f32 %v435, %v426
        %v440 = vmul.f32 %v438, %v426
        %v441 = vadd.f32 %v439, 1e-05
        %v442 = vadd.f32 %v440, 1e-05
        %v443 = vrsqrt.pop %v441
        %v444 = vrsqrt.pop %v442
        %v445 = vmul.f32 %v429, %v443
        %v446 = vmul.f32 %v430, %v444
        %v448 = vlaneseq
        %v449 = vshrl.u32 %v448, 7
        %v450 = vsub.s32 0, %v449
        %v451 = vrot.slane %v417, %v450
        %v453 = vmul.f32 %v445, %v451
        %v454 = vmul.f32 %v446, %v451
        %v456 = vlaneseq
        %v457 = vshrl.u32 %v456, 7
        %v458 = vsub.s32 0, %v457
        %v459 = vrot.slane %v418, %v458
        %v461 = vadd.f32 %v453, %v459
        %v462 = vadd.f32 %v454, %v459
        %v463 = vld [vmem:[%s3] sm:$0xff]
        %v464 = vld [vmem:[%s3 + $0x8] sm:$0xff]
        %v465 = vld [vmem:[%s3 + $0x10] sm:$0xff]
        %v466 = vld [vmem:[%s3 + $0x18] sm:$0xff]
        %v468 = vsel %vm419, %v461, 0
        %v471 = vsel %vm419, %v462, 0
        %473 = vmatprep.subr.mxu0 0.0
        %474 = vmatpush1.msra.mxu0 %v463
        %475 = vmatprep.subr.mxu0 0.0
        %476 = vmatpush1.msra.mxu0 %v464
        %477 = vmatprep.subr.mxu0 0.0
        %478 = vmatpush1.msra.mxu0 %v465
        %479 = vmatprep.subr.mxu0 0.0
        %480 = vmatpush1.msra.mxu0 %v466
        %481 = vmatprep.subr.mxu0 0.0
        %482 = vmatpush1.msra.mxu0 0.0
        %483 = vmatprep.subr.mxu0 0.0
        %484 = vmatpush1.msra.mxu0 0.0
        %485 = vmatprep.subr.mxu0 0.0
        %486 = vmatpush1.msra.mxu0 0.0
        %487 = vmatprep.subr.mxu0 0.0
        %488 = vmatpush1.msra.mxu0 0.0
        %489 = vmatprep.subr.mxu0 0.0
        %490 = vmatpush1.msra.mxu0 0.0
        %491 = vmatprep.subr.mxu0 0.0
        %492 = vmatpush1.msra.mxu0 0.0
        %493 = vmatprep.subr.mxu0 0.0
        %494 = vmatpush1.msra.mxu0 0.0
        %495 = vmatprep.subr.mxu0 0.0
        %496 = vmatpush1.msra.mxu0 0.0
        %497 = vmatprep.subr.mxu0 0.0
        %498 = vmatpush1.msra.mxu0 0.0
        %499 = vmatprep.subr.mxu0 0.0
        %500 = vmatpush1.msra.mxu0 0.0
        %501 = vmatprep.subr.mxu0 0.0
        %502 = vmatpush1.msra.mxu0 0.0
        %503 = vmatprep.subr.mxu0 0.0
        %504 = vmatpush1.msra.mxu0 0.0
        %505 = vmatprep.subr.mxu0 0.0
        %506 = vmatpush1.msra.mxu0 0.0
        %507 = vmatprep.subr.mxu0 0.0
        %508 = vmatpush1.msra.mxu0 0.0
        %509 = vmatprep.subr.mxu0 0.0
        %510 = vmatpush1.msra.mxu0 0.0
        %511 = vmatprep.subr.mxu0 0.0
        %512 = vmatpush1.msra.mxu0 0.0
        %513 = vmatprep.subr.mxu0 0.0
        %514 = vmatpush1.msra.mxu0 0.0
        %515 = vmatprep.subr.mxu0 0.0
        %516 = vmatpush1.msra.mxu0 0.0
        %517 = vmatprep.subr.mxu0 0.0
        %518 = vmatpush1.msra.mxu0 0.0
        %519 = vmatprep.subr.mxu0 0.0
        %520 = vmatpush1.msra.mxu0 0.0
        %521 = vmatprep.subr.mxu0 0.0
        %522 = vmatpush1.msra.mxu0 0.0
        %523 = vmatprep.subr.mxu0 0.0
        %524 = vmatpush1.msra.mxu0 0.0
        %525 = vmatprep.subr.mxu0 0.0
        %526 = vmatpush1.msra.mxu0 0.0
        %527 = vmatprep.subr.mxu0 0.0
        %528 = vmatpush1.msra.mxu0 0.0
        %529 = vmatprep.subr.mxu0 0.0
        %530 = vmatpush1.msra.mxu0 0.0
        %531 = vmatprep.subr.mxu0 0.0
        %532 = vmatpush1.msra.mxu0 0.0
        %533 = vmatprep.subr.mxu0 0.0
        %534 = vmatpush1.msra.mxu0 0.0
        %535 = vmatprep.subr.mxu0 0.0
        %536 = vmatpush1.msra.mxu0 0.0
        %537 = vmatprep.mubr.f32.mxu0 0.0
        %538 = vmatmul.mubr.f32.gmra.mrb[0].mxu0 %v468
        %v539 = vpop.f32.mrb[0].mxu0
        %v540 = vadd.f32 0.0, %v539
        %v541 = vpop.f32.mrb[0].mxu0
        %542 = vmatprep.mubr.f32.mxu0 0.0
        %543 = vmatmul.mubr.f32.gmra.mrb[0].mxu0 %v471
        %v544 = vpop.f32.mrb[0].mxu0
        %v545 = vadd.f32 0.0, %v544
        %v546 = vpop.f32.mrb[0].mxu0
        %547 = vdwg.mxu0
        %vm548 = vcmask 785408
        %549 = vst.msk [vmem:[#allocation2] sm:$0xff] %vm548, %v540
        %550 = vst.msk [vmem:[#allocation2 + $0x8] sm:$0xff] %vm548, %v545
        loop: start=0, step=1, limit=2
        $region69: #{tpu_custom_call.1} parent=67 // loop_pre_header
          _
        $region70: #{tpu_custom_call.1} parent=67 // loop_header
          %s552 = sphi 0, %s556
          %p553 = scmp.ge.s32.totalorder %s552, 2
        $region71: #{tpu_custom_call.1} parent=67 // loop_header_branch
          %555 = sbr.rel (%p553) target = $region75
        $region72: #{tpu_custom_call.1} parent=67 // loop_body
          %s557 = smul.u32 %s552, 8
          %s558 = scalar_lea.vmem [#allocation2], %s557
          %v559 = vld [vmem:[%s558] sm:$0xff]
          %561 = vrot.lane.b32.xlu0 %v559, 96
          %v562 = vpop.permute.xlu0 %561
          %vm563 = vcmask 64512
          %v564 = vsel %vm563, %v559, 0
          %v566 = vsel %vm563, %v562, 0
          %568 = vmatprep.subr.mxu0 0.0
          %569 = vmatpush1.xpose.msra.mxu0 %v566
          %570 = vmatprep.subr.mxu0 0.0
          %571 = vmatpush1.xpose.msra.mxu0 0.0
          %572 = vmatprep.subr.mxu0 0.0
          %573 = vmatpush1.xpose.msra.mxu0 0.0
          %574 = vmatprep.subr.mxu0 0.0
          %575 = vmatpush1.xpose.msra.mxu0 0.0
          %576 = vmatprep.subr.mxu0 0.0
          %577 = vmatpush1.xpose.msra.mxu0 0.0
          %578 = vmatprep.subr.mxu0 0.0
          %579 = vmatpush1.xpose.msra.mxu0 0.0
          %580 = vmatprep.subr.mxu0 0.0
          %581 = vmatpush1.xpose.msra.mxu0 0.0
          %582 = vmatprep.subr.mxu0 0.0
          %583 = vmatpush1.xpose.msra.mxu0 0.0
          %584 = vmatprep.subr.mxu0 0.0
          %585 = vmatpush1.xpose.msra.mxu0 0.0
          %586 = vmatprep.subr.mxu0 0.0
          %587 = vmatpush1.xpose.msra.mxu0 0.0
          %588 = vmatprep.subr.mxu0 0.0
          %589 = vmatpush1.xpose.msra.mxu0 0.0
          %590 = vmatprep.subr.mxu0 0.0
          %591 = vmatpush1.xpose.msra.mxu0 0.0
          %592 = vmatprep.subr.mxu0 0.0
          %593 = vmatpush1.xpose.msra.mxu0 0.0
          %594 = vmatprep.subr.mxu0 0.0
          %595 = vmatpush1.xpose.msra.mxu0 0.0
          %596 = vmatprep.subr.mxu0 0.0
          %597 = vmatpush1.xpose.msra.mxu0 0.0
          %598 = vmatprep.subr.mxu0 0.0
          %599 = vmatpush1.xpose.msra.mxu0 0.0
          %600 = vmatprep.subr.mxu0 0.0
          %601 = vmatpush1.xpose.msra.mxu0 0.0
          %602 = vmatprep.subr.mxu0 0.0
          %603 = vmatpush1.xpose.msra.mxu0 0.0
          %604 = vmatprep.subr.mxu0 0.0
          %605 = vmatpush1.xpose.msra.mxu0 0.0
          %606 = vmatprep.subr.mxu0 0.0
          %607 = vmatpush1.xpose.msra.mxu0 0.0
          %608 = vmatprep.subr.mxu0 0.0
          %609 = vmatpush1.xpose.msra.mxu0 0.0
          %610 = vmatprep.subr.mxu0 0.0
          %611 = vmatpush1.xpose.msra.mxu0 0.0
          %612 = vmatprep.subr.mxu0 0.0
          %613 = vmatpush1.xpose.msra.mxu0 0.0
          %614 = vmatprep.subr.mxu0 0.0
          %615 = vmatpush1.xpose.msra.mxu0 0.0
          %616 = vmatprep.subr.mxu0 0.0
          %617 = vmatpush1.xpose.msra.mxu0 0.0
          %618 = vmatprep.subr.mxu0 0.0
          %619 = vmatpush1.xpose.msra.mxu0 0.0
          %620 = vmatprep.subr.mxu0 0.0
          %621 = vmatpush1.xpose.msra.mxu0 0.0
          %622 = vmatprep.subr.mxu0 0.0
          %623 = vmatpush1.xpose.msra.mxu0 0.0
          %624 = vmatprep.subr.mxu0 0.0
          %625 = vmatpush1.xpose.msra.mxu0 0.0
          %626 = vmatprep.subr.mxu0 0.0
          %627 = vmatpush1.xpose.msra.mxu0 0.0
          %628 = vmatprep.subr.mxu0 0.0
          %629 = vmatpush1.xpose.msra.mxu0 0.0
          %630 = vmatprep.subr.mxu0 0.0
          %631 = vmatpush1.xpose.msra.mxu0 0.0
          %632 = vmatprep.mubr.f32.mxu0 0.0
          %633 = vmatmul.mubr.f32.gmra.mrb[0].mxu0 %v564
          %v634 = vpop.f32.mrb[0].mxu0
          %v635 = vadd.f32 0.0, %v634
          %v636 = vpop.f32.mrb[0].mxu0
          %637 = vdwg.mxu0
          %v638 = vsel %vm563, %v635, -inf
          %639 = vmax.xlane.f32.xlu0 %v638
          %v640 = vpop.xlane.xlu0 %639
          %v641 = vsub.f32 %v635, %v640
          %v642 = vmul.f32 %v641, 1.442695
          %v643 = vpow.pop %v642
          %v644 = vsel %vm563, %v643, 0.0
          %645 = vadd.xlane.f32.xlu0 %v644
          %v646 = vpop.xlane.xlu0 %645
          %v647 = vrcp.pop %v646
          %v648 = vmul.f32 %v643, %v647
          %649 = vrot.lane.b32.xlu0 %v559, 64
          %v650 = vpop.permute.xlu0 %649
          %v653 = vsel %vm563, %v648, 0
          %655 = vmatprep.subr.mxu0 0.0
          %656 = vmatpush1.msra.mxu0 %v650
          %657 = vmatprep.subr.mxu0 0.0
          %658 = vmatpush1.msra.mxu0 0.0
          %659 = vmatprep.subr.mxu0 0.0
          %660 = vmatpush1.msra.mxu0 0.0
          %661 = vmatprep.subr.mxu0 0.0
          %662 = vmatpush1.msra.mxu0 0.0
          %663 = vmatprep.subr.mxu0 0.0
          %664 = vmatpush1.msra.mxu0 0.0
          %665 = vmatprep.subr.mxu0 0.0
          %666 = vmatpush1.msra.mxu0 0.0
          %667 = vmatprep.subr.mxu0 0.0
          %668 = vmatpush1.msra.mxu0 0.0
          %669 = vmatprep.subr.mxu0 0.0
          %670 = vmatpush1.msra.mxu0 0.0
          %671 = vmatprep.subr.mxu0 0.0
          %672 = vmatpush1.msra.mxu0 0.0
          %673 = vmatprep.subr.mxu0 0.0
          %674 = vmatpush1.msra.mxu0 0.0
          %675 = vmatprep.subr.mxu0 0.0
          %676 = vmatpush1.msra.mxu0 0.0
          %677 = vmatprep.subr.mxu0 0.0
          %678 = vmatpush1.msra.mxu0 0.0
          %679 = vmatprep.subr.mxu0 0.0
          %680 = vmatpush1.msra.mxu0 0.0
          %681 = vmatprep.subr.mxu0 0.0
          %682 = vmatpush1.msra.mxu0 0.0
          %683 = vmatprep.subr.mxu0 0.0
          %684 = vmatpush1.msra.mxu0 0.0
          %685 = vmatprep.subr.mxu0 0.0
          %686 = vmatpush1.msra.mxu0 0.0
          %687 = vmatprep.subr.mxu0 0.0
          %688 = vmatpush1.msra.mxu0 0.0
          %689 = vmatprep.subr.mxu0 0.0
          %690 = vmatpush1.msra.mxu0 0.0
          %691 = vmatprep.subr.mxu0 0.0
          %692 = vmatpush1.msra.mxu0 0.0
          %693 = vmatprep.subr.mxu0 0.0
          %694 = vmatpush1.msra.mxu0 0.0
          %695 = vmatprep.subr.mxu0 0.0
          %696 = vmatpush1.msra.mxu0 0.0
          %697 = vmatprep.subr.mxu0 0.0
          %698 = vmatpush1.msra.mxu0 0.0
          %699 = vmatprep.subr.mxu0 0.0
          %700 = vmatpush1.msra.mxu0 0.0
          %701 = vmatprep.subr.mxu0 0.0
          %702 = vmatpush1.msra.mxu0 0.0
          %703 = vmatprep.subr.mxu0 0.0
          %704 = vmatpush1.msra.mxu0 0.0
          %705 = vmatprep.subr.mxu0 0.0
          %706 = vmatpush1.msra.mxu0 0.0
          %707 = vmatprep.subr.mxu0 0.0
          %708 = vmatpush1.msra.mxu0 0.0
          %709 = vmatprep.subr.mxu0 0.0
          %710 = vmatpush1.msra.mxu0 0.0
          %711 = vmatprep.subr.mxu0 0.0
          %712 = vmatpush1.msra.mxu0 0.0
          %713 = vmatprep.subr.mxu0 0.0
          %714 = vmatpush1.msra.mxu0 0.0
          %715 = vmatprep.subr.mxu0 0.0
          %716 = vmatpush1.msra.mxu0 0.0
          %717 = vmatprep.subr.mxu0 0.0
          %718 = vmatpush1.msra.mxu0 0.0
          %719 = vmatprep.mubr.f32.mxu0 0.0
          %720 = vmatmul.mubr.f32.gmra.mrb[0].mxu0 %v653
          %v721 = vpop.f32.mrb[0].mxu0
          %v722 = vadd.f32 0.0, %v721
          %v723 = vpop.f32.mrb[0].mxu0
          %724 = vdwg.mxu0
          %s725 = scalar_lea.vmem [#allocation3], %s557
          %726 = vst.msk [vmem:[%s725] sm:$0xff] %vm563, %v722
          %v727 = vld [vmem:[%s558] sm:$0xff]
          %729 = vrot.lane.b32.xlu0 %v727, 120
          %v730 = vpop.permute.xlu0 %729
          %731 = vrot.lane.b32.xlu0 %v727, 88
          %v732 = vpop.permute.xlu0 %731
          %v733 = vsel %vm563, %v730, 0
          %v735 = vsel %vm563, %v732, 0
          %737 = vmatprep.subr.mxu0 0.0
          %738 = vmatpush1.xpose.msra.mxu0 %v735
          %739 = vmatprep.subr.mxu0 0.0
          %740 = vmatpush1.xpose.msra.mxu0 0.0
          %741 = vmatprep.subr.mxu0 0.0
          %742 = vmatpush1.xpose.msra.mxu0 0.0
          %743 = vmatprep.subr.mxu0 0.0
          %744 = vmatpush1.xpose.msra.mxu0 0.0
          %745 = vmatprep.subr.mxu0 0.0
          %746 = vmatpush1.xpose.msra.mxu0 0.0
          %747 = vmatprep.subr.mxu0 0.0
          %748 = vmatpush1.xpose.msra.mxu0 0.0
          %749 = vmatprep.subr.mxu0 0.0
          %750 = vmatpush1.xpose.msra.mxu0 0.0
          %751 = vmatprep.subr.mxu0 0.0
          %752 = vmatpush1.xpose.msra.mxu0 0.0
          %753 = vmatprep.subr.mxu0 0.0
          %754 = vmatpush1.xpose.msra.mxu0 0.0
          %755 = vmatprep.subr.mxu0 0.0
          %756 = vmatpush1.xpose.msra.mxu0 0.0
          %757 = vmatprep.subr.mxu0 0.0
          %758 = vmatpush1.xpose.msra.mxu0 0.0
          %759 = vmatprep.subr.mxu0 0.0
          %760 = vmatpush1.xpose.msra.mxu0 0.0
          %761 = vmatprep.subr.mxu0 0.0
          %762 = vmatpush1.xpose.msra.mxu0 0.0
          %763 = vmatprep.subr.mxu0 0.0
          %764 = vmatpush1.xpose.msra.mxu0 0.0
          %765 = vmatprep.subr.mxu0 0.0
          %766 = vmatpush1.xpose.msra.mxu0 0.0
          %767 = vmatprep.subr.mxu0 0.0
          %768 = vmatpush1.xpose.msra.mxu0 0.0
          %769 = vmatprep.subr.mxu0 0.0
          %770 = vmatpush1.xpose.msra.mxu0 0.0
          %771 = vmatprep.subr.mxu0 0.0
          %772 = vmatpush1.xpose.msra.mxu0 0.0
          %773 = vmatprep.subr.mxu0 0.0
          %774 = vmatpush1.xpose.msra.mxu0 0.0
          %775 = vmatprep.subr.mxu0 0.0
          %776 = vmatpush1.xpose.msra.mxu0 0.0
          %777 = vmatprep.subr.mxu0 0.0
          %778 = vmatpush1.xpose.msra.mxu0 0.0
          %779 = vmatprep.subr.mxu0 0.0
          %780 = vmatpush1.xpose.msra.mxu0 0.0
          %781 = vmatprep.subr.mxu0 0.0
          %782 = vmatpush1.xpose.msra.mxu0 0.0
          %783 = vmatprep.subr.mxu0 0.0
          %784 = vmatpush1.xpose.msra.mxu0 0.0
          %785 = vmatprep.subr.mxu0 0.0
          %786 = vmatpush1.xpose.msra.mxu0 0.0
          %787 = vmatprep.subr.mxu0 0.0
          %788 = vmatpush1.xpose.msra.mxu0 0.0
          %789 = vmatprep.subr.mxu0 0.0
          %790 = vmatpush1.xpose.msra.mxu0 0.0
          %791 = vmatprep.subr.mxu0 0.0
          %792 = vmatpush1.xpose.msra.mxu0 0.0
          %793 = vmatprep.subr.mxu0 0.0
          %794 = vmatpush1.xpose.msra.mxu0 0.0
          %795 = vmatprep.subr.mxu0 0.0
          %796 = vmatpush1.xpose.msra.mxu0 0.0
          %797 = vmatprep.subr.mxu0 0.0
          %798 = vmatpush1.xpose.msra.mxu0 0.0
          %799 = vmatprep.subr.mxu0 0.0
          %800 = vmatpush1.xpose.msra.mxu0 0.0
          %801 = vmatprep.mubr.f32.mxu0 0.0
          %802 = vmatmul.mubr.f32.gmra.mrb[0].mxu0 %v733
          %v803 = vpop.f32.mrb[0].mxu0
          %v804 = vadd.f32 0.0, %v803
          %v805 = vpop.f32.mrb[0].mxu0
          %806 = vdwg.mxu0
          %v807 = vsel %vm563, %v804, -inf
          %808 = vmax.xlane.f32.xlu0 %v807
          %v809 = vpop.xlane.xlu0 %808
          %v810 = vsub.f32 %v804, %v809
          %v811 = vmul.f32 %v810, 1.442695
          %v812 = vpow.pop %v811
          %v813 = vsel %vm563, %v812, 0.0
          %814 = vadd.xlane.f32.xlu0 %v813
          %v815 = vpop.xlane.xlu0 %814
          %v816 = vrcp.pop %v815
          %v817 = vmul.f32 %v812, %v816
          %818 = vrot.lane.b32.xlu0 %v727, 56
          %v819 = vpop.permute.xlu0 %818
          %v822 = vsel %vm563, %v817, 0
          %824 = vmatprep.subr.mxu0 0.0
          %825 = vmatpush1.msra.mxu0 %v819
          %826 = vmatprep.subr.mxu0 0.0
          %827 = vmatpush1.msra.mxu0 0.0
          %828 = vmatprep.subr.mxu0 0.0
          %829 = vmatpush1.msra.mxu0 0.0
          %830 = vmatprep.subr.mxu0 0.0
          %831 = vmatpush1.msra.mxu0 0.0
          %832 = vmatprep.subr.mxu0 0.0
          %833 = vmatpush1.msra.mxu0 0.0
          %834 = vmatprep.subr.mxu0 0.0
          %835 = vmatpush1.msra.mxu0 0.0
          %836 = vmatprep.subr.mxu0 0.0
          %837 = vmatpush1.msra.mxu0 0.0
          %838 = vmatprep.subr.mxu0 0.0
          %839 = vmatpush1.msra.mxu0 0.0
          %840 = vmatprep.subr.mxu0 0.0
          %841 = vmatpush1.msra.mxu0 0.0
          %842 = vmatprep.subr.mxu0 0.0
          %843 = vmatpush1.msra.mxu0 0.0
          %844 = vmatprep.subr.mxu0 0.0
          %845 = vmatpush1.msra.mxu0 0.0
          %846 = vmatprep.subr.mxu0 0.0
          %847 = vmatpush1.msra.mxu0 0.0
          %848 = vmatprep.subr.mxu0 0.0
          %849 = vmatpush1.msra.mxu0 0.0
          %850 = vmatprep.subr.mxu0 0.0
          %851 = vmatpush1.msra.mxu0 0.0
          %852 = vmatprep.subr.mxu0 0.0
          %853 = vmatpush1.msra.mxu0 0.0
          %854 = vmatprep.subr.mxu0 0.0
          %855 = vmatpush1.msra.mxu0 0.0
          %856 = vmatprep.subr.mxu0 0.0
          %857 = vmatpush1.msra.mxu0 0.0
          %858 = vmatprep.subr.mxu0 0.0
          %859 = vmatpush1.msra.mxu0 0.0
          %860 = vmatprep.subr.mxu0 0.0
          %861 = vmatpush1.msra.mxu0 0.0
          %862 = vmatprep.subr.mxu0 0.0
          %863 = vmatpush1.msra.mxu0 0.0
          %864 = vmatprep.subr.mxu0 0.0
          %865 = vmatpush1.msra.mxu0 0.0
          %866 = vmatprep.subr.mxu0 0.0
          %867 = vmatpush1.msra.mxu0 0.0
          %868 = vmatprep.subr.mxu0 0.0
          %869 = vmatpush1.msra.mxu0 0.0
          %870 = vmatprep.subr.mxu0 0.0
          %871 = vmatpush1.msra.mxu0 0.0
          %872 = vmatprep.subr.mxu0 0.0
          %873 = vmatpush1.msra.mxu0 0.0
          %874 = vmatprep.subr.mxu0 0.0
          %875 = vmatpush1.msra.mxu0 0.0
          %876 = vmatprep.subr.mxu0 0.0
          %877 = vmatpush1.msra.mxu0 0.0
          %878 = vmatprep.subr.mxu0 0.0
          %879 = vmatpush1.msra.mxu0 0.0
          %880 = vmatprep.subr.mxu0 0.0
          %881 = vmatpush1.msra.mxu0 0.0
          %882 = vmatprep.subr.mxu0 0.0
          %883 = vmatpush1.msra.mxu0 0.0
          %884 = vmatprep.subr.mxu0 0.0
          %885 = vmatpush1.msra.mxu0 0.0
          %886 = vmatprep.subr.mxu0 0.0
          %887 = vmatpush1.msra.mxu0 0.0
          %888 = vmatprep.mubr.f32.mxu0 0.0
          %889 = vmatmul.mubr.f32.gmra.mrb[0].mxu0 %v822
          %v890 = vpop.f32.mrb[0].mxu0
          %v891 = vadd.f32 0.0, %v890
          %v892 = vpop.f32.mrb[0].mxu0
          %893 = vdwg.mxu0
          %895 = vrot.lane.b32.xlu0 %v891, 8
          %v896 = vpop.permute.xlu0 %895
          %vm898 = vcmask 130112
          %899 = vst.msk [vmem:[%s725] sm:$0xff] %vm898, %v896
          %v900 = vld [vmem:[%s558] sm:$0xff]
          %902 = vrot.lane.b32.xlu0 %v900, 112
          %v903 = vpop.permute.xlu0 %902
          %904 = vrot.lane.b32.xlu0 %v900, 80
          %v905 = vpop.permute.xlu0 %904
          %v906 = vsel %vm563, %v903, 0
          %v908 = vsel %vm563, %v905, 0
          %910 = vmatprep.subr.mxu0 0.0
          %911 = vmatpush1.xpose.msra.mxu0 %v908
          %912 = vmatprep.subr.mxu0 0.0
          %913 = vmatpush1.xpose.msra.mxu0 0.0
          %914 = vmatprep.subr.mxu0 0.0
          %915 = vmatpush1.xpose.msra.mxu0 0.0
          %916 = vmatprep.subr.mxu0 0.0
          %917 = vmatpush1.xpose.msra.mxu0 0.0
          %918 = vmatprep.subr.mxu0 0.0
          %919 = vmatpush1.xpose.msra.mxu0 0.0
          %920 = vmatprep.subr.mxu0 0.0
          %921 = vmatpush1.xpose.msra.mxu0 0.0
          %922 = vmatprep.subr.mxu0 0.0
          %923 = vmatpush1.xpose.msra.mxu0 0.0
          %924 = vmatprep.subr.mxu0 0.0
          %925 = vmatpush1.xpose.msra.mxu0 0.0
          %926 = vmatprep.subr.mxu0 0.0
          %927 = vmatpush1.xpose.msra.mxu0 0.0
          %928 = vmatprep.subr.mxu0 0.0
          %929 = vmatpush1.xpose.msra.mxu0 0.0
          %930 = vmatprep.subr.mxu0 0.0
          %931 = vmatpush1.xpose.msra.mxu0 0.0
          %932 = vmatprep.subr.mxu0 0.0
          %933 = vmatpush1.xpose.msra.mxu0 0.0
          %934 = vmatprep.subr.mxu0 0.0
          %935 = vmatpush1.xpose.msra.mxu0 0.0
          %936 = vmatprep.subr.mxu0 0.0
          %937 = vmatpush1.xpose.msra.mxu0 0.0
          %938 = vmatprep.subr.mxu0 0.0
          %939 = vmatpush1.xpose.msra.mxu0 0.0
          %940 = vmatprep.subr.mxu0 0.0
          %941 = vmatpush1.xpose.msra.mxu0 0.0
          %942 = vmatprep.subr.mxu0 0.0
          %943 = vmatpush1.xpose.msra.mxu0 0.0
          %944 = vmatprep.subr.mxu0 0.0
          %945 = vmatpush1.xpose.msra.mxu0 0.0
          %946 = vmatprep.subr.mxu0 0.0
          %947 = vmatpush1.xpose.msra.mxu0 0.0
          %948 = vmatprep.subr.mxu0 0.0
          %949 = vmatpush1.xpose.msra.mxu0 0.0
          %950 = vmatprep.subr.mxu0 0.0
          %951 = vmatpush1.xpose.msra.mxu0 0.0
          %952 = vmatprep.subr.mxu0 0.0
          %953 = vmatpush1.xpose.msra.mxu0 0.0
          %954 = vmatprep.subr.mxu0 0.0
          %955 = vmatpush1.xpose.msra.mxu0 0.0
          %956 = vmatprep.subr.mxu0 0.0
          %957 = vmatpush1.xpose.msra.mxu0 0.0
          %958 = vmatprep.subr.mxu0 0.0
          %959 = vmatpush1.xpose.msra.mxu0 0.0
          %960 = vmatprep.subr.mxu0 0.0
          %961 = vmatpush1.xpose.msra.mxu0 0.0
          %962 = vmatprep.subr.mxu0 0.0
          %963 = vmatpush1.xpose.msra.mxu0 0.0
          %964 = vmatprep.subr.mxu0 0.0
          %965 = vmatpush1.xpose.msra.mxu0 0.0
          %966 = vmatprep.subr.mxu0 0.0
          %967 = vmatpush1.xpose.msra.mxu0 0.0
          %968 = vmatprep.subr.mxu0 0.0
          %969 = vmatpush1.xpose.msra.mxu0 0.0
          %970 = vmatprep.subr.mxu0 0.0
          %971 = vmatpush1.xpose.msra.mxu0 0.0
          %972 = vmatprep.subr.mxu0 0.0
          %973 = vmatpush1.xpose.msra.mxu0 0.0
          %974 = vmatprep.mubr.f32.mxu0 0.0
          %975 = vmatmul.mubr.f32.gmra.mrb[0].mxu0 %v906
          %v976 = vpop.f32.mrb[0].mxu0
          %v977 = vadd.f32 0.0, %v976
          %v978 = vpop.f32.mrb[0].mxu0
          %979 = vdwg.mxu0
          %v980 = vsel %vm563, %v977, -inf
          %981 = vmax.xlane.f32.xlu0 %v980
          %v982 = vpop.xlane.xlu0 %981
          %v983 = vsub.f32 %v977, %v982
          %v984 = vmul.f32 %v983, 1.442695
          %v985 = vpow.pop %v984
          %v986 = vsel %vm563, %v985, 0.0
          %987 = vadd.xlane.f32.xlu0 %v986
          %v988 = vpop.xlane.xlu0 %987
          %v989 = vrcp.pop %v988
          %v990 = vmul.f32 %v985, %v989
          %991 = vrot.lane.b32.xlu0 %v900, 48
          %v992 = vpop.permute.xlu0 %991
          %v995 = vsel %vm563, %v990, 0
          %997 = vmatprep.subr.mxu0 0.0
          %998 = vmatpush1.msra.mxu0 %v992
          %999 = vmatprep.subr.mxu0 0.0
          %1000 = vmatpush1.msra.mxu0 0.0
          %1001 = vmatprep.subr.mxu0 0.0
          %1002 = vmatpush1.msra.mxu0 0.0
          %1003 = vmatprep.subr.mxu0 0.0
          %1004 = vmatpush1.msra.mxu0 0.0
          %1005 = vmatprep.subr.mxu0 0.0
          %1006 = vmatpush1.msra.mxu0 0.0
          %1007 = vmatprep.subr.mxu0 0.0
          %1008 = vmatpush1.msra.mxu0 0.0
          %1009 = vmatprep.subr.mxu0 0.0
          %1010 = vmatpush1.msra.mxu0 0.0
          %1011 = vmatprep.subr.mxu0 0.0
          %1012 = vmatpush1.msra.mxu0 0.0
          %1013 = vmatprep.subr.mxu0 0.0
          %1014 = vmatpush1.msra.mxu0 0.0
          %1015 = vmatprep.subr.mxu0 0.0
          %1016 = vmatpush1.msra.mxu0 0.0
          %1017 = vmatprep.subr.mxu0 0.0
          %1018 = vmatpush1.msra.mxu0 0.0
          %1019 = vmatprep.subr.mxu0 0.0
          %1020 = vmatpush1.msra.mxu0 0.0
          %1021 = vmatprep.subr.mxu0 0.0
          %1022 = vmatpush1.msra.mxu0 0.0
          %1023 = vmatprep.subr.mxu0 0.0
          %1024 = vmatpush1.msra.mxu0 0.0
          %1025 = vmatprep.subr.mxu0 0.0
          %1026 = vmatpush1.msra.mxu0 0.0
          %1027 = vmatprep.subr.mxu0 0.0
          %1028 = vmatpush1.msra.mxu0 0.0
          %1029 = vmatprep.subr.mxu0 0.0
          %1030 = vmatpush1.msra.mxu0 0.0
          %1031 = vmatprep.subr.mxu0 0.0
          %1032 = vmatpush1.msra.mxu0 0.0
          %1033 = vmatprep.subr.mxu0 0.0
          %1034 = vmatpush1.msra.mxu0 0.0
          %1035 = vmatprep.subr.mxu0 0.0
          %1036 = vmatpush1.msra.mxu0 0.0
          %1037 = vmatprep.subr.mxu0 0.0
          %1038 = vmatpush1.msra.mxu0 0.0
          %1039 = vmatprep.subr.mxu0 0.0
          %1040 = vmatpush1.msra.mxu0 0.0
          %1041 = vmatprep.subr.mxu0 0.0
          %1042 = vmatpush1.msra.mxu0 0.0
          %1043 = vmatprep.subr.mxu0 0.0
          %1044 = vmatpush1.msra.mxu0 0.0
          %1045 = vmatprep.subr.mxu0 0.0
          %1046 = vmatpush1.msra.mxu0 0.0
          %1047 = vmatprep.subr.mxu0 0.0
          %1048 = vmatpush1.msra.mxu0 0.0
          %1049 = vmatprep.subr.mxu0 0.0
          %1050 = vmatpush1.msra.mxu0 0.0
          %1051 = vmatprep.subr.mxu0 0.0
          %1052 = vmatpush1.msra.mxu0 0.0
          %1053 = vmatprep.subr.mxu0 0.0
          %1054 = vmatpush1.msra.mxu0 0.0
          %1055 = vmatprep.subr.mxu0 0.0
          %1056 = vmatpush1.msra.mxu0 0.0
          %1057 = vmatprep.subr.mxu0 0.0
          %1058 = vmatpush1.msra.mxu0 0.0
          %1059 = vmatprep.subr.mxu0 0.0
          %1060 = vmatpush1.msra.mxu0 0.0
          %1061 = vmatprep.mubr.f32.mxu0 0.0
          %1062 = vmatmul.mubr.f32.gmra.mrb[0].mxu0 %v995
          %v1063 = vpop.f32.mrb[0].mxu0
          %v1064 = vadd.f32 0.0, %v1063
          %v1065 = vpop.f32.mrb[0].mxu0
          %1066 = vdwg.mxu0
          %1068 = vrot.lane.b32.xlu0 %v1064, 16
          %v1069 = vpop.permute.xlu0 %1068
          %vm1071 = vcmask 195712
          %1072 = vst.msk [vmem:[%s725] sm:$0xff] %vm1071, %v1069
          %v1073 = vld [vmem:[%s558] sm:$0xff]
          %1075 = vrot.lane.b32.xlu0 %v1073, 104
          %v1076 = vpop.permute.xlu0 %1075
          %1077 = vrot.lane.b32.xlu0 %v1073, 72
          %v1078 = vpop.permute.xlu0 %1077
          %v1079 = vsel %vm563, %v1076, 0
          %v1081 = vsel %vm563, %v1078, 0
          %1083 = vmatprep.subr.mxu0 0.0
          %1084 = vmatpush1.xpose.msra.mxu0 %v1081
          %1085 = vmatprep.subr.mxu0 0.0
          %1086 = vmatpush1.xpose.msra.mxu0 0.0
          %1087 = vmatprep.subr.mxu0 0.0
          %1088 = vmatpush1.xpose.msra.mxu0 0.0
          %1089 = vmatprep.subr.mxu0 0.0
          %1090 = vmatpush1.xpose.msra.mxu0 0.0
          %1091 = vmatprep.subr.mxu0 0.0
          %1092 = vmatpush1.xpose.msra.mxu0 0.0
          %1093 = vmatprep.subr.mxu0 0.0
          %1094 = vmatpush1.xpose.msra.mxu0 0.0
          %1095 = vmatprep.subr.mxu0 0.0
          %1096 = vmatpush1.xpose.msra.mxu0 0.0
          %1097 = vmatprep.subr.mxu0 0.0
          %1098 = vmatpush1.xpose.msra.mxu0 0.0
          %1099 = vmatprep.subr.mxu0 0.0
          %1100 = vmatpush1.xpose.msra.mxu0 0.0
          %1101 = vmatprep.subr.mxu0 0.0
          %1102 = vmatpush1.xpose.msra.mxu0 0.0
          %1103 = vmatprep.subr.mxu0 0.0
          %1104 = vmatpush1.xpose.msra.mxu0 0.0
          %1105 = vmatprep.subr.mxu0 0.0
          %1106 = vmatpush1.xpose.msra.mxu0 0.0
          %1107 = vmatprep.subr.mxu0 0.0
          %1108 = vmatpush1.xpose.msra.mxu0 0.0
          %1109 = vmatprep.subr.mxu0 0.0
          %1110 = vmatpush1.xpose.msra.mxu0 0.0
          %1111 = vmatprep.subr.mxu0 0.0
          %1112 = vmatpush1.xpose.msra.mxu0 0.0
          %1113 = vmatprep.subr.mxu0 0.0
          %1114 = vmatpush1.xpose.msra.mxu0 0.0
          %1115 = vmatprep.subr.mxu0 0.0
          %1116 = vmatpush1.xpose.msra.mxu0 0.0
          %1117 = vmatprep.subr.mxu0 0.0
          %1118 = vmatpush1.xpose.msra.mxu0 0.0
          %1119 = vmatprep.subr.mxu0 0.0
          %1120 = vmatpush1.xpose.msra.mxu0 0.0
          %1121 = vmatprep.subr.mxu0 0.0
          %1122 = vmatpush1.xpose.msra.mxu0 0.0
          %1123 = vmatprep.subr.mxu0 0.0
          %1124 = vmatpush1.xpose.msra.mxu0 0.0
          %1125 = vmatprep.subr.mxu0 0.0
          %1126 = vmatpush1.xpose.msra.mxu0 0.0
          %1127 = vmatprep.subr.mxu0 0.0
          %1128 = vmatpush1.xpose.msra.mxu0 0.0
          %1129 = vmatprep.subr.mxu0 0.0
          %1130 = vmatpush1.xpose.msra.mxu0 0.0
          %1131 = vmatprep.subr.mxu0 0.0
          %1132 = vmatpush1.xpose.msra.mxu0 0.0
          %1133 = vmatprep.subr.mxu0 0.0
          %1134 = vmatpush1.xpose.msra.mxu0 0.0
          %1135 = vmatprep.subr.mxu0 0.0
          %1136 = vmatpush1.xpose.msra.mxu0 0.0
          %1137 = vmatprep.subr.mxu0 0.0
          %1138 = vmatpush1.xpose.msra.mxu0 0.0
          %1139 = vmatprep.subr.mxu0 0.0
          %1140 = vmatpush1.xpose.msra.mxu0 0.0
          %1141 = vmatprep.subr.mxu0 0.0
          %1142 = vmatpush1.xpose.msra.mxu0 0.0
          %1143 = vmatprep.subr.mxu0 0.0
          %1144 = vmatpush1.xpose.msra.mxu0 0.0
          %1145 = vmatprep.subr.mxu0 0.0
          %1146 = vmatpush1.xpose.msra.mxu0 0.0
          %1147 = vmatprep.mubr.f32.mxu0 0.0
          %1148 = vmatmul.mubr.f32.gmra.mrb[0].mxu0 %v1079
          %v1149 = vpop.f32.mrb[0].mxu0
          %v1150 = vadd.f32 0.0, %v1149
          %v1151 = vpop.f32.mrb[0].mxu0
          %1152 = vdwg.mxu0
          %v1153 = vsel %vm563, %v1150, -inf
          %1154 = vmax.xlane.f32.xlu0 %v1153
          %v1155 = vpop.xlane.xlu0 %1154
          %v1156 = vsub.f32 %v1150, %v1155
          %v1157 = vmul.f32 %v1156, 1.442695
          %v1158 = vpow.pop %v1157
          %v1159 = vsel %vm563, %v1158, 0.0
          %1160 = vadd.xlane.f32.xlu0 %v1159
          %v1161 = vpop.xlane.xlu0 %1160
          %v1162 = vrcp.pop %v1161
          %v1163 = vmul.f32 %v1158, %v1162
          %1164 = vrot.lane.b32.xlu0 %v1073, 40
          %v1165 = vpop.permute.xlu0 %1164
          %v1168 = vsel %vm563, %v1163, 0
          %1170 = vmatprep.subr.mxu0 0.0
          %1171 = vmatpush1.msra.mxu0 %v1165
          %1172 = vmatprep.subr.mxu0 0.0
          %1173 = vmatpush1.msra.mxu0 0.0
          %1174 = vmatprep.subr.mxu0 0.0
          %1175 = vmatpush1.msra.mxu0 0.0
          %1176 = vmatprep.subr.mxu0 0.0
          %1177 = vmatpush1.msra.mxu0 0.0
          %1178 = vmatprep.subr.mxu0 0.0
          %1179 = vmatpush1.msra.mxu0 0.0
          %1180 = vmatprep.subr.mxu0 0.0
          %1181 = vmatpush1.msra.mxu0 0.0
          %1182 = vmatprep.subr.mxu0 0.0
          %1183 = vmatpush1.msra.mxu0 0.0
          %1184 = vmatprep.subr.mxu0 0.0
          %1185 = vmatpush1.msra.mxu0 0.0
          %1186 = vmatprep.subr.mxu0 0.0
          %1187 = vmatpush1.msra.mxu0 0.0
          %1188 = vmatprep.subr.mxu0 0.0
          %1189 = vmatpush1.msra.mxu0 0.0
          %1190 = vmatprep.subr.mxu0 0.0
          %1191 = vmatpush1.msra.mxu0 0.0
          %1192 = vmatprep.subr.mxu0 0.0
          %1193 = vmatpush1.msra.mxu0 0.0
          %1194 = vmatprep.subr.mxu0 0.0
          %1195 = vmatpush1.msra.mxu0 0.0
          %1196 = vmatprep.subr.mxu0 0.0
          %1197 = vmatpush1.msra.mxu0 0.0
          %1198 = vmatprep.subr.mxu0 0.0
          %1199 = vmatpush1.msra.mxu0 0.0
          %1200 = vmatprep.subr.mxu0 0.0
          %1201 = vmatpush1.msra.mxu0 0.0
          %1202 = vmatprep.subr.mxu0 0.0
          %1203 = vmatpush1.msra.mxu0 0.0
          %1204 = vmatprep.subr.mxu0 0.0
          %1205 = vmatpush1.msra.mxu0 0.0
          %1206 = vmatprep.subr.mxu0 0.0
          %1207 = vmatpush1.msra.mxu0 0.0
          %1208 = vmatprep.subr.mxu0 0.0
          %1209 = vmatpush1.msra.mxu0 0.0
          %1210 = vmatprep.subr.mxu0 0.0
          %1211 = vmatpush1.msra.mxu0 0.0
          %1212 = vmatprep.subr.mxu0 0.0
          %1213 = vmatpush1.msra.mxu0 0.0
          %1214 = vmatprep.subr.mxu0 0.0
          %1215 = vmatpush1.msra.mxu0 0.0
          %1216 = vmatprep.subr.mxu0 0.0
          %1217 = vmatpush1.msra.mxu0 0.0
          %1218 = vmatprep.subr.mxu0 0.0
          %1219 = vmatpush1.msra.mxu0 0.0
          %1220 = vmatprep.subr.mxu0 0.0
          %1221 = vmatpush1.msra.mxu0 0.0
          %1222 = vmatprep.subr.mxu0 0.0
          %1223 = vmatpush1.msra.mxu0 0.0
          %1224 = vmatprep.subr.mxu0 0.0
          %1225 = vmatpush1.msra.mxu0 0.0
          %1226 = vmatprep.subr.mxu0 0.0
          %1227 = vmatpush1.msra.mxu0 0.0
          %1228 = vmatprep.subr.mxu0 0.0
          %1229 = vmatpush1.msra.mxu0 0.0
          %1230 = vmatprep.subr.mxu0 0.0
          %1231 = vmatpush1.msra.mxu0 0.0
          %1232 = vmatprep.subr.mxu0 0.0
          %1233 = vmatpush1.msra.mxu0 0.0
          %1234 = vmatprep.mubr.f32.mxu0 0.0
          %1235 = vmatmul.mubr.f32.gmra.mrb[0].mxu0 %v1168
          %v1236 = vpop.f32.mrb[0].mxu0
          %v1237 = vadd.f32 0.0, %v1236
          %v1238 = vpop.f32.mrb[0].mxu0
          %1239 = vdwg.mxu0
          %1241 = vrot.lane.b32.xlu0 %v1237, 24
          %v1242 = vpop.permute.xlu0 %1241
          %vm1244 = vcmask 261312
          %1245 = vst.msk [vmem:[%s725] sm:$0xff] %vm1244, %v1242
        $region73: #{tpu_custom_call.1} parent=67 // loop_footer
          %s556 = sadd.s32 1, %s552
        $region74: #{tpu_custom_call.1} parent=67 // loop_footer_branch
          %551 = sbr.rel target = $region70
        $region75: #{tpu_custom_call.1} parent=67 // loop_exit
          _
        %v1246 = vld [vmem:[#allocation3] sm:$0xff]
        %v1247 = vld [vmem:[#allocation3 + $0x8] sm:$0xff]
        %v1248 = vld [vmem:[%s4] sm:$0xff]
        %v1249 = vld [vmem:[%s4 + $0x8] sm:$0xff]
        %v1250 = vld [vmem:[%s4 + $0x10] sm:$0xff]
        %v1251 = vld [vmem:[%s4 + $0x18] sm:$0xff]
        %v1253 = vsel %vm419, %v1246, 0
        %v1256 = vsel %vm419, %v1247, 0
        %1258 = vmatprep.subr.mxu0 0.0
        %1259 = vmatpush1.msra.mxu0 %v1248
        %1260 = vmatprep.subr.mxu0 0.0
        %1261 = vmatpush1.msra.mxu0 %v1249
        %1262 = vmatprep.subr.mxu0 0.0
        %1263 = vmatpush1.msra.mxu0 %v1250
        %1264 = vmatprep.subr.mxu0 0.0
        %1265 = vmatpush1.msra.mxu0 %v1251
        %1266 = vmatprep.subr.mxu0 0.0
        %1267 = vmatpush1.msra.mxu0 0.0
        %1268 = vmatprep.subr.mxu0 0.0
        %1269 = vmatpush1.msra.mxu0 0.0
        %1270 = vmatprep.subr.mxu0 0.0
        %1271 = vmatpush1.msra.mxu0 0.0
        %1272 = vmatprep.subr.mxu0 0.0
        %1273 = vmatpush1.msra.mxu0 0.0
        %1274 = vmatprep.subr.mxu0 0.0
        %1275 = vmatpush1.msra.mxu0 0.0
        %1276 = vmatprep.subr.mxu0 0.0
        %1277 = vmatpush1.msra.mxu0 0.0
        %1278 = vmatprep.subr.mxu0 0.0
        %1279 = vmatpush1.msra.mxu0 0.0
        %1280 = vmatprep.subr.mxu0 0.0
        %1281 = vmatpush1.msra.mxu0 0.0
        %1282 = vmatprep.subr.mxu0 0.0
        %1283 = vmatpush1.msra.mxu0 0.0
        %1284 = vmatprep.subr.mxu0 0.0
        %1285 = vmatpush1.msra.mxu0 0.0
        %1286 = vmatprep.subr.mxu0 0.0
        %1287 = vmatpush1.msra.mxu0 0.0
        %1288 = vmatprep.subr.mxu0 0.0
        %1289 = vmatpush1.msra.mxu0 0.0
        %1290 = vmatprep.subr.mxu0 0.0
        %1291 = vmatpush1.msra.mxu0 0.0
        %1292 = vmatprep.subr.mxu0 0.0
        %1293 = vmatpush1.msra.mxu0 0.0
        %1294 = vmatprep.subr.mxu0 0.0
        %1295 = vmatpush1.msra.mxu0 0.0
        %1296 = vmatprep.subr.mxu0 0.0
        %1297 = vmatpush1.msra.mxu0 0.0
        %1298 = vmatprep.subr.mxu0 0.0
        %1299 = vmatpush1.msra.mxu0 0.0
        %1300 = vmatprep.subr.mxu0 0.0
        %1301 = vmatpush1.msra.mxu0 0.0
        %1302 = vmatprep.subr.mxu0 0.0
        %1303 = vmatpush1.msra.mxu0 0.0
        %1304 = vmatprep.subr.mxu0 0.0
        %1305 = vmatpush1.msra.mxu0 0.0
        %1306 = vmatprep.subr.mxu0 0.0
        %1307 = vmatpush1.msra.mxu0 0.0
        %1308 = vmatprep.subr.mxu0 0.0
        %1309 = vmatpush1.msra.mxu0 0.0
        %1310 = vmatprep.subr.mxu0 0.0
        %1311 = vmatpush1.msra.mxu0 0.0
        %1312 = vmatprep.subr.mxu0 0.0
        %1313 = vmatpush1.msra.mxu0 0.0
        %1314 = vmatprep.subr.mxu0 0.0
        %1315 = vmatpush1.msra.mxu0 0.0
        %1316 = vmatprep.subr.mxu0 0.0
        %1317 = vmatpush1.msra.mxu0 0.0
        %1318 = vmatprep.subr.mxu0 0.0
        %1319 = vmatpush1.msra.mxu0 0.0
        %1320 = vmatprep.subr.mxu0 0.0
        %1321 = vmatpush1.msra.mxu0 0.0
        %1322 = vmatprep.mubr.f32.mxu0 0.0
        %1323 = vmatmul.mubr.f32.gmra.mrb[0].mxu0 %v1253
        %v1324 = vpop.f32.mrb[0].mxu0
        %v1325 = vadd.f32 0.0, %v1324
        %v1326 = vpop.f32.mrb[0].mxu0
        %1327 = vmatprep.mubr.f32.mxu0 0.0
        %1328 = vmatmul.mubr.f32.gmra.mrb[0].mxu0 %v1256
        %v1329 = vpop.f32.mrb[0].mxu0
        %v1330 = vadd.f32 0.0, %v1329
        %v1331 = vpop.f32.mrb[0].mxu0
        %1332 = vdwg.mxu0
        %v1333 = vadd.f32 %v415, %v1325
        %v1334 = vadd.f32 %v416, %v1330
        %v1335 = vld [vmem:[%s5] sm:$0x1]
        %v1337 = vlaneseq
        %v1338 = vshrl.u32 %v1337, 7
        %v1339 = vsub.s32 0, %v1338
        %v1340 = vrot.slane %v1335, %v1339
        %v1342 = vadd.f32 %v1333, %v1340
        %v1343 = vadd.f32 %v1334, %v1340
        %v1344 = vld [vmem:[%s6] sm:$0x1]
        %v1345 = vld [vmem:[%s7] sm:$0x1]
        %v1346 = vsel %vm419, %v1342, 0.0
        %1347 = vadd.xlane.f32.xlu0 %v1346
        %v1348 = vpop.xlane.xlu0 %1347
        %v1349 = vsel %vm419, %v1343, 0.0
        %1350 = vadd.xlane.f32.xlu0 %v1349
        %v1351 = vpop.xlane.xlu0 %1350
        %v1352 = vmul.f32 %v1348, %v426
        %v1353 = vmul.f32 %v1351, %v426
        %v1354 = vsub.f32 %v1342, %v1352
        %v1355 = vsub.f32 %v1343, %v1353
        %v1356 = vmul.f32 %v1354, %v1354
        %v1357 = vmul.f32 %v1355, %v1355
        %v1358 = vsel %vm419, %v1356, 0.0
        %1359 = vadd.xlane.f32.xlu0 %v1358
        %v1360 = vpop.xlane.xlu0 %1359
        %v1361 = vsel %vm419, %v1357, 0.0
        %1362 = vadd.xlane.f32.xlu0 %v1361
        %v1363 = vpop.xlane.xlu0 %1362
        %v1364 = vmul.f32 %v1360, %v426
        %v1365 = vmul.f32 %v1363, %v426
        %v1366 = vadd.f32 %v1364, 1e-05
        %v1367 = vadd.f32 %v1365, 1e-05
        %v1368 = vrsqrt.pop %v1366
        %v1369 = vrsqrt.pop %v1367
        %v1370 = vmul.f32 %v1354, %v1368
        %v1371 = vmul.f32 %v1355, %v1369
        %v1373 = vlaneseq
        %v1374 = vshrl.u32 %v1373, 7
        %v1375 = vsub.s32 0, %v1374
        %v1376 = vrot.slane %v1344, %v1375
        %v1378 = vmul.f32 %v1370, %v1376
        %v1379 = vmul.f32 %v1371, %v1376
        %v1381 = vlaneseq
        %v1382 = vshrl.u32 %v1381, 7
        %v1383 = vsub.s32 0, %v1382
        %v1384 = vrot.slane %v1345, %v1383
        %v1386 = vadd.f32 %v1378, %v1384
        %v1387 = vadd.f32 %v1379, %v1384
        %v1388 = vld [vmem:[%s8] sm:$0xff]
        %v1389 = vld [vmem:[%s8 + $0x8] sm:$0xff]
        %v1390 = vld [vmem:[%s8 + $0x10] sm:$0xff]
        %v1391 = vld [vmem:[%s8 + $0x18] sm:$0xff]
        %v1392 = vld [vmem:[%s9] sm:$0x1]
        %v1394 = vlaneseq
        %v1395 = vshrl.u32 %v1394, 7
        %v1396 = vsub.s32 0, %v1395
        %v1397 = vrot.slane %v1392, %v1396
        %v1400 = vsel %vm419, %v1386, 0
        %v1403 = vsel %vm419, %v1387, 0
        %1405 = vmatprep.subr.mxu0 0.0
        %1406 = vmatpush1.msra.mxu0 %v1388
        %1407 = vmatprep.subr.mxu0 0.0
        %1408 = vmatpush1.msra.mxu0 %v1389
        %1409 = vmatprep.subr.mxu0 0.0
        %1410 = vmatpush1.msra.mxu0 %v1390
        %1411 = vmatprep.subr.mxu0 0.0
        %1412 = vmatpush1.msra.mxu0 %v1391
        %1413 = vmatprep.subr.mxu0 0.0
        %1414 = vmatpush1.msra.mxu0 0.0
        %1415 = vmatprep.subr.mxu0 0.0
        %1416 = vmatpush1.msra.mxu0 0.0
        %1417 = vmatprep.subr.mxu0 0.0
        %1418 = vmatpush1.msra.mxu0 0.0
        %1419 = vmatprep.subr.mxu0 0.0
        %1420 = vmatpush1.msra.mxu0 0.0
        %1421 = vmatprep.subr.mxu0 0.0
        %1422 = vmatpush1.msra.mxu0 0.0
        %1423 = vmatprep.subr.mxu0 0.0
        %1424 = vmatpush1.msra.mxu0 0.0
        %1425 = vmatprep.subr.mxu0 0.0
        %1426 = vmatpush1.msra.mxu0 0.0
        %1427 = vmatprep.subr.mxu0 0.0
        %1428 = vmatpush1.msra.mxu0 0.0
        %1429 = vmatprep.subr.mxu0 0.0
        %1430 = vmatpush1.msra.mxu0 0.0
        %1431 = vmatprep.subr.mxu0 0.0
        %1432 = vmatpush1.msra.mxu0 0.0
        %1433 = vmatprep.subr.mxu0 0.0
        %1434 = vmatpush1.msra.mxu0 0.0
        %1435 = vmatprep.subr.mxu0 0.0
        %1436 = vmatpush1.msra.mxu0 0.0
        %1437 = vmatprep.subr.mxu0 0.0
        %1438 = vmatpush1.msra.mxu0 0.0
        %1439 = vmatprep.subr.mxu0 0.0
        %1440 = vmatpush1.msra.mxu0 0.0
        %1441 = vmatprep.subr.mxu0 0.0
        %1442 = vmatpush1.msra.mxu0 0.0
        %1443 = vmatprep.subr.mxu0 0.0
        %1444 = vmatpush1.msra.mxu0 0.0
        %1445 = vmatprep.subr.mxu0 0.0
        %1446 = vmatpush1.msra.mxu0 0.0
        %1447 = vmatprep.subr.mxu0 0.0
        %1448 = vmatpush1.msra.mxu0 0.0
        %1449 = vmatprep.subr.mxu0 0.0
        %1450 = vmatpush1.msra.mxu0 0.0
        %1451 = vmatprep.subr.mxu0 0.0
        %1452 = vmatpush1.msra.mxu0 0.0
        %1453 = vmatprep.subr.mxu0 0.0
        %1454 = vmatpush1.msra.mxu0 0.0
        %1455 = vmatprep.subr.mxu0 0.0
        %1456 = vmatpush1.msra.mxu0 0.0
        %1457 = vmatprep.subr.mxu0 0.0
        %1458 = vmatpush1.msra.mxu0 0.0
        %1459 = vmatprep.subr.mxu0 0.0
        %1460 = vmatpush1.msra.mxu0 0.0
        %1461 = vmatprep.subr.mxu0 0.0
        %1462 = vmatpush1.msra.mxu0 0.0
        %1463 = vmatprep.subr.mxu0 0.0
        %1464 = vmatpush1.msra.mxu0 0.0
        %1465 = vmatprep.subr.mxu0 0.0
        %1466 = vmatpush1.msra.mxu0 0.0
        %1467 = vmatprep.subr.mxu0 0.0
        %1468 = vmatpush1.msra.mxu0 0.0
        %1469 = vmatprep.mubr.f32.mxu0 0.0
        %1470 = vmatmul.mubr.f32.gmra.mrb[0].mxu0 %v1400
        %v1471 = vpop.f32.mrb[0].mxu0
        %v1472 = vadd.f32 %v1397, %v1471
        %v1473 = vpop.f32.mrb[0].mxu0
        %1474 = vmatprep.mubr.f32.mxu0 0.0
        %1475 = vmatmul.mubr.f32.gmra.mrb[0].mxu0 %v1403
        %v1476 = vpop.f32.mrb[0].mxu0
        %v1477 = vadd.f32 %v1397, %v1476
        %v1478 = vpop.f32.mrb[0].mxu0
        %1479 = vdwg.mxu0
        %v1480 = vmul.f32 %v1472, 0.5
        %v1481 = vmul.f32 %v1477, 0.5
        %v1482 = vmul.f32 %v1472, 0.70710677
        %v1483 = vmul.f32 %v1477, 0.70710677
        %v1484 = verf.f32.pop %v1482
        %v1485 = verf.f32.pop %v1483
        %v1486 = vadd.f32 %v1484, 1.0
        %v1487 = vadd.f32 %v1485, 1.0
        %v1488 = vmul.f32 %v1480, %v1486
        %v1489 = vmul.f32 %v1481, %v1487
        %v1490 = vld [vmem:[%s10] sm:$0xff]
        %v1491 = vld [vmem:[%s10 + $0x8] sm:$0xff]
        %v1492 = vld [vmem:[%s10 + $0x10] sm:$0xff]
        %v1493 = vld [vmem:[%s10 + $0x18] sm:$0xff]
        %v1494 = vld [vmem:[%s10 + $0x20] sm:$0xff]
        %v1495 = vld [vmem:[%s10 + $0x28] sm:$0xff]
        %v1496 = vld [vmem:[%s10 + $0x30] sm:$0xff]
        %v1497 = vld [vmem:[%s10 + $0x38] sm:$0xff]
        %v1498 = vld [vmem:[%s10 + $0x40] sm:$0xff]
        %v1499 = vld [vmem:[%s10 + $0x48] sm:$0xff]
        %v1500 = vld [vmem:[%s10 + $0x50] sm:$0xff]
        %v1501 = vld [vmem:[%s10 + $0x58] sm:$0xff]
        %v1502 = vld [vmem:[%s10 + $0x60] sm:$0xff]
        %v1503 = vld [vmem:[%s10 + $0x68] sm:$0xff]
        %v1504 = vld [vmem:[%s10 + $0x70] sm:$0xff]
        %v1505 = vld [vmem:[%s10 + $0x78] sm:$0xff]
        %v1506 = vld [vmem:[%s11] sm:$0x1]
        %v1508 = vlaneseq
        %v1509 = vshrl.u32 %v1508, 7
        %v1510 = vsub.s32 0, %v1509
        %v1511 = vrot.slane %v1506, %v1510
        %1513 = vmatprep.subr.mxu0 0.0
        %1514 = vmatpush1.msra.mxu0 %v1490
        %1515 = vmatprep.subr.mxu0 0.0
        %1516 = vmatpush1.msra.mxu0 %v1491
        %1517 = vmatprep.subr.mxu0 0.0
        %1518 = vmatpush1.msra.mxu0 %v1492
        %1519 = vmatprep.subr.mxu0 0.0
        %1520 = vmatpush1.msra.mxu0 %v1493
        %1521 = vmatprep.subr.mxu0 0.0
        %1522 = vmatpush1.msra.mxu0 %v1494
        %1523 = vmatprep.subr.mxu0 0.0
        %1524 = vmatpush1.msra.mxu0 %v1495
        %1525 = vmatprep.subr.mxu0 0.0
        %1526 = vmatpush1.msra.mxu0 %v1496
        %1527 = vmatprep.subr.mxu0 0.0
        %1528 = vmatpush1.msra.mxu0 %v1497
        %1529 = vmatprep.subr.mxu0 0.0
        %1530 = vmatpush1.msra.mxu0 %v1498
        %1531 = vmatprep.subr.mxu0 0.0
        %1532 = vmatpush1.msra.mxu0 %v1499
        %1533 = vmatprep.subr.mxu0 0.0
        %1534 = vmatpush1.msra.mxu0 %v1500
        %1535 = vmatprep.subr.mxu0 0.0
        %1536 = vmatpush1.msra.mxu0 %v1501
        %1537 = vmatprep.subr.mxu0 0.0
        %1538 = vmatpush1.msra.mxu0 %v1502
        %1539 = vmatprep.subr.mxu0 0.0
        %1540 = vmatpush1.msra.mxu0 %v1503
        %1541 = vmatprep.subr.mxu0 0.0
        %1542 = vmatpush1.msra.mxu0 %v1504
        %1543 = vmatprep.subr.mxu0 0.0
        %1544 = vmatpush1.msra.mxu0 %v1505
        %1545 = vmatprep.subr.mxu0 0.0
        %1546 = vmatpush1.msra.mxu0 0.0
        %1547 = vmatprep.subr.mxu0 0.0
        %1548 = vmatpush1.msra.mxu0 0.0
        %1549 = vmatprep.subr.mxu0 0.0
        %1550 = vmatpush1.msra.mxu0 0.0
        %1551 = vmatprep.subr.mxu0 0.0
        %1552 = vmatpush1.msra.mxu0 0.0
        %1553 = vmatprep.subr.mxu0 0.0
        %1554 = vmatpush1.msra.mxu0 0.0
        %1555 = vmatprep.subr.mxu0 0.0
        %1556 = vmatpush1.msra.mxu0 0.0
        %1557 = vmatprep.subr.mxu0 0.0
        %1558 = vmatpush1.msra.mxu0 0.0
        %1559 = vmatprep.subr.mxu0 0.0
        %1560 = vmatpush1.msra.mxu0 0.0
        %1561 = vmatprep.subr.mxu0 0.0
        %1562 = vmatpush1.msra.mxu0 0.0
        %1563 = vmatprep.subr.mxu0 0.0
        %1564 = vmatpush1.msra.mxu0 0.0
        %1565 = vmatprep.subr.mxu0 0.0
        %1566 = vmatpush1.msra.mxu0 0.0
        %1567 = vmatprep.subr.mxu0 0.0
        %1568 = vmatpush1.msra.mxu0 0.0
        %1569 = vmatprep.subr.mxu0 0.0
        %1570 = vmatpush1.msra.mxu0 0.0
        %1571 = vmatprep.subr.mxu0 0.0
        %1572 = vmatpush1.msra.mxu0 0.0
        %1573 = vmatprep.subr.mxu0 0.0
        %1574 = vmatpush1.msra.mxu0 0.0
        %1575 = vmatprep.subr.mxu0 0.0
        %1576 = vmatpush1.msra.mxu0 0.0
        %1577 = vmatprep.mubr.f32.mxu0 0.0
        %1578 = vmatmul.mubr.f32.gmra.mrb[0].mxu0 %v1488
        %v1579 = vpop.f32.mrb[0].mxu0
        %v1580 = vadd.f32 %v1511, %v1579
        %v1581 = vpop.f32.mrb[0].mxu0
        %1582 = vmatprep.mubr.f32.mxu0 0.0
        %1583 = vmatmul.mubr.f32.gmra.mrb[0].mxu0 %v1489
        %v1584 = vpop.f32.mrb[0].mxu0
        %v1585 = vadd.f32 %v1511, %v1584
        %v1586 = vpop.f32.mrb[0].mxu0
        %1587 = vdwg.mxu0
        %v1588 = vadd.f32 %v1342, %v1580
        %v1589 = vadd.f32 %v1343, %v1585
        %1590 = vst.msk [vmem:[%s407] sm:$0xff] %vm419, %v1588
        %1591 = vst.msk [vmem:[%s407 + $0x8] sm:$0xff] %vm419, %v1589
        %s1592 = sand.u32 %s291, 1
        %s1593 = scalar_lea.sflag [#allocation5], %s1592
        %s1594 = sand.u32 %s291, 1
        %s1595 = smul.addr %s1594, 16
        %s1596 = scalar_lea.vmem [#allocation4], %s1595
        // Predicated region
        $region76: #{tpu_custom_call.1} parent=67 // pred_check
          %p1597 = pneg %p301
        $region77: #{tpu_custom_call.1} parent=67 // pred_check_branch
          %1599 = sbr.rel (%p1597) target = $region79
        $region78: #{tpu_custom_call.1} parent=67 // pred_region
          %s1600 = smul.u32 2, %s26
          %s1602 = ssub.s32 256, 256
          %1603 = vsyncadd %s1593, %s1602
          %s1604 = smul.addr %s1600, 128
          %s1605 = scalar_lea.hbm %s12, %s1604
          %s1606 = sshll.u32 %s1596, 4
          %s1607 = int_to_ptr.vmem [resolvable:$true] %s1606
          %1612 = dma.vmem_to_hbm [thread:$0]  %s1607, 256, %s1605, %s1593, 128, 128, 8
        $region79: #{tpu_custom_call.1} parent=67 // pred_fallthru
          _
      $region68: #{tpu_custom_call.1} parent=5 // pred_fallthru
        _
      %p1613 = scmp.le.s32.totalorder 2, %s21
      // Predicated region
      $region80: #{tpu_custom_call.1} parent=5 // pred_check
        %p1614 = pneg %p1613
      $region81: #{tpu_custom_call.1} parent=5 // pred_check_branch
        %1616 = sbr.rel (%p1614) target = $region83
      $region82: #{tpu_custom_call.1} parent=5 // pred_region
        %s1617 = ssub.s32 %s21, 2
        // Predicated region
        $region84: #{tpu_custom_call.1} parent=82 // pred_check
          %p1618 = pneg %p307
        $region85: #{tpu_custom_call.1} parent=82 // pred_check_branch
          %1620 = sbr.rel (%p1618) target = $region87
        $region86: #{tpu_custom_call.1} parent=82 // pred_region
          %s1621 = sand.u32 %s292, 1
          %s1622 = scalar_lea.sflag [#allocation5], %s1621
          %s1623 = sand.u32 %s292, 1
          %s1624 = smul.addr %s1623, 16
          %s1625 = scalar_lea.vmem [#allocation4], %s1624
          %1626 = dma.done %s1622, 256
        $region87: #{tpu_custom_call.1} parent=82 // pred_fallthru
          _
      $region83: #{tpu_custom_call.1} parent=5 // pred_fallthru
        _
    $region6: #{tpu_custom_call.1} parent=1 // loop_footer
      %s25 = sadd.s32 1, %s21
    $region7: #{tpu_custom_call.1} parent=1 // loop_footer_branch
      %20 = sbr.rel target = $region3
    $region8: #{tpu_custom_call.1} parent=1 // loop_exit
      _
    %1627 = vsyncpa [#allocation5], 1
    %s1628 = scalar_lea.sflag [#allocation5], 1
    %1629 = vsyncpa %s1628, 1

// kernel: tpu_custom_call.1
$region0: #{tpu_custom_call.1}
  #allocation0 [shape = 'u32[]', space=smem, size = 0x4, offset = 0x4, fixed_abs, tag = 'smem constant byte address 0x4 - core index']
  #allocation1 [shape = 'u32[144,128]{1,0:T(1,128)}', space=vmem, size = 0x12000, scoped, tag = 'internal scratch']
  #allocation2 [shape = 'f32[16,96]{1,0:T(8,128)}', space=vmem, size = 0x2000, scoped, tag = 'scratch operand']
  #allocation3 [shape = 'f32[16,32]{1,0:T(8,128)}', space=vmem, size = 0x2000, scoped, tag = 'scratch operand']
  %s0 = inlined_call_operand.vmem [shape: f32[4,8,32], index: 0, kind: input, shape index: {}]
  %s1 = inlined_call_operand.vmem [shape: f32[1,32], index: 1, kind: input, shape index: {}]
  %s2 = inlined_call_operand.vmem [shape: f32[1,32], index: 2, kind: input, shape index: {}]
  %s3 = inlined_call_operand.vmem [shape: f32[32,96], index: 3, kind: input, shape index: {}]
  %s4 = inlined_call_operand.vmem [shape: f32[32,32], index: 4, kind: input, shape index: {}]
  %s5 = inlined_call_operand.vmem [shape: f32[1,32], index: 5, kind: input, shape index: {}]
  %s6 = inlined_call_operand.vmem [shape: f32[1,32], index: 6, kind: input, shape index: {}]
  %s7 = inlined_call_operand.vmem [shape: f32[1,32], index: 7, kind: input, shape index: {}]
  %s8 = inlined_call_operand.vmem [shape: f32[32,128], index: 8, kind: input, shape index: {}]
  %s9 = inlined_call_operand.vmem [shape: f32[1,128], index: 9, kind: input, shape index: {}]
  %s10 = inlined_call_operand.vmem [shape: f32[128,32], index: 10, kind: input, shape index: {}]
  %s11 = inlined_call_operand.vmem [shape: f32[1,32], index: 11, kind: input, shape index: {}]
  %s12 = inlined_call_operand.hbm [shape: f32[4,8,32], index: 12, kind: output, shape index: {}]
  %s13 = sld [smem:[#allocation0]]
  $region88: #{tpu_custom_call.1} parent=0
    _
  %s15 = ssub.s32 1, %s13
  %s16 = scalar_select 0, %s15, %s13
  $region1: #{tpu_custom_call.1} parent=0
    #allocation4 [shape = 'u8[16384]{0}', space=vmem, size = 0x4000, scoped, tag = 'output window, operand 0']
    #allocation5 [shape = 's32[2]{0}', space=sflag, size = 0x8, scoped, tag = 'scoped memory for tpu_custom_call.1']
    %17 = vsyncpa [#allocation5], 0
    %s18 = scalar_lea.sflag [#allocation5], 1
    %19 = vsyncpa %s18, 0
    loop: start=0, step=1, limit=4
    $region2: #{tpu_custom_call.1} parent=1 // loop_pre_header
      _
    $region3: #{tpu_custom_call.1} parent=1 // loop_header
      %s21 = sphi 0, %s25
      %p22 = scmp.ge.s32.totalorder %s21, 4
      %s31 = sphi 0, %s33
      %s34 = sphi 0, %s31
      %s35 = sphi 0, %s34
      %s51 = sphi 0, %s35
      %s55 = sphi 0, %s55
      %s57 = sphi 0, %s55
      %s58 = sphi 0, %s57
      %s72 = sphi 0, %s58
      %s76 = sphi 0, %s76
      %s78 = sphi 0, %s76
      %s79 = sphi 0, %s78
      %s93 = sphi 0, %s79
      %s97 = sphi 0, %s97
      %s99 = sphi 0, %s97
      %s100 = sphi 0, %s99
      %s114 = sphi 0, %s100
      %s118 = sphi 0, %s118
      %s120 = sphi 0, %s118
      %s121 = sphi 0, %s120
      %s135 = sphi 0, %s121
      %s139 = sphi 0, %s139
      %s141 = sphi 0, %s139
      %s142 = sphi 0, %s141
      %s156 = sphi 0, %s142
      %s160 = sphi 0, %s160
      %s162 = sphi 0, %s160
      %s163 = sphi 0, %s162
      %s177 = sphi 0, %s163
      %s181 = sphi 0, %s181
      %s183 = sphi 0, %s181
      %s184 = sphi 0, %s183
      %s198 = sphi 0, %s184
      %s202 = sphi 0, %s202
      %s204 = sphi 0, %s202
      %s205 = sphi 0, %s204
      %s219 = sphi 0, %s205
      %s223 = sphi 0, %s223
      %s225 = sphi 0, %s223
      %s226 = sphi 0, %s225
      %s240 = sphi 0, %s226
      %s244 = sphi 0, %s244
      %s246 = sphi 0, %s244
      %s247 = sphi 0, %s246
      %s261 = sphi 0, %s247
      %s265 = sphi 0, %s265
      %s267 = sphi 0, %s265
      %s268 = sphi 0, %s267
      %s282 = sphi 0, %s268
      %s288 = sphi 0, %s290
      %s291 = sphi 0, %s288
      %s292 = sphi 0, %s291
      %s308 = sphi 0, %s292
    $region4: #{tpu_custom_call.1} parent=1 // loop_header_branch
      %24 = sbr.rel (%p22) target = $region8
    $region5: #{tpu_custom_call.1} parent=1 // loop_body
      %s26 = ssub.s32 %s21, 1
      %s27 = ssub.s32 %s21, 2
      %s28 = sadd.s32 %s21, 1
      %s29 = ssub.s32 %s21, %s28
      %p30 = scmp.eq.s32.totalorder %s29, 0
      %s32 = sadd.s32 %s31, 1
      %s33 = scalar_select %p30, %s31, %s32
      %p36 = pneg %p30
      %p37 = scmp.eq.s32.totalorder %s21, 1
      %p38 = por %p36, %p37
      %p39 = scmp.ne.s32.totalorder %s31, %s34
      %p40 = scmp.eq.s32.totalorder %s21, 0
      %p41 = por %p39, %p40
      %p42 = scmp.ne.s32.totalorder %s31, %s34
      %p43 = scmp.eq.s32.totalorder %s26, 1
      %p44 = por %p42, %p43
      %p45 = scmp.ne.s32.totalorder %s34, %s35
      %p46 = scmp.eq.s32.totalorder %s26, 0
      %p47 = por %p45, %p46
      %p48 = scmp.ne.s32.totalorder %s34, %s35
      %p49 = scmp.eq.s32.totalorder %s27, 1
      %p50 = por %p48, %p49
      %p52 = scmp.ne.s32.totalorder %s35, %s51
      %p53 = scmp.eq.s32.totalorder %s27, 0
      %p54 = por %p52, %p53
      %s56 = sadd.s32 %s55, 1
      %p59 = scmp.eq.s32.totalorder %s21, 1
      %p60 = scmp.ne.s32.totalorder %s55, %s57
      %p61 = scmp.eq.s32.totalorder %s21, 0
      %p62 = por %p60, %p61
      %p63 = scmp.ne.s32.totalorder %s55, %s57
      %p64 = scmp.eq.s32.totalorder %s26, 1
      %p65 = por %p63, %p64
      %p66 = scmp.ne.s32.totalorder %s57, %s58
      %p67 = scmp.eq.s32.totalorder %s26, 0
      %p68 = por %p66, %p67
      %p69 = scmp.ne.s32.totalorder %s57, %s58
      %p70 = scmp.eq.s32.totalorder %s27, 1
      %p71 = por %p69, %p70
      %p73 = scmp.ne.s32.totalorder %s58, %s72
      %p74 = scmp.eq.s32.totalorder %s27, 0
      %p75 = por %p73, %p74
      %s77 = sadd.s32 %s76, 1
      %p80 = scmp.eq.s32.totalorder %s21, 1
      %p81 = scmp.ne.s32.totalorder %s76, %s78
      %p82 = scmp.eq.s32.totalorder %s21, 0
      %p83 = por %p81, %p82
      %p84 = scmp.ne.s32.totalorder %s76, %s78
      %p85 = scmp.eq.s32.totalorder %s26, 1
      %p86 = por %p84, %p85
      %p87 = scmp.ne.s32.totalorder %s78, %s79
      %p88 = scmp.eq.s32.totalorder %s26, 0
      %p89 = por %p87, %p88
      %p90 = scmp.ne.s32.totalorder %s78, %s79
      %p91 = scmp.eq.s32.totalorder %s27, 1
      %p92 = por %p90, %p91
      %p94 = scmp.ne.s32.totalorder %s79, %s93
      %p95 = scmp.eq.s32.totalorder %s27, 0
      %p96 = por %p94, %p95
      %s98 = sadd.s32 %s97, 1
      %p101 = scmp.eq.s32.totalorder %s21, 1
      %p102 = scmp.ne.s32.totalorder %s97, %s99
      %p103 = scmp.eq.s32.totalorder %s21, 0
      %p104 = por %p102, %p103
      %p105 = scmp.ne.s32.totalorder %s97, %s99
      %p106 = scmp.eq.s32.totalorder %s26, 1
      %p107 = por %p105, %p106
      %p108 = scmp.ne.s32.totalorder %s99, %s100
      %p109 = scmp.eq.s32.totalorder %s26, 0
      %p110 = por %p108, %p109
      %p111 = scmp.ne.s32.totalorder %s99, %s100
      %p112 = scmp.eq.s32.totalorder %s27, 1
      %p113 = por %p111, %p112
      %p115 = scmp.ne.s32.totalorder %s100, %s114
      %p116 = scmp.eq.s32.totalorder %s27, 0
      %p117 = por %p115, %p116
      %s119 = sadd.s32 %s118, 1
      %p122 = scmp.eq.s32.totalorder %s21, 1
      %p123 = scmp.ne.s32.totalorder %s118, %s120
      %p124 = scmp.eq.s32.totalorder %s21, 0
      %p125 = por %p123, %p124
      %p126 = scmp.ne.s32.totalorder %s118, %s120
      %p127 = scmp.eq.s32.totalorder %s26, 1
      %p128 = por %p126, %p127
      %p129 = scmp.ne.s32.totalorder %s120, %s121
      %p130 = scmp.eq.s32.totalorder %s26, 0
      %p131 = por %p129, %p130
      %p132 = scmp.ne.s32.totalorder %s120, %s121
      %p133 = scmp.eq.s32.totalorder %s27, 1
      %p134 = por %p132, %p133
      %p136 = scmp.ne.s32.totalorder %s121, %s135
      %p137 = scmp.eq.s32.totalorder %s27, 0
      %p138 = por %p136, %p137
      %s140 = sadd.s32 %s139, 1
      %p143 = scmp.eq.s32.totalorder %s21, 1
      %p144 = scmp.ne.s32.totalorder %s139, %s141
      %p145 = scmp.eq.s32.totalorder %s21, 0
      %p146 = por %p144, %p145
      %p147 = scmp.ne.s32.totalorder %s139, %s141
      %p148 = scmp.eq.s32.totalorder %s26, 1
      %p149 = por %p147, %p148
      %p150 = scmp.ne.s32.totalorder %s141, %s142
      %p151 = scmp.eq.s32.totalorder %s26, 0
      %p152 = por %p150, %p151
      %p153 = scmp.ne.s32.totalorder %s141, %s142
      %p154 = scmp.eq.s32.totalorder %s27, 1
      %p155 = por %p153, %p154
      %p157 = scmp.ne.s32.totalorder %s142, %s156
      %p158 = scmp.eq.s32.totalorder %s27, 0
      %p159 = por %p157, %p158
      %s161 = sadd.s32 %s160, 1
      %p164 = scmp.eq.s32.totalorder %s21, 1
      %p165 = scmp.ne.s32.totalorder %s160, %s162
      %p166 = scmp.eq.s32.totalorder %s21, 0
      %p167 = por %p165, %p166
      %p168 = scmp.ne.s32.totalorder %s160, %s162
      %p169 = scmp.eq.s32.totalorder %s26, 1
      %p170 = por %p168, %p169
      %p171 = scmp.ne.s32.totalorder %s162, %s163
      %p172 = scmp.eq.s32.totalorder %s26, 0
      %p173 = por %p171, %p172
      %p174 = scmp.ne.s32.totalorder %s162, %s163
      %p175 = scmp.eq.s32.totalorder %s27, 1
      %p176 = por %p174, %p175
      %p178 = scmp.ne.s32.totalorder %s163, %s177
      %p179 = scmp.eq.s32.totalorder %s27, 0
      %p180 = por %p178, %p179
      %s182 = sadd.s32 %s181, 1
      %p185 = scmp.eq.s32.totalorder %s21, 1
      %p186 = scmp.ne.s32.totalorder %s181, %s183
      %p187 = scmp.eq.s32.totalorder %s21, 0
      %p188 = por %p186, %p187
      %p189 = scmp.ne.s32.totalorder %s181, %s183
      %p190 = scmp.eq.s32.totalorder %s26, 1
      %p191 = por %p189, %p190
      %p192 = scmp.ne.s32.totalorder %s183, %s184
      %p193 = scmp.eq.s32.totalorder %s26, 0
      %p194 = por %p192, %p193
      %p195 = scmp.ne.s32.totalorder %s183, %s184
      %p196 = scmp.eq.s32.totalorder %s27, 1
      %p197 = por %p195, %p196
      %p199 = scmp.ne.s32.totalorder %s184, %s198
      %p200 = scmp.eq.s32.totalorder %s27, 0
      %p201 = por %p199, %p200
      %s203 = sadd.s32 %s202, 1
      %p206 = scmp.eq.s32.totalorder %s21, 1
      %p207 = scmp.ne.s32.totalorder %s202, %s204
      %p208 = scmp.eq.s32.totalorder %s21, 0
      %p209 = por %p207, %p208
      %p210 = scmp.ne.s32.totalorder %s202, %s204
      %p211 = scmp.eq.s32.totalorder %s26, 1
      %p212 = por %p210, %p211
      %p213 = scmp.ne.s32.totalorder %s204, %s205
      %p214 = scmp.eq.s32.totalorder %s26, 0
      %p215 = por %p213, %p214
      %p216 = scmp.ne.s32.totalorder %s204, %s205
      %p217 = scmp.eq.s32.totalorder %s27, 1
      %p218 = por %p216, %p217
      %p220 = scmp.ne.s32.totalorder %s205, %s219
      %p221 = scmp.eq.s32.totalorder %s27, 0
      %p222 = por %p220, %p221
      %s224 = sadd.s32 %s223, 1
      %p227 = scmp.eq.s32.totalorder %s21, 1
      %p228 = scmp.ne.s32.totalorder %s223, %s225
      %p229 = scmp.eq.s32.totalorder %s21, 0
      %p230 = por %p228, %p229
      %p231 = scmp.ne.s32.totalorder %s223, %s225
      %p232 = scmp.eq.s32.totalorder %s26, 1
      %p233 = por %p231, %p232
      %p234 = scmp.ne.s32.totalorder %s225, %s226
      %p235 = scmp.eq.s32.totalorder %s26, 0
      %p236 = por %p234, %p235
      %p237 = scmp.ne.s32.totalorder %s225, %s226
      %p238 = scmp.eq.s32.totalorder %s27, 1
      %p239 = por %p237, %p238
      %p241 = scmp.ne.s32.totalorder %s226, %s240
      %p242 = scmp.eq.s32.totalorder %s27, 0
      %p243 = por %p241, %p242
      %s245 = sadd.s32 %s244, 1
      %p248 = scmp.eq.s32.totalorder %s21, 1
      %p249 = scmp.ne.s32.totalorder %s244, %s246
      %p250 = scmp.eq.s32.totalorder %s21, 0
      %p251 = por %p249, %p250
      %p252 = scmp.ne.s32.totalorder %s244, %s246
      %p253 = scmp.eq.s32.totalorder %s26, 1
      %p254 = por %p252, %p253
      %p255 = scmp.ne.s32.totalorder %s246, %s247
      %p256 = scmp.eq.s32.totalorder %s26, 0
      %p257 = por %p255, %p256
      %p258 = scmp.ne.s32.totalorder %s246, %s247
      %p259 = scmp.eq.s32.totalorder %s27, 1
      %p260 = por %p258, %p259
      %p262 = scmp.ne.s32.totalorder %s247, %s261
      %p263 = scmp.eq.s32.totalorder %s27, 0
      %p264 = por %p262, %p263
      %s266 = sadd.s32 %s265, 1
      %p269 = scmp.eq.s32.totalorder %s21, 1
      %p270 = scmp.ne.s32.totalorder %s265, %s267
      %p271 = scmp.eq.s32.totalorder %s21, 0
      %p272 = por %p270, %p271
      %p273 = scmp.ne.s32.totalorder %s265, %s267
      %p274 = scmp.eq.s32.totalorder %s26, 1
      %p275 = por %p273, %p274
      %p276 = scmp.ne.s32.totalorder %s267, %s268
      %p277 = scmp.eq.s32.totalorder %s26, 0
      %p278 = por %p276, %p277
      %p279 = scmp.ne.s32.totalorder %s267, %s268
      %p280 = scmp.eq.s32.totalorder %s27, 1
      %p281 = por %p279, %p280
      %p283 = scmp.ne.s32.totalorder %s268, %s282
      %p284 = scmp.eq.s32.totalorder %s27, 0
      %p285 = por %p283, %p284
      %s286 = ssub.s32 %s21, %s28
      %p287 = scmp.eq.s32.totalorder %s286, 0
      %s289 = sadd.s32 %s288, 1
      %s290 = scalar_select %p287, %s288, %s289
      %p293 = pneg %p287
      %p294 = scmp.eq.s32.totalorder %s21, 1
      %p295 = por %p293, %p294
      %p296 = scmp.ne.s32.totalorder %s288, %s291
      %p297 = scmp.eq.s32.totalorder %s21, 0
      %p298 = por %p296, %p297
      %p299 = scmp.ne.s32.totalorder %s288, %s291
      %p300 = scmp.eq.s32.totalorder %s26, 1
      %p301 = por %p299, %p300
      %p302 = scmp.ne.s32.totalorder %s291, %s292
      %p303 = scmp.eq.s32.totalorder %s26, 0
      %p304 = por %p302, %p303
      %p305 = scmp.ne.s32.totalorder %s291, %s292
      %p306 = scmp.eq.s32.totalorder %s27, 1
      %p307 = por %p305, %p306
      %p309 = scmp.ne.s32.totalorder %s292, %s308
      %p310 = scmp.eq.s32.totalorder %s27, 0
      %p311 = por %p309, %p310
      %p312 = scmp.le.s32.totalorder 1, %s21
      %p313 = scmp.lt.s32.totalorder %s21, 3
      %p314 = pnand %p312, %p313
      %p315 = pneg %p314
      // Predicated region
      $region9: #{tpu_custom_call.1} parent=5 // pred_check
        _
      $region10: #{tpu_custom_call.1} parent=5 // pred_check_branch
        %317 = sbr.rel (%p314) target = $region12
      $region11: #{tpu_custom_call.1} parent=5 // pred_region
        %s318 = ssub.s32 %s21, 1
        // Predicated region
        $region13: #{tpu_custom_call.1} parent=11 // pred_check
          %p319 = pneg %p68
        $region14: #{tpu_custom_call.1} parent=11 // pred_check_branch
          %321 = sbr.rel (%p319) target = $region16
        $region15: #{tpu_custom_call.1} parent=11 // pred_region
          _
        $region16: #{tpu_custom_call.1} parent=11 // pred_fallthru
          _
        // Predicated region
        $region17: #{tpu_custom_call.1} parent=11 // pred_check
          %p322 = pneg %p89
        $region18: #{tpu_custom_call.1} parent=11 // pred_check_branch
          %324 = sbr.rel (%p322) target = $region20
        $region19: #{tpu_custom_call.1} parent=11 // pred_region
          _
        $region20: #{tpu_custom_call.1} parent=11 // pred_fallthru
          _
        // Predicated region
        $region21: #{tpu_custom_call.1} parent=11 // pred_check
          %p325 = pneg %p110
        $region22: #{tpu_custom_call.1} parent=11 // pred_check_branch
          %327 = sbr.rel (%p325) target = $region24
        $region23: #{tpu_custom_call.1} parent=11 // pred_region
          _
        $region24: #{tpu_custom_call.1} parent=11 // pred_fallthru
          _
        // Predicated region
        $region25: #{tpu_custom_call.1} parent=11 // pred_check
          %p328 = pneg %p131
        $region26: #{tpu_custom_call.1} parent=11 // pred_check_branch
          %330 = sbr.rel (%p328) target = $region28
        $region27: #{tpu_custom_call.1} parent=11 // pred_region
          _
        $region28: #{tpu_custom_call.1} parent=11 // pred_fallthru
          _
        // Predicated region
        $region29: #{tpu_custom_call.1} parent=11 // pred_check
          %p331 = pneg %p152
        $region30: #{tpu_custom_call.1} parent=11 // pred_check_branch
          %333 = sbr.rel (%p331) target = $region32
        $region31: #{tpu_custom_call.1} parent=11 // pred_region
          _
        $region32: #{tpu_custom_call.1} parent=11 // pred_fallthru
          _
        // Predicated region
        $region33: #{tpu_custom_call.1} parent=11 // pred_check
          %p334 = pneg %p173
        $region34: #{tpu_custom_call.1} parent=11 // pred_check_branch
          %336 = sbr.rel (%p334) target = $region36
        $region35: #{tpu_custom_call.1} parent=11 // pred_region
          _
        $region36: #{tpu_custom_call.1} parent=11 // pred_fallthru
          _
        // Predicated region
        $region37: #{tpu_custom_call.1} parent=11 // pred_check
          %p337 = pneg %p194
        $region38: #{tpu_custom_call.1} parent=11 // pred_check_branch
          %339 = sbr.rel (%p337) target = $region40
        $region39: #{tpu_custom_call.1} parent=11 // pred_region
          _
        $region40: #{tpu_custom_call.1} parent=11 // pred_fallthru
          _
        // Predicated region
        $region41: #{tpu_custom_call.1} parent=11 // pred_check
          %p340 = pneg %p215
        $region42: #{tpu_custom_call.1} parent=11 // pred_check_branch
          %342 = sbr.rel (%p340) target = $region44
        $region43: #{tpu_custom_call.1} parent=11 // pred_region
          _
        $region44: #{tpu_custom_call.1} parent=11 // pred_fallthru
          _
        // Predicated region
        $region45: #{tpu_custom_call.1} parent=11 // pred_check
          %p343 = pneg %p236
        $region46: #{tpu_custom_call.1} parent=11 // pred_check_branch
          %345 = sbr.rel (%p343) target = $region48
        $region47: #{tpu_custom_call.1} parent=11 // pred_region
          _
        $region48: #{tpu_custom_call.1} parent=11 // pred_fallthru
          _
        // Predicated region
        $region49: #{tpu_custom_call.1} parent=11 // pred_check
          %p346 = pneg %p257
        $region50: #{tpu_custom_call.1} parent=11 // pred_check_branch
          %348 = sbr.rel (%p346) target = $region52
        $region51: #{tpu_custom_call.1} parent=11 // pred_region
          _
        $region52: #{tpu_custom_call.1} parent=11 // pred_fallthru
          _
        // Predicated region
        $region53: #{tpu_custom_call.1} parent=11 // pred_check
          %p349 = pneg %p278
        $region54: #{tpu_custom_call.1} parent=11 // pred_check_branch
          %351 = sbr.rel (%p349) target = $region56
        $region55: #{tpu_custom_call.1} parent=11 // pred_region
          _
        $region56: #{tpu_custom_call.1} parent=11 // pred_fallthru
          _
      $region12: #{tpu_custom_call.1} parent=5 // pred_fallthru
        _
      %p352 = scmp.lt.s32.totalorder %s21, 2
      // Predicated region
      $region57: #{tpu_custom_call.1} parent=5 // pred_check
        %p353 = pneg %p352
      $region58: #{tpu_custom_call.1} parent=5 // pred_check_branch
        %355 = sbr.rel (%p353) target = $region60
      $region59: #{tpu_custom_call.1} parent=5 // pred_region
        // Predicated region
        $region61: #{tpu_custom_call.1} parent=59 // pred_check
          %p356 = pneg %p41
        $region62: #{tpu_custom_call.1} parent=59 // pred_check_branch
          %358 = sbr.rel (%p356) target = $region64
        $region63: #{tpu_custom_call.1} parent=59 // pred_region
          %s359 = smul.u32 2, %s21
          %p360 = scmp.lt.s32.totalorder %s359, 3
          %s361 = scalar_select %p360, %s359, 3
          %s362 = smul.addr %s361, 8
          %s363 = scalar_lea.vmem %s0, %s362
          %s364 = smul.u32 2, %s21
        $region64: #{tpu_custom_call.1} parent=59 // pred_fallthru
          _
      $region60: #{tpu_custom_call.1} parent=5 // pred_fallthru
        _
      %p365 = scmp.le.s32.totalorder 1, %s21
      %p366 = scmp.lt.s32.totalorder %s21, 3
      %p367 = pnand %p365, %p366
      %p368 = pneg %p367
      // Predicated region
      $region65: #{tpu_custom_call.1} parent=5 // pred_check
        _
      $region66: #{tpu_custom_call.1} parent=5 // pred_check_branch
        %370 = sbr.rel (%p367) target = $region68
      $region67: #{tpu_custom_call.1} parent=5 // pred_region
        %s371 = ssub.s32 %s21, 1
        %s372 = smul.u32 2, %s26
        %p373 = scmp.lt.s32.totalorder %s372, 3
        %s374 = scalar_select %p373, %s372, 3
        %s375 = smul.addr %s374, 8
        %s376 = scalar_lea.vmem %s0, %s375
        %p377 = pneg %p47
        %p378 = pneg %p44
        %p379 = pneg %p68
        %p380 = pneg %p65
        %p381 = pneg %p89
        %p382 = pneg %p86
        %p383 = pneg %p110
        %p384 = pneg %p107
        %p385 = pneg %p131
        %p386 = pneg %p128
        %p387 = pneg %p152
        %p388 = pneg %p149
        %p389 = pneg %p173
        %p390 = pneg %p170
        %p391 = pneg %p194
        %p392 = pneg %p191
        %p393 = pneg %p215
        %p394 = pneg %p212
        %p395 = pneg %p236
        %p396 = pneg %p233
        %p397 = pneg %p257
        %p398 = pneg %p254
        %p399 = pneg %p278
        %p400 = pneg %p275
        %p401 = pneg %p304
        %p402 = pneg %p301
        %s403 = sand.u32 %s291, 1
        %s404 = scalar_lea.sflag [#allocation5], %s403
        %s405 = sand.u32 %s291, 1
        %s406 = smul.addr %s405, 16
        %s407 = scalar_lea.vmem [#allocation4], %s406
        %s408 = smul.u32 2, %s26
        %p409 = scmp.lt.s32.totalorder %s408, 3
        %s410 = scalar_select %p409, %s408, 3
        %s411 = smul.addr %s410, 8
        %s412 = scalar_lea.vmem %s0, %s411
        %s413 = smul.u32 2, %s26
        %s414 = smul.u32 2, %s26
        %v415 = vld [vmem:[%s412] sm:$0xff]
        %v416 = vld [vmem:[%s412 + $0x8] sm:$0xff]
        %v417 = vld [vmem:[%s1] sm:$0x1]
        %v418 = vld [vmem:[%s2] sm:$0x1]
        %vm419 = vcmask 261120
        %v420 = vsel %vm419, %v415, 0.0
        %421 = vadd.xlane.f32.xlu0 %v420
        %v422 = vpop.xlane.xlu0 %421
        %v423 = vsel %vm419, %v416, 0.0
        %424 = vadd.xlane.f32.xlu0 %v423
        %v425 = vpop.xlane.xlu0 %424
        %v426 = vrcp.pop 32.0
        %v427 = vmul.f32 %v422, %v426
        %v428 = vmul.f32 %v425, %v426
        %v429 = vsub.f32 %v415, %v427
        %v430 = vsub.f32 %v416, %v428
        %v431 = vmul.f32 %v429, %v429
        %v432 = vmul.f32 %v430, %v430
        %v433 = vsel %vm419, %v431, 0.0
        %434 = vadd.xlane.f32.xlu0 %v433
        %v435 = vpop.xlane.xlu0 %434
        %v436 = vsel %vm419, %v432, 0.0
        %437 = vadd.xlane.f32.xlu0 %v436
        %v438 = vpop.xlane.xlu0 %437
        %v439 = vmul.f32 %v435, %v426
        %v440 = vmul.f32 %v438, %v426
        %v441 = vadd.f32 %v439, 1e-05
        %v442 = vadd.f32 %v440, 1e-05
        %v443 = vrsqrt.pop %v441
        %v444 = vrsqrt.pop %v442
        %v445 = vmul.f32 %v429, %v443
        %v446 = vmul.f32 %v430, %v444
        %v448 = vlaneseq
        %v449 = vshrl.u32 %v448, 7
        %v450 = vsub.s32 0, %v449
        %v451 = vrot.slane %v417, %v450
        %v453 = vmul.f32 %v445, %v451
        %v454 = vmul.f32 %v446, %v451
        %v456 = vlaneseq
        %v457 = vshrl.u32 %v456, 7
        %v458 = vsub.s32 0, %v457
        %v459 = vrot.slane %v418, %v458
        %v461 = vadd.f32 %v453, %v459
        %v462 = vadd.f32 %v454, %v459
        %v463 = vld [vmem:[%s3] sm:$0xff]
        %v464 = vld [vmem:[%s3 + $0x8] sm:$0xff]
        %v465 = vld [vmem:[%s3 + $0x10] sm:$0xff]
        %v466 = vld [vmem:[%s3 + $0x18] sm:$0xff]
        %v468 = vsel %vm419, %v461, 0
        %v471 = vsel %vm419, %v462, 0
        %473 = vmatprep.subr.mxu0 0.0
        %474 = vmatpush1.msra.mxu0 %v463
        %475 = vmatprep.subr.mxu0 0.0
        %476 = vmatpush1.msra.mxu0 %v464
        %477 = vmatprep.subr.mxu0 0.0
        %478 = vmatpush1.msra.mxu0 %v465
        %479 = vmatprep.subr.mxu0 0.0
        %480 = vmatpush1.msra.mxu0 %v466
        %481 = vmatprep.subr.mxu0 0.0
        %482 = vmatpush1.msra.mxu0 0.0
        %483 = vmatprep.subr.mxu0 0.0
        %484 = vmatpush1.msra.mxu0 0.0
        %485 = vmatprep.subr.mxu0 0.0
        %486 = vmatpush1.msra.mxu0 0.0
        %487 = vmatprep.subr.mxu0 0.0
        %488 = vmatpush1.msra.mxu0 0.0
        %489 = vmatprep.subr.mxu0 0.0
        %490 = vmatpush1.msra.mxu0 0.0
        %491 = vmatprep.subr.mxu0 0.0
        %492 = vmatpush1.msra.mxu0 0.0
        %493 = vmatprep.subr.mxu0 0.0
        %494 = vmatpush1.msra.mxu0 0.0
        %495 = vmatprep.subr.mxu0 0.0
        %496 = vmatpush1.msra.mxu0 0.0
        %497 = vmatprep.subr.mxu0 0.0
        %498 = vmatpush1.msra.mxu0 0.0
        %499 = vmatprep.subr.mxu0 0.0
        %500 = vmatpush1.msra.mxu0 0.0
        %501 = vmatprep.subr.mxu0 0.0
        %502 = vmatpush1.msra.mxu0 0.0
        %503 = vmatprep.subr.mxu0 0.0
        %504 = vmatpush1.msra.mxu0 0.0
        %505 = vmatprep.subr.mxu0 0.0
        %506 = vmatpush1.msra.mxu0 0.0
        %507 = vmatprep.subr.mxu0 0.0
        %508 = vmatpush1.msra.mxu0 0.0
        %509 = vmatprep.subr.mxu0 0.0
        %510 = vmatpush1.msra.mxu0 0.0
        %511 = vmatprep.subr.mxu0 0.0
        %512 = vmatpush1.msra.mxu0 0.0
        %513 = vmatprep.subr.mxu0 0.0
        %514 = vmatpush1.msra.mxu0 0.0
        %515 = vmatprep.subr.mxu0 0.0
        %516 = vmatpush1.msra.mxu0 0.0
        %517 = vmatprep.subr.mxu0 0.0
        %518 = vmatpush1.msra.mxu0 0.0
        %519 = vmatprep.subr.mxu0 0.0
        %520 = vmatpush1.msra.mxu0 0.0
        %521 = vmatprep.subr.mxu0 0.0
        %522 = vmatpush1.msra.mxu0 0.0
        %523 = vmatprep.subr.mxu0 0.0
        %524 = vmatpush1.msra.mxu0 0.0
        %525 = vmatprep.subr.mxu0 0.0
        %526 = vmatpush1.msra.mxu0 0.0
        %527 = vmatprep.subr.mxu0 0.0
        %528 = vmatpush1.msra.mxu0 0.0
        %529 = vmatprep.subr.mxu0 0.0
        %530 = vmatpush1.msra.mxu0 0.0
        %531 = vmatprep.subr.mxu0 0.0
        %532 = vmatpush1.msra.mxu0 0.0
        %533 = vmatprep.subr.mxu0 0.0
        %534 = vmatpush1.msra.mxu0 0.0
        %535 = vmatprep.subr.mxu0 0.0
        %536 = vmatpush1.msra.mxu0 0.0
        %537 = vmatprep.mubr.f32.mxu0 0.0
        %538 = vmatmul.mubr.f32.gmra.mrb[0].mxu0 %v468
        %v539 = vpop.f32.mrb[0].mxu0
        %v540 = vadd.f32 0.0, %v539
        %v541 = vpop.f32.mrb[0].mxu0
        %542 = vmatprep.mubr.f32.mxu0 0.0
        %543 = vmatmul.mubr.f32.gmra.mrb[0].mxu0 %v471
        %v544 = vpop.f32.mrb[0].mxu0
        %v545 = vadd.f32 0.0, %v544
        %v546 = vpop.f32.mrb[0].mxu0
        %547 = vdwg.mxu0
        %vm548 = vcmask 785408
        %549 = vst.msk [vmem:[#allocation2] sm:$0xff] %vm548, %v540
        %550 = vst.msk [vmem:[#allocation2 + $0x8] sm:$0xff] %vm548, %v545
        loop: start=0, step=1, limit=2
        $region69: #{tpu_custom_call.1} parent=67 // loop_pre_header
          _
        $region70: #{tpu_custom_call.1} parent=67 // loop_header
          %s552 = sphi 0, %s556
          %p553 = scmp.ge.s32.totalorder %s552, 2
        $region71: #{tpu_custom_call.1} parent=67 // loop_header_branch
          %555 = sbr.rel (%p553) target = $region75
        $region72: #{tpu_custom_call.1} parent=67 // loop_body
          %s557 = smul.u32 %s552, 8
          %s558 = scalar_lea.vmem [#allocation2], %s557
          %v559 = vld [vmem:[%s558] sm:$0xff]
          %561 = vrot.lane.b32.xlu0 %v559, 96
          %v562 = vpop.permute.xlu0 %561
          %vm563 = vcmask 64512
          %v564 = vsel %vm563, %v559, 0
          %v566 = vsel %vm563, %v562, 0
          %568 = vmatprep.subr.mxu0 0.0
          %569 = vmatpush1.xpose.msra.mxu0 %v566
          %570 = vmatprep.subr.mxu0 0.0
          %571 = vmatpush1.xpose.msra.mxu0 0.0
          %572 = vmatprep.subr.mxu0 0.0
          %573 = vmatpush1.xpose.msra.mxu0 0.0
          %574 = vmatprep.subr.mxu0 0.0
          %575 = vmatpush1.xpose.msra.mxu0 0.0
          %576 = vmatprep.subr.mxu0 0.0
          %577 = vmatpush1.xpose.msra.mxu0 0.0
          %578 = vmatprep.subr.mxu0 0.0
          %579 = vmatpush1.xpose.msra.mxu0 0.0
          %580 = vmatprep.subr.mxu0 0.0
          %581 = vmatpush1.xpose.msra.mxu0 0.0
          %582 = vmatprep.subr.mxu0 0.0
          %583 = vmatpush1.xpose.msra.mxu0 0.0
          %584 = vmatprep.subr.mxu0 0.0
          %585 = vmatpush1.xpose.msra.mxu0 0.0
          %586 = vmatprep.subr.mxu0 0.0
          %587 = vmatpush1.xpose.msra.mxu0 0.0
          %588 = vmatprep.subr.mxu0 0.0
          %589 = vmatpush1.xpose.msra.mxu0 0.0
          %590 = vmatprep.subr.mxu0 0.0
          %591 = vmatpush1.xpose.msra.mxu0 0.0
          %592 = vmatprep.subr.mxu0 0.0
          %593 = vmatpush1.xpose.msra.mxu0 0.0
          %594 = vmatprep.subr.mxu0 0.0
          %595 = vmatpush1.xpose.msra.mxu0 0.0
          %596 = vmatprep.subr.mxu0 0.0
          %597 = vmatpush1.xpose.msra.mxu0 0.0
          %598 = vmatprep.subr.mxu0 0.0
          %599 = vmatpush1.xpose.msra.mxu0 0.0
          %600 = vmatprep.subr.mxu0 0.0
          %601 = vmatpush1.xpose.msra.mxu0 0.0
          %602 = vmatprep.subr.mxu0 0.0
          %603 = vmatpush1.xpose.msra.mxu0 0.0
          %604 = vmatprep.subr.mxu0 0.0
          %605 = vmatpush1.xpose.msra.mxu0 0.0
          %606 = vmatprep.subr.mxu0 0.0
          %607 = vmatpush1.xpose.msra.mxu0 0.0
          %608 = vmatprep.subr.mxu0 0.0
          %609 = vmatpush1.xpose.msra.mxu0 0.0
          %610 = vmatprep.subr.mxu0 0.0
          %611 = vmatpush1.xpose.msra.mxu0 0.0
          %612 = vmatprep.subr.mxu0 0.0
          %613 = vmatpush1.xpose.msra.mxu0 0.0
          %614 = vmatprep.subr.mxu0 0.0
          %615 = vmatpush1.xpose.msra.mxu0 0.0
          %616 = vmatprep.subr.mxu0 0.0
          %617 = vmatpush1.xpose.msra.mxu0 0.0
          %618 = vmatprep.subr.mxu0 0.0
          %619 = vmatpush1.xpose.msra.mxu0 0.0
          %620 = vmatprep.subr.mxu0 0.0
          %621 = vmatpush1.xpose.msra.mxu0 0.0
          %622 = vmatprep.subr.mxu0 0.0
          %623 = vmatpush1.xpose.msra.mxu0 0.0
          %624 = vmatprep.subr.mxu0 0.0
          %625 = vmatpush1.xpose.msra.mxu0 0.0
          %626 = vmatprep.subr.mxu0 0.0
          %627 = vmatpush1.xpose.msra.mxu0 0.0
          %628 = vmatprep.subr.mxu0 0.0
          %629 = vmatpush1.xpose.msra.mxu0 0.0
          %630 = vmatprep.subr.mxu0 0.0
          %631 = vmatpush1.xpose.msra.mxu0 0.0
          %632 = vmatprep.mubr.f32.mxu0 0.0
          %633 = vmatmul.mubr.f32.gmra.mrb[0].mxu0 %v564
          %v634 = vpop.f32.mrb[0].mxu0
          %v635 = vadd.f32 0.0, %v634
          %v636 = vpop.f32.mrb[0].mxu0
          %637 = vdwg.mxu0
          %v638 = vsel %vm563, %v635, -inf
          %639 = vmax.xlane.f32.xlu0 %v638
          %v640 = vpop.xlane.xlu0 %639
          %v641 = vsub.f32 %v635, %v640
          %v642 = vmul.f32 %v641, 1.442695
          %v643 = vpow.pop %v642
          %v644 = vsel %vm563, %v643, 0.0
          %645 = vadd.xlane.f32.xlu0 %v644
          %v646 = vpop.xlane.xlu0 %645
          %v647 = vrcp.pop %v646
          %v648 = vmul.f32 %v643, %v647
          %649 = vrot.lane.b32.xlu0 %v559, 64
          %v650 = vpop.permute.xlu0 %649
          %v653 = vsel %vm563, %v648, 0
          %655 = vmatprep.subr.mxu0 0.0
          %656 = vmatpush1.msra.mxu0 %v650
          %657 = vmatprep.subr.mxu0 0.0
          %658 = vmatpush1.msra.mxu0 0.0
          %659 = vmatprep.subr.mxu0 0.0
          %660 = vmatpush1.msra.mxu0 0.0
          %661 = vmatprep.subr.mxu0 0.0
          %662 = vmatpush1.msra.mxu0 0.0
          %663 = vmatprep.subr.mxu0 0.0
          %664 = vmatpush1.msra.mxu0 0.0
          %665 = vmatprep.subr.mxu0 0.0
          %666 = vmatpush1.msra.mxu0 0.0
          %667 = vmatprep.subr.mxu0 0.0
          %668 = vmatpush1.msra.mxu0 0.0
          %669 = vmatprep.subr.mxu0 0.0
          %670 = vmatpush1.msra.mxu0 0.0
          %671 = vmatprep.subr.mxu0 0.0
          %672 = vmatpush1.msra.mxu0 0.0
          %673 = vmatprep.subr.mxu0 0.0
          %674 = vmatpush1.msra.mxu0 0.0
          %675 = vmatprep.subr.mxu0 0.0
          %676 = vmatpush1.msra.mxu0 0.0
          %677 = vmatprep.subr.mxu0 0.0
          %678 = vmatpush1.msra.mxu0 0.0
          %679 = vmatprep.subr.mxu0 0.0
          %680 = vmatpush1.msra.mxu0 0.0
          %681 = vmatprep.subr.mxu0 0.0
          %682 = vmatpush1.msra.mxu0 0.0
          %683 = vmatprep.subr.mxu0 0.0
          %684 = vmatpush1.msra.mxu0 0.0
          %685 = vmatprep.subr.mxu0 0.0
          %686 = vmatpush1.msra.mxu0 0.0
          %687 = vmatprep.subr.mxu0 0.0
          %688 = vmatpush1.msra.mxu0 0.0
          %689 = vmatprep.subr.mxu0 0.0
          %690 = vmatpush1.msra.mxu0 0.0
          %691 = vmatprep.subr.mxu0 0.0
          %692 = vmatpush1.msra.mxu0 0.0
          %693 = vmatprep.subr.mxu0 0.0
          %694 = vmatpush1.msra.mxu0 0.0
          %695 = vmatprep.subr.mxu0 0.0
          %696 = vmatpush1.msra.mxu0 0.0
          %697 = vmatprep.subr.mxu0 0.0
          %698 = vmatpush1.msra.mxu0 0.0
          %699 = vmatprep.subr.mxu0 0.0
          %700 = vmatpush1.msra.mxu0 0.0
          %701 = vmatprep.subr.mxu0 0.0
          %702 = vmatpush1.msra.mxu0 0.0
          %703 = vmatprep.subr.mxu0 0.0
          %704 = vmatpush1.msra.mxu0 0.0
          %705 = vmatprep.subr.mxu0 0.0
          %706 = vmatpush1.msra.mxu0 0.0
          %707 = vmatprep.subr.mxu0 0.0
          %708 = vmatpush1.msra.mxu0 0.0
          %709 = vmatprep.subr.mxu0 0.0
          %710 = vmatpush1.msra.mxu0 0.0
          %711 = vmatprep.subr.mxu0 0.0
          %712 = vmatpush1.msra.mxu0 0.0
          %713 = vmatprep.subr.mxu0 0.0
          %714 = vmatpush1.msra.mxu0 0.0
          %715 = vmatprep.subr.mxu0 0.0
          %716 = vmatpush1.msra.mxu0 0.0
          %717 = vmatprep.subr.mxu0 0.0
          %718 = vmatpush1.msra.mxu0 0.0
          %719 = vmatprep.mubr.f32.mxu0 0.0
          %720 = vmatmul.mubr.f32.gmra.mrb[0].mxu0 %v653
          %v721 = vpop.f32.mrb[0].mxu0
          %v722 = vadd.f32 0.0, %v721
          %v723 = vpop.f32.mrb[0].mxu0
          %724 = vdwg.mxu0
          %s725 = scalar_lea.vmem [#allocation3], %s557
          %726 = vst.msk [vmem:[%s725] sm:$0xff] %vm563, %v722
          %v727 = vld [vmem:[%s558] sm:$0xff]
          %729 = vrot.lane.b32.xlu0 %v727, 120
          %v730 = vpop.permute.xlu0 %729
          %731 = vrot.lane.b32.xlu0 %v727, 88
          %v732 = vpop.permute.xlu0 %731
          %v733 = vsel %vm563, %v730, 0
          %v735 = vsel %vm563, %v732, 0
          %737 = vmatprep.subr.mxu0 0.0
          %738 = vmatpush1.xpose.msra.mxu0 %v735
          %739 = vmatprep.subr.mxu0 0.0
          %740 = vmatpush1.xpose.msra.mxu0 0.0
          %741 = vmatprep.subr.mxu0 0.0
          %742 = vmatpush1.xpose.msra.mxu0 0.0
          %743 = vmatprep.subr.mxu0 0.0
          %744 = vmatpush1.xpose.msra.mxu0 0.0
          %745 = vmatprep.subr.mxu0 0.0
          %746 = vmatpush1.xpose.msra.mxu0 0.0
          %747 = vmatprep.subr.mxu0 0.0
          %748 = vmatpush1.xpose.msra.mxu0 0.0
          %749 = vmatprep.subr.mxu0 0.0
          %750 = vmatpush1.xpose.msra.mxu0 0.0
          %751 = vmatprep.subr.mxu0 0.0
          %752 = vmatpush1.xpose.msra.mxu0 0.0
          %753 = vmatprep.subr.mxu0 0.0
          %754 = vmatpush1.xpose.msra.mxu0 0.0
          %755 = vmatprep.subr.mxu0 0.0
          %756 = vmatpush1.xpose.msra.mxu0 0.0
          %757 = vmatprep.subr.mxu0 0.0
          %758 = vmatpush1.xpose.msra.mxu0 0.0
          %759 = vmatprep.subr.mxu0 0.0
          %760 = vmatpush1.xpose.msra.mxu0 0.0
          %761 = vmatprep.subr.mxu0 0.0
          %762 = vmatpush1.xpose.msra.mxu0 0.0
          %763 = vmatprep.subr.mxu0 0.0
          %764 = vmatpush1.xpose.msra.mxu0 0.0
          %765 = vmatprep.subr.mxu0 0.0
          %766 = vmatpush1.xpose.msra.mxu0 0.0
          %767 = vmatprep.subr.mxu0 0.0
          %768 = vmatpush1.xpose.msra.mxu0 0.0
          %769 = vmatprep.subr.mxu0 0.0
          %770 = vmatpush1.xpose.msra.mxu0 0.0
          %771 = vmatprep.subr.mxu0 0.0
          %772 = vmatpush1.xpose.msra.mxu0 0.0
          %773 = vmatprep.subr.mxu0 0.0
          %774 = vmatpush1.xpose.msra.mxu0 0.0
          %775 = vmatprep.subr.mxu0 0.0
          %776 = vmatpush1.xpose.msra.mxu0 0.0
          %777 = vmatprep.subr.mxu0 0.0
          %778 = vmatpush1.xpose.msra.mxu0 0.0
          %779 = vmatprep.subr.mxu0 0.0
          %780 = vmatpush1.xpose.msra.mxu0 0.0
          %781 = vmatprep.subr.mxu0 0.0
          %782 = vmatpush1.xpose.msra.mxu0 0.0
          %783 = vmatprep.subr.mxu0 0.0
          %784 = vmatpush1.xpose.msra.mxu0 0.0
          %785 = vmatprep.subr.mxu0 0.0
          %786 = vmatpush1.xpose.msra.mxu0 0.0
          %787 = vmatprep.subr.mxu0 0.0
          %788 = vmatpush1.xpose.msra.mxu0 0.0
          %789 = vmatprep.subr.mxu0 0.0
          %790 = vmatpush1.xpose.msra.mxu0 0.0
          %791 = vmatprep.subr.mxu0 0.0
          %792 = vmatpush1.xpose.msra.mxu0 0.0
          %793 = vmatprep.subr.mxu0 0.0
          %794 = vmatpush1.xpose.msra.mxu0 0.0
          %795 = vmatprep.subr.mxu0 0.0
          %796 = vmatpush1.xpose.msra.mxu0 0.0
          %797 = vmatprep.subr.mxu0 0.0
          %798 = vmatpush1.xpose.msra.mxu0 0.0
          %799 = vmatprep.subr.mxu0 0.0
          %800 = vmatpush1.xpose.msra.mxu0 0.0
          %801 = vmatprep.mubr.f32.mxu0 0.0
          %802 = vmatmul.mubr.f32.gmra.mrb[0].mxu0 %v733
          %v803 = vpop.f32.mrb[0].mxu0
          %v804 = vadd.f32 0.0, %v803
          %v805 = vpop.f32.mrb[0].mxu0
          %806 = vdwg.mxu0
          %v807 = vsel %vm563, %v804, -inf
          %808 = vmax.xlane.f32.xlu0 %v807
          %v809 = vpop.xlane.xlu0 %808
          %v810 = vsub.f32 %v804, %v809
          %v811 = vmul.f32 %v810, 1.442695
          %v812 = vpow.pop %v811
          %v813 = vsel %vm563, %v812, 0.0
          %814 = vadd.xlane.f32.xlu0 %v813
          %v815 = vpop.xlane.xlu0 %814
          %v816 = vrcp.pop %v815
          %v817 = vmul.f32 %v812, %v816
          %818 = vrot.lane.b32.xlu0 %v727, 56
          %v819 = vpop.permute.xlu0 %818
          %v822 = vsel %vm563, %v817, 0
          %824 = vmatprep.subr.mxu0 0.0
          %825 = vmatpush1.msra.mxu0 %v819
          %826 = vmatprep.subr.mxu0 0.0
          %827 = vmatpush1.msra.mxu0 0.0
          %828 = vmatprep.subr.mxu0 0.0
          %829 = vmatpush1.msra.mxu0 0.0
          %830 = vmatprep.subr.mxu0 0.0
          %831 = vmatpush1.msra.mxu0 0.0
          %832 = vmatprep.subr.mxu0 0.0
          %833 = vmatpush1.msra.mxu0 0.0
          %834 = vmatprep.subr.mxu0 0.0
          %835 = vmatpush1.msra.mxu0 0.0
          %836 = vmatprep.subr.mxu0 0.0
          %837 = vmatpush1.msra.mxu0 0.0
          %838 = vmatprep.subr.mxu0 0.0
          %839 = vmatpush1.msra.mxu0 0.0
          %840 = vmatprep.subr.mxu0 0.0
          %841 = vmatpush1.msra.mxu0 0.0
          %842 = vmatprep.subr.mxu0 0.0
          %843 = vmatpush1.msra.mxu0 0.0
          %844 = vmatprep.subr.mxu0 0.0
          %845 = vmatpush1.msra.mxu0 0.0
          %846 = vmatprep.subr.mxu0 0.0
          %847 = vmatpush1.msra.mxu0 0.0
          %848 = vmatprep.subr.mxu0 0.0
          %849 = vmatpush1.msra.mxu0 0.0
          %850 = vmatprep.subr.mxu0 0.0
          %851 = vmatpush1.msra.mxu0 0.0
          %852 = vmatprep.subr.mxu0 0.0
          %853 = vmatpush1.msra.mxu0 0.0
          %854 = vmatprep.subr.mxu0 0.0
          %855 = vmatpush1.msra.mxu0 0.0
          %856 = vmatprep.subr.mxu0 0.0
          %857 = vmatpush1.msra.mxu0 0.0
          %858 = vmatprep.subr.mxu0 0.0
          %859 = vmatpush1.msra.mxu0 0.0
          %860 = vmatprep.subr.mxu0 0.0
          %861 = vmatpush1.msra.mxu0 0.0
          %862 = vmatprep.subr.mxu0 0.0
          %863 = vmatpush1.msra.mxu0 0.0
          %864 = vmatprep.subr.mxu0 0.0
          %865 = vmatpush1.msra.mxu0 0.0
          %866 = vmatprep.subr.mxu0 0.0
          %867 = vmatpush1.msra.mxu0 0.0
          %868 = vmatprep.subr.mxu0 0.0
          %869 = vmatpush1.msra.mxu0 0.0
          %870 = vmatprep.subr.mxu0 0.0
          %871 = vmatpush1.msra.mxu0 0.0
          %872 = vmatprep.subr.mxu0 0.0
          %873 = vmatpush1.msra.mxu0 0.0
          %874 = vmatprep.subr.mxu0 0.0
          %875 = vmatpush1.msra.mxu0 0.0
          %876 = vmatprep.subr.mxu0 0.0
          %877 = vmatpush1.msra.mxu0 0.0
          %878 = vmatprep.subr.mxu0 0.0
          %879 = vmatpush1.msra.mxu0 0.0
          %880 = vmatprep.subr.mxu0 0.0
          %881 = vmatpush1.msra.mxu0 0.0
          %882 = vmatprep.subr.mxu0 0.0
          %883 = vmatpush1.msra.mxu0 0.0
          %884 = vmatprep.subr.mxu0 0.0
          %885 = vmatpush1.msra.mxu0 0.0
          %886 = vmatprep.subr.mxu0 0.0
          %887 = vmatpush1.msra.mxu0 0.0
          %888 = vmatprep.mubr.f32.mxu0 0.0
          %889 = vmatmul.mubr.f32.gmra.mrb[0].mxu0 %v822
          %v890 = vpop.f32.mrb[0].mxu0
          %v891 = vadd.f32 0.0, %v890
          %v892 = vpop.f32.mrb[0].mxu0
          %893 = vdwg.mxu0
          %895 = vrot.lane.b32.xlu0 %v891, 8
          %v896 = vpop.permute.xlu0 %895
          %vm898 = vcmask 130112
          %899 = vst.msk [vmem:[%s725] sm:$0xff] %vm898, %v896
          %v900 = vld [vmem:[%s558] sm:$0xff]
          %902 = vrot.lane.b32.xlu0 %v900, 112
          %v903 = vpop.permute.xlu0 %902
          %904 = vrot.lane.b32.xlu0 %v900, 80
          %v905 = vpop.permute.xlu0 %904
          %v906 = vsel %vm563, %v903, 0
          %v908 = vsel %vm563, %v905, 0
          %910 = vmatprep.subr.mxu0 0.0
          %911 = vmatpush1.xpose.msra.mxu0 %v908
          %912 = vmatprep.subr.mxu0 0.0
          %913 = vmatpush1.xpose.msra.mxu0 0.0
          %914 = vmatprep.subr.mxu0 0.0
          %915 = vmatpush1.xpose.msra.mxu0 0.0
          %916 = vmatprep.subr.mxu0 0.0
          %917 = vmatpush1.xpose.msra.mxu0 0.0
          %918 = vmatprep.subr.mxu0 0.0
          %919 = vmatpush1.xpose.msra.mxu0 0.0
          %920 = vmatprep.subr.mxu0 0.0
          %921 = vmatpush1.xpose.msra.mxu0 0.0
          %922 = vmatprep.subr.mxu0 0.0
          %923 = vmatpush1.xpose.msra.mxu0 0.0
          %924 = vmatprep.subr.mxu0 0.0
          %925 = vmatpush1.xpose.msra.mxu0 0.0
          %926 = vmatprep.subr.mxu0 0.0
          %927 = vmatpush1.xpose.msra.mxu0 0.0
          %928 = vmatprep.subr.mxu0 0.0
          %929 = vmatpush1.xpose.msra.mxu0 0.0
          %930 = vmatprep.subr.mxu0 0.0
          %931 = vmatpush1.xpose.msra.mxu0 0.0
          %932 = vmatprep.subr.mxu0 0.0
          %933 = vmatpush1.xpose.msra.mxu0 0.0
          %934 = vmatprep.subr.mxu0 0.0
          %935 = vmatpush1.xpose.msra.mxu0 0.0
          %936 = vmatprep.subr.mxu0 0.0
          %937 = vmatpush1.xpose.msra.mxu0 0.0
          %938 = vmatprep.subr.mxu0 0.0
          %939 = vmatpush1.xpose.msra.mxu0 0.0
          %940 = vmatprep.subr.mxu0 0.0
          %941 = vmatpush1.xpose.msra.mxu0 0.0
          %942 = vmatprep.subr.mxu0 0.0
          %943 = vmatpush1.xpose.msra.mxu0 0.0
          %944 = vmatprep.subr.mxu0 0.0
          %945 = vmatpush1.xpose.msra.mxu0 0.0
          %946 = vmatprep.subr.mxu0 0.0
          %947 = vmatpush1.xpose.msra.mxu0 0.0
          %948 = vmatprep.subr.mxu0 0.0
          %949 = vmatpush1.xpose.msra.mxu0 0.0
          %950 = vmatprep.subr.mxu0 0.0
          %951 = vmatpush1.xpose.msra.mxu0 0.0
          %952 = vmatprep.subr.mxu0 0.0
          %953 = vmatpush1.xpose.msra.mxu0 0.0
          %954 = vmatprep.subr.mxu0 0.0
          %955 = vmatpush1.xpose.msra.mxu0 0.0
          %956 = vmatprep.subr.mxu0 0.0
          %957 = vmatpush1.xpose.msra.mxu0 0.0
          %958 = vmatprep.subr.mxu0 0.0
          %959 = vmatpush1.xpose.msra.mxu0 0.0
          %960 = vmatprep.subr.mxu0 0.0
          %961 = vmatpush1.xpose.msra.mxu0 0.0
          %962 = vmatprep.subr.mxu0 0.0
          %963 = vmatpush1.xpose.msra.mxu0 0.0
          %964 = vmatprep.subr.mxu0 0.0
          %965 = vmatpush1.xpose.msra.mxu0 0.0
          %966 = vmatprep.subr.mxu0 0.0
          %967 = vmatpush1.xpose.msra.mxu0 0.0
          %968 = vmatprep.subr.mxu0 0.0
          %969 = vmatpush1.xpose.msra.mxu0 0.0
          %970 = vmatprep.subr.mxu0 0.0
          %971 = vmatpush1.xpose.msra.mxu0 0.0
          %972 = vmatprep.subr.mxu0 0.0
          %973 = vmatpush1.xpose.msra.mxu0 0.0
          %974 = vmatprep.mubr.f32.mxu0 0.0
          %975 = vmatmul.mubr.f32.gmra.mrb[0].mxu0 %v906
          %v976 = vpop.f32.mrb[0].mxu0
          %v977 = vadd.f32 0.0, %v976
          %v978 = vpop.f32.mrb[0].mxu0
          %979 = vdwg.mxu0
          %v980 = vsel %vm563, %v977, -inf
          %981 = vmax.xlane.f32.xlu0 %v980
          %v982 = vpop.xlane.xlu0 %981
          %v983 = vsub.f32 %v977, %v982
          %v984 = vmul.f32 %v983, 1.442695
          %v985 = vpow.pop %v984
          %v986 = vsel %vm563, %v985, 0.0
          %987 = vadd.xlane.f32.xlu0 %v986
          %v988 = vpop.xlane.xlu0 %987
          %v989 = vrcp.pop %v988
          %v990 = vmul.f32 %v985, %v989
          %991 = vrot.lane.b32.xlu0 %v900, 48
          %v992 = vpop.permute.xlu0 %991
          %v995 = vsel %vm563, %v990, 0
          %997 = vmatprep.subr.mxu0 0.0
          %998 = vmatpush1.msra.mxu0 %v992
          %999 = vmatprep.subr.mxu0 0.0
          %1000 = vmatpush1.msra.mxu0 0.0
          %1001 = vmatprep.subr.mxu0 0.0
          %1002 = vmatpush1.msra.mxu0 0.0
          %1003 = vmatprep.subr.mxu0 0.0
          %1004 = vmatpush1.msra.mxu0 0.0
          %1005 = vmatprep.subr.mxu0 0.0
          %1006 = vmatpush1.msra.mxu0 0.0
          %1007 = vmatprep.subr.mxu0 0.0
          %1008 = vmatpush1.msra.mxu0 0.0
          %1009 = vmatprep.subr.mxu0 0.0
          %1010 = vmatpush1.msra.mxu0 0.0
          %1011 = vmatprep.subr.mxu0 0.0
          %1012 = vmatpush1.msra.mxu0 0.0
          %1013 = vmatprep.subr.mxu0 0.0
          %1014 = vmatpush1.msra.mxu0 0.0
          %1015 = vmatprep.subr.mxu0 0.0
          %1016 = vmatpush1.msra.mxu0 0.0
          %1017 = vmatprep.subr.mxu0 0.0
          %1018 = vmatpush1.msra.mxu0 0.0
          %1019 = vmatprep.subr.mxu0 0.0
          %1020 = vmatpush1.msra.mxu0 0.0
          %1021 = vmatprep.subr.mxu0 0.0
          %1022 = vmatpush1.msra.mxu0 0.0
          %1023 = vmatprep.subr.mxu0 0.0
          %1024 = vmatpush1.msra.mxu0 0.0
          %1025 = vmatprep.subr.mxu0 0.0
          %1026 = vmatpush1.msra.mxu0 0.0
          %1027 = vmatprep.subr.mxu0 0.0
          %1028 = vmatpush1.msra.mxu0 0.0
          %1029 = vmatprep.subr.mxu0 0.0
          %1030 = vmatpush1.msra.mxu0 0.0
          %1031 = vmatprep.subr.mxu0 0.0
          %1032 = vmatpush1.msra.mxu0 0.0
          %1033 = vmatprep.subr.mxu0 0.0
          %1034 = vmatpush1.msra.mxu0 0.0
          %1035 = vmatprep.subr.mxu0 0.0
          %1036 = vmatpush1.msra.mxu0 0.0
          %1037 = vmatprep.subr.mxu0 0.0
          %1038 = vmatpush1.msra.mxu0 0.0
          %1039 = vmatprep.subr.mxu0 0.0
          %1040 = vmatpush1.msra.mxu0 0.0
          %1041 = vmatprep.subr.mxu0 0.0
          %1042 = vmatpush1.msra.mxu0 0.0
          %1043 = vmatprep.subr.mxu0 0.0
          %1044 = vmatpush1.msra.mxu0 0.0
          %1045 = vmatprep.subr.mxu0 0.0
          %1046 = vmatpush1.msra.mxu0 0.0
          %1047 = vmatprep.subr.mxu0 0.0
          %1048 = vmatpush1.msra.mxu0 0.0
          %1049 = vmatprep.subr.mxu0 0.0
          %1050 = vmatpush1.msra.mxu0 0.0
          %1051 = vmatprep.subr.mxu0 0.0
          %1052 = vmatpush1.msra.mxu0 0.0
          %1053 = vmatprep.subr.mxu0 0.0
          %1054 = vmatpush1.msra.mxu0 0.0
          %1055 = vmatprep.subr.mxu0 0.0
          %1056 = vmatpush1.msra.mxu0 0.0
          %1057 = vmatprep.subr.mxu0 0.0
          %1058 = vmatpush1.msra.mxu0 0.0
          %1059 = vmatprep.subr.mxu0 0.0
          %1060 = vmatpush1.msra.mxu0 0.0
          %1061 = vmatprep.mubr.f32.mxu0 0.0
          %1062 = vmatmul.mubr.f32.gmra.mrb[0].mxu0 %v995
          %v1063 = vpop.f32.mrb[0].mxu0
          %v1064 = vadd.f32 0.0, %v1063
          %v1065 = vpop.f32.mrb[0].mxu0
          %1066 = vdwg.mxu0
          %1068 = vrot.lane.b32.xlu0 %v1064, 16
          %v1069 = vpop.permute.xlu0 %1068
          %vm1071 = vcmask 195712
          %1072 = vst.msk [vmem:[%s725] sm:$0xff] %vm1071, %v1069
          %v1073 = vld [vmem:[%s558] sm:$0xff]
          %1075 = vrot.lane.b32.xlu0 %v1073, 104
          %v1076 = vpop.permute.xlu0 %1075
          %1077 = vrot.lane.b32.xlu0 %v1073, 72
          %v1078 = vpop.permute.xlu0 %1077
          %v1079 = vsel %vm563, %v1076, 0
          %v1081 = vsel %vm563, %v1078, 0
          %1083 = vmatprep.subr.mxu0 0.0
          %1084 = vmatpush1.xpose.msra.mxu0 %v1081
          %1085 = vmatprep.subr.mxu0 0.0
          %1086 = vmatpush1.xpose.msra.mxu0 0.0
          %1087 = vmatprep.subr.mxu0 0.0
          %1088 = vmatpush1.xpose.msra.mxu0 0.0
          %1089 = vmatprep.subr.mxu0 0.0
          %1090 = vmatpush1.xpose.msra.mxu0 0.0
          %1091 = vmatprep.subr.mxu0 0.0
          %1092 = vmatpush1.xpose.msra.mxu0 0.0
          %1093 = vmatprep.subr.mxu0 0.0
          %1094 = vmatpush1.xpose.msra.mxu0 0.0
          %1095 = vmatprep.subr.mxu0 0.0
          %1096 = vmatpush1.xpose.msra.mxu0 0.0
          %1097 = vmatprep.subr.mxu0 0.0
          %1098 = vmatpush1.xpose.msra.mxu0 0.0
          %1099 = vmatprep.subr.mxu0 0.0
          %1100 = vmatpush1.xpose.msra.mxu0 0.0
          %1101 = vmatprep.subr.mxu0 0.0
          %1102 = vmatpush1.xpose.msra.mxu0 0.0
          %1103 = vmatprep.subr.mxu0 0.0
          %1104 = vmatpush1.xpose.msra.mxu0 0.0
          %1105 = vmatprep.subr.mxu0 0.0
          %1106 = vmatpush1.xpose.msra.mxu0 0.0
          %1107 = vmatprep.subr.mxu0 0.0
          %1108 = vmatpush1.xpose.msra.mxu0 0.0
          %1109 = vmatprep.subr.mxu0 0.0
          %1110 = vmatpush1.xpose.msra.mxu0 0.0
          %1111 = vmatprep.subr.mxu0 0.0
          %1112 = vmatpush1.xpose.msra.mxu0 0.0
          %1113 = vmatprep.subr.mxu0 0.0
          %1114 = vmatpush1.xpose.msra.mxu0 0.0
          %1115 = vmatprep.subr.mxu0 0.0
          %1116 = vmatpush1.xpose.msra.mxu0 0.0
          %1117 = vmatprep.subr.mxu0 0.0
          %1118 = vmatpush1.xpose.msra.mxu0 0.0
          %1119 = vmatprep.subr.mxu0 0.0
          %1120 = vmatpush1.xpose.msra.mxu0 0.0
          %1121 = vmatprep.subr.mxu0 0.0
          %1122 = vmatpush1.xpose.msra.mxu0 0.0
          %1123 = vmatprep.subr.mxu0 0.0
          %1124 = vmatpush1.xpose.msra.mxu0 0.0
          %1125 = vmatprep.subr.mxu0 0.0
          %1126 = vmatpush1.xpose.msra.mxu0 0.0
          %1127 = vmatprep.subr.mxu0 0.0
          %1128 = vmatpush1.xpose.msra.mxu0 0.0
          %1129 = vmatprep.subr.mxu0 0.0
          %1130 = vmatpush1.xpose.msra.mxu0 0.0
          %1131 = vmatprep.subr.mxu0 0.0
          %1132 = vmatpush1.xpose.msra.mxu0 0.0
          %1133 = vmatprep.subr.mxu0 0.0
          %1134 = vmatpush1.xpose.msra.mxu0 0.0
          %1135 = vmatprep.subr.mxu0 0.0
          %1136 = vmatpush1.xpose.msra.mxu0 0.0
          %1137 = vmatprep.subr.mxu0 0.0
          %1138 = vmatpush1.xpose.msra.mxu0 0.0
          %1139 = vmatprep.subr.mxu0 0.0
          %1140 = vmatpush1.xpose.msra.mxu0 0.0
          %1141 = vmatprep.subr.mxu0 0.0
          %1142 = vmatpush1.xpose.msra.mxu0 0.0
          %1143 = vmatprep.subr.mxu0 0.0
          %1144 = vmatpush1.xpose.msra.mxu0 0.0
          %1145 = vmatprep.subr.mxu0 0.0
          %1146 = vmatpush1.xpose.msra.mxu0 0.0
          %1147 = vmatprep.mubr.f32.mxu0 0.0
          %1148 = vmatmul.mubr.f32.gmra.mrb[0].mxu0 %v1079
          %v1149 = vpop.f32.mrb[0].mxu0
          %v1150 = vadd.f32 0.0, %v1149
          %v1151 = vpop.f32.mrb[0].mxu0
          %1152 = vdwg.mxu0
          %v1153 = vsel %vm563, %v1150, -inf
          %1154 = vmax.xlane.f32.xlu0 %v1153
          %v1155 = vpop.xlane.xlu0 %1154
          %v1156 = vsub.f32 %v1150, %v1155
          %v1157 = vmul.f32 %v1156, 1.442695
          %v1158 = vpow.pop %v1157
          %v1159 = vsel %vm563, %v1158, 0.0
          %1160 = vadd.xlane.f32.xlu0 %v1159
          %v1161 = vpop.xlane.xlu0 %1160
          %v1162 = vrcp.pop %v1161
          %v1163 = vmul.f32 %v1158, %v1162
          %1164 = vrot.lane.b32.xlu0 %v1073, 40
          %v1165 = vpop.permute.xlu0 %1164
          %v1168 = vsel %vm563, %v1163, 0
          %1170 = vmatprep.subr.mxu0 0.0
          %1171 = vmatpush1.msra.mxu0 %v1165
          %1172 = vmatprep.subr.mxu0 0.0
          %1173 = vmatpush1.msra.mxu0 0.0
          %1174 = vmatprep.subr.mxu0 0.0
          %1175 = vmatpush1.msra.mxu0 0.0
          %1176 = vmatprep.subr.mxu0 0.0
          %1177 = vmatpush1.msra.mxu0 0.0
          %1178 = vmatprep.subr.mxu0 0.0
          %1179 = vmatpush1.msra.mxu0 0.0
          %1180 = vmatprep.subr.mxu0 0.0
          %1181 = vmatpush1.msra.mxu0 0.0
          %1182 = vmatprep.subr.mxu0 0.0
          %1183 = vmatpush1.msra.mxu0 0.0
          %1184 = vmatprep.subr.mxu0 0.0
          %1185 = vmatpush1.msra.mxu0 0.0
          %1186 = vmatprep.subr.mxu0 0.0
          %1187 = vmatpush1.msra.mxu0 0.0
          %1188 = vmatprep.subr.mxu0 0.0
          %1189 = vmatpush1.msra.mxu0 0.0
          %1190 = vmatprep.subr.mxu0 0.0
          %1191 = vmatpush1.msra.mxu0 0.0
          %1192 = vmatprep.subr.mxu0 0.0
          %1193 = vmatpush1.msra.mxu0 0.0
          %1194 = vmatprep.subr.mxu0 0.0
          %1195 = vmatpush1.msra.mxu0 0.0
          %1196 = vmatprep.subr.mxu0 0.0
          %1197 = vmatpush1.msra.mxu0 0.0
          %1198 = vmatprep.subr.mxu0 0.0
          %1199 = vmatpush1.msra.mxu0 0.0
          %1200 = vmatprep.subr.mxu0 0.0
          %1201 = vmatpush1.msra.mxu0 0.0
          %1202 = vmatprep.subr.mxu0 0.0
          %1203 = vmatpush1.msra.mxu0 0.0
          %1204 = vmatprep.subr.mxu0 0.0
          %1205 = vmatpush1.msra.mxu0 0.0
          %1206 = vmatprep.subr.mxu0 0.0
          %1207 = vmatpush1.msra.mxu0 0.0
          %1208 = vmatprep.subr.mxu0 0.0
          %1209 = vmatpush1.msra.mxu0 0.0
          %1210 = vmatprep.subr.mxu0 0.0
          %1211 = vmatpush1.msra.mxu0 0.0
          %1212 = vmatprep.subr.mxu0 0.0
          %1213 = vmatpush1.msra.mxu0 0.0
          %1214 = vmatprep.subr.mxu0 0.0
          %1215 = vmatpush1.msra.mxu0 0.0
          %1216 = vmatprep.subr.mxu0 0.0
          %1217 = vmatpush1.msra.mxu0 0.0
          %1218 = vmatprep.subr.mxu0 0.0
          %1219 = vmatpush1.msra.mxu0 0.0
          %1220 = vmatprep.subr.mxu0 0.0
          %1221 = vmatpush1.msra.mxu0 0.0
          %1222 = vmatprep.subr.mxu0 0.0
          %1223 = vmatpush1.msra.mxu0 0.0
          %1224 = vmatprep.subr.mxu0 0.0
          %1225 = vmatpush1.msra.mxu0 0.0
          %1226 = vmatprep.subr.mxu0 0.0
          %1227 = vmatpush1.msra.mxu0 0.0
          %1228 = vmatprep.subr.mxu0 0.0
          %1229 = vmatpush1.msra.mxu0 0.0
          %1230 = vmatprep.subr.mxu0 0.0
          %1231 = vmatpush1.msra.mxu0 0.0
          %1232 = vmatprep.subr.mxu0 0.0
          %1233 = vmatpush1.msra.mxu0 0.0
          %1234 = vmatprep.mubr.f32.mxu0 0.0
          %1235 = vmatmul.mubr.f32.gmra.mrb[0].mxu0 %v1168
          %v1236 = vpop.f32.mrb[0].mxu0
          %v1237 = vadd.f32 0.0, %v1236
          %v1238 = vpop.f32.mrb[0].mxu0
          %1239 = vdwg.mxu0
          %1241 = vrot.lane.b32.xlu0 %v1237, 24
          %v1242 = vpop.permute.xlu0 %1241
          %vm1244 = vcmask 261312
          %1245 = vst.msk [vmem:[%s725] sm:$0xff] %vm1244, %v1242
        $region73: #{tpu_custom_call.1} parent=67 // loop_footer
          %s556 = sadd.s32 1, %s552
        $region74: #{tpu_custom_call.1} parent=67 // loop_footer_branch
          %551 = sbr.rel target = $region70
        $region75: #{tpu_custom_call.1} parent=67 // loop_exit
          _
        %v1246 = vld [vmem:[#allocation3] sm:$0xff]
        %v1247 = vld [vmem:[#allocation3 + $0x8] sm:$0xff]
        %v1248 = vld [vmem:[%s4] sm:$0xff]
        %v1249 = vld [vmem:[%s4 + $0x8] sm:$0xff]
        %v1250 = vld [vmem:[%s4 + $0x10] sm:$0xff]
        %v1251 = vld [vmem:[%s4 + $0x18] sm:$0xff]
        %v1253 = vsel %vm419, %v1246, 0
        %v1256 = vsel %vm419, %v1247, 0
        %1258 = vmatprep.subr.mxu0 0.0
        %1259 = vmatpush1.msra.mxu0 %v1248
        %1260 = vmatprep.subr.mxu0 0.0
        %1261 = vmatpush1.msra.mxu0 %v1249
        %1262 = vmatprep.subr.mxu0 0.0
        %1263 = vmatpush1.msra.mxu0 %v1250
        %1264 = vmatprep.subr.mxu0 0.0
        %1265 = vmatpush1.msra.mxu0 %v1251
        %1266 = vmatprep.subr.mxu0 0.0
        %1267 = vmatpush1.msra.mxu0 0.0
        %1268 = vmatprep.subr.mxu0 0.0
        %1269 = vmatpush1.msra.mxu0 0.0
        %1270 = vmatprep.subr.mxu0 0.0
        %1271 = vmatpush1.msra.mxu0 0.0
        %1272 = vmatprep.subr.mxu0 0.0
        %1273 = vmatpush1.msra.mxu0 0.0
        %1274 = vmatprep.subr.mxu0 0.0
        %1275 = vmatpush1.msra.mxu0 0.0
        %1276 = vmatprep.subr.mxu0 0.0
        %1277 = vmatpush1.msra.mxu0 0.0
        %1278 = vmatprep.subr.mxu0 0.0
        %1279 = vmatpush1.msra.mxu0 0.0
        %1280 = vmatprep.subr.mxu0 0.0
        %1281 = vmatpush1.msra.mxu0 0.0
        %1282 = vmatprep.subr.mxu0 0.0
        %1283 = vmatpush1.msra.mxu0 0.0
        %1284 = vmatprep.subr.mxu0 0.0
        %1285 = vmatpush1.msra.mxu0 0.0
        %1286 = vmatprep.subr.mxu0 0.0
        %1287 = vmatpush1.msra.mxu0 0.0
        %1288 = vmatprep.subr.mxu0 0.0
        %1289 = vmatpush1.msra.mxu0 0.0
        %1290 = vmatprep.subr.mxu0 0.0
        %1291 = vmatpush1.msra.mxu0 0.0
        %1292 = vmatprep.subr.mxu0 0.0
        %1293 = vmatpush1.msra.mxu0 0.0
        %1294 = vmatprep.subr.mxu0 0.0
        %1295 = vmatpush1.msra.mxu0 0.0
        %1296 = vmatprep.subr.mxu0 0.0
        %1297 = vmatpush1.msra.mxu0 0.0
        %1298 = vmatprep.subr.mxu0 0.0
        %1299 = vmatpush1.msra.mxu0 0.0
        %1300 = vmatprep.subr.mxu0 0.0
        %1301 = vmatpush1.msra.mxu0 0.0
        %1302 = vmatprep.subr.mxu0 0.0
        %1303 = vmatpush1.msra.mxu0 0.0
        %1304 = vmatprep.subr.mxu0 0.0
        %1305 = vmatpush1.msra.mxu0 0.0
        %1306 = vmatprep.subr.mxu0 0.0
        %1307 = vmatpush1.msra.mxu0 0.0
        %1308 = vmatprep.subr.mxu0 0.0
        %1309 = vmatpush1.msra.mxu0 0.0
        %1310 = vmatprep.subr.mxu0 0.0
        %1311 = vmatpush1.msra.mxu0 0.0
        %1312 = vmatprep.subr.mxu0 0.0
        %1313 = vmatpush1.msra.mxu0 0.0
        %1314 = vmatprep.subr.mxu0 0.0
        %1315 = vmatpush1.msra.mxu0 0.0
        %1316 = vmatprep.subr.mxu0 0.0
        %1317 = vmatpush1.msra.mxu0 0.0
        %1318 = vmatprep.subr.mxu0 0.0
        %1319 = vmatpush1.msra.mxu0 0.0
        %1320 = vmatprep.subr.mxu0 0.0
        %1321 = vmatpush1.msra.mxu0 0.0
        %1322 = vmatprep.mubr.f32.mxu0 0.0
        %1323 = vmatmul.mubr.f32.gmra.mrb[0].mxu0 %v1253
        %v1324 = vpop.f32.mrb[0].mxu0
        %v1325 = vadd.f32 0.0, %v1324
        %v1326 = vpop.f32.mrb[0].mxu0
        %1327 = vmatprep.mubr.f32.mxu0 0.0
        %1328 = vmatmul.mubr.f32.gmra.mrb[0].mxu0 %v1256
        %v1329 = vpop.f32.mrb[0].mxu0
        %v1330 = vadd.f32 0.0, %v1329
        %v1331 = vpop.f32.mrb[0].mxu0
        %1332 = vdwg.mxu0
        %v1333 = vadd.f32 %v415, %v1325
        %v1334 = vadd.f32 %v416, %v1330
        %v1335 = vld [vmem:[%s5] sm:$0x1]
        %v1337 = vlaneseq
        %v1338 = vshrl.u32 %v1337, 7
        %v1339 = vsub.s32 0, %v1338
        %v1340 = vrot.slane %v1335, %v1339
        %v1342 = vadd.f32 %v1333, %v1340
        %v1343 = vadd.f32 %v1334, %v1340
        %v1344 = vld [vmem:[%s6] sm:$0x1]
        %v1345 = vld [vmem:[%s7] sm:$0x1]
        %v1346 = vsel %vm419, %v1342, 0.0
        %1347 = vadd.xlane.f32.xlu0 %v1346
        %v1348 = vpop.xlane.xlu0 %1347
        %v1349 = vsel %vm419, %v1343, 0.0
        %1350 = vadd.xlane.f32.xlu0 %v1349
        %v1351 = vpop.xlane.xlu0 %1350
        %v1352 = vmul.f32 %v1348, %v426
        %v1353 = vmul.f32 %v1351, %v426
        %v1354 = vsub.f32 %v1342, %v1352
        %v1355 = vsub.f32 %v1343, %v1353
        %v1356 = vmul.f32 %v1354, %v1354
        %v1357 = vmul.f32 %v1355, %v1355
        %v1358 = vsel %vm419, %v1356, 0.0
        %1359 = vadd.xlane.f32.xlu0 %v1358
        %v1360 = vpop.xlane.xlu0 %1359
        %v1361 = vsel %vm419, %v1357, 0.0
        %1362 = vadd.xlane.f32.xlu0 %v1361
        %v1363 = vpop.xlane.xlu0 %1362
        %v1364 = vmul.f32 %v1360, %v426
        %v1365 = vmul.f32 %v1363, %v426
        %v1366 = vadd.f32 %v1364, 1e-05
        %v1367 = vadd.f32 %v1365, 1e-05
        %v1368 = vrsqrt.pop %v1366
        %v1369 = vrsqrt.pop %v1367
        %v1370 = vmul.f32 %v1354, %v1368
        %v1371 = vmul.f32 %v1355, %v1369
        %v1373 = vlaneseq
        %v1374 = vshrl.u32 %v1373, 7
        %v1375 = vsub.s32 0, %v1374
        %v1376 = vrot.slane %v1344, %v1375
        %v1378 = vmul.f32 %v1370, %v1376
        %v1379 = vmul.f32 %v1371, %v1376
        %v1381 = vlaneseq
        %v1382 = vshrl.u32 %v1381, 7
        %v1383 = vsub.s32 0, %v1382
        %v1384 = vrot.slane %v1345, %v1383
        %v1386 = vadd.f32 %v1378, %v1384
        %v1387 = vadd.f32 %v1379, %v1384
        %v1388 = vld [vmem:[%s8] sm:$0xff]
        %v1389 = vld [vmem:[%s8 + $0x8] sm:$0xff]
        %v1390 = vld [vmem:[%s8 + $0x10] sm:$0xff]
        %v1391 = vld [vmem:[%s8 + $0x18] sm:$0xff]
        %v1392 = vld [vmem:[%s9] sm:$0x1]
        %v1394 = vlaneseq
        %v1395 = vshrl.u32 %v1394, 7
        %v1396 = vsub.s32 0, %v1395
        %v1397 = vrot.slane %v1392, %v1396
        %v1400 = vsel %vm419, %v1386, 0
        %v1403 = vsel %vm419, %v1387, 0
        %1405 = vmatprep.subr.mxu0 0.0
        %1406 = vmatpush1.msra.mxu0 %v1388
        %1407 = vmatprep.subr.mxu0 0.0
        %1408 = vmatpush1.msra.mxu0 %v1389
        %1409 = vmatprep.subr.mxu0 0.0
        %1410 = vmatpush1.msra.mxu0 %v1390
        %1411 = vmatprep.subr.mxu0 0.0
        %1412 = vmatpush1.msra.mxu0 %v1391
        %1413 = vmatprep.subr.mxu0 0.0
        %1414 = vmatpush1.msra.mxu0 0.0
        %1415 = vmatprep.subr.mxu0 0.0
        %1416 = vmatpush1.msra.mxu0 0.0
        %1417 = vmatprep.subr.mxu0 0.0
        %1418 = vmatpush1.msra.mxu0 0.0
        %1419 = vmatprep.subr.mxu0 0.0
        %1420 = vmatpush1.msra.mxu0 0.0
        %1421 = vmatprep.subr.mxu0 0.0
        %1422 = vmatpush1.msra.mxu0 0.0
        %1423 = vmatprep.subr.mxu0 0.0
        %1424 = vmatpush1.msra.mxu0 0.0
        %1425 = vmatprep.subr.mxu0 0.0
        %1426 = vmatpush1.msra.mxu0 0.0
        %1427 = vmatprep.subr.mxu0 0.0
        %1428 = vmatpush1.msra.mxu0 0.0
        %1429 = vmatprep.subr.mxu0 0.0
        %1430 = vmatpush1.msra.mxu0 0.0
        %1431 = vmatprep.subr.mxu0 0.0
        %1432 = vmatpush1.msra.mxu0 0.0
        %1433 = vmatprep.subr.mxu0 0.0
        %1434 = vmatpush1.msra.mxu0 0.0
        %1435 = vmatprep.subr.mxu0 0.0
        %1436 = vmatpush1.msra.mxu0 0.0
        %1437 = vmatprep.subr.mxu0 0.0
        %1438 = vmatpush1.msra.mxu0 0.0
        %1439 = vmatprep.subr.mxu0 0.0
        %1440 = vmatpush1.msra.mxu0 0.0
        %1441 = vmatprep.subr.mxu0 0.0
        %1442 = vmatpush1.msra.mxu0 0.0
        %1443 = vmatprep.subr.mxu0 0.0
        %1444 = vmatpush1.msra.mxu0 0.0
        %1445 = vmatprep.subr.mxu0 0.0
        %1446 = vmatpush1.msra.mxu0 0.0
        %1447 = vmatprep.subr.mxu0 0.0
        %1448 = vmatpush1.msra.mxu0 0.0
        %1449 = vmatprep.subr.mxu0 0.0
        %1450 = vmatpush1.msra.mxu0 0.0
        %1451 = vmatprep.subr.mxu0 0.0
        %1452 = vmatpush1.msra.mxu0 0.0
        %1453 = vmatprep.subr.mxu0 0.0
        %1454 = vmatpush1.msra.mxu0 0.0
        %1455 = vmatprep.subr.mxu0 0.0
        %1456 = vmatpush1.msra.mxu0 0.0
        %1457 = vmatprep.subr.mxu0 0.0
        %1458 = vmatpush1.msra.mxu0 0.0
        %1459 = vmatprep.subr.mxu0 0.0
        %1460 = vmatpush1.msra.mxu0 0.0
        %1461 = vmatprep.subr.mxu0 0.0
        %1462 = vmatpush1.msra.mxu0 0.0
        %1463 = vmatprep.subr.mxu0 0.0
        %1464 = vmatpush1.msra.mxu0 0.0
        %1465 = vmatprep.subr.mxu0 0.0
        %1466 = vmatpush1.msra.mxu0 0.0
        %1467 = vmatprep.subr.mxu0 0.0
        %1468 = vmatpush1.msra.mxu0 0.0
        %1469 = vmatprep.mubr.f32.mxu0 0.0
        %1470 = vmatmul.mubr.f32.gmra.mrb[0].mxu0 %v1400
        %v1471 = vpop.f32.mrb[0].mxu0
        %v1472 = vadd.f32 %v1397, %v1471
        %v1473 = vpop.f32.mrb[0].mxu0
        %1474 = vmatprep.mubr.f32.mxu0 0.0
        %1475 = vmatmul.mubr.f32.gmra.mrb[0].mxu0 %v1403
        %v1476 = vpop.f32.mrb[0].mxu0
        %v1477 = vadd.f32 %v1397, %v1476
        %v1478 = vpop.f32.mrb[0].mxu0
        %1479 = vdwg.mxu0
        %v1480 = vmul.f32 %v1472, 0.5
        %v1481 = vmul.f32 %v1477, 0.5
        %v1482 = vmul.f32 %v1472, 0.70710677
        %v1483 = vmul.f32 %v1477, 0.70710677
        %v1484 = verf.f32.pop %v1482
        %v1485 = verf.f32.pop %v1483
        %v1486 = vadd.f32 %v1484, 1.0
        %v1487 = vadd.f32 %v1485, 1.0
        %v1488 = vmul.f32 %v1480, %v1486
        %v1489 = vmul.f32 %v1481, %v1487
        %v1490 = vld [vmem:[%s10] sm:$0xff]
        %v1491 = vld [vmem:[%s10 + $0x8] sm:$0xff]
        %v1492 = vld [vmem:[%s10 + $0x10] sm:$0xff]
        %v1493 = vld [vmem:[%s10 + $0x18] sm:$0xff]
        %v1494 = vld [vmem:[%s10 + $0x20] sm:$0xff]
        %v1495 = vld [vmem:[%s10 + $0x28] sm:$0xff]
        %v1496 = vld [vmem:[%s10 + $0x30] sm:$0xff]
        %v1497 = vld [vmem:[%s10 + $0x38] sm:$0xff]
        %v1498 = vld [vmem:[%s10 + $0x40] sm:$0xff]
        %v1499 = vld [vmem:[%s10 + $0x48] sm:$0xff]
        %v1500 = vld [vmem:[%s10 + $0x50] sm:$0xff]
        %v1501 = vld [vmem:[%s10 + $0x58] sm:$0xff]
        %v1502 = vld [vmem:[%s10 + $0x60] sm:$0xff]
        %v1503 = vld [vmem:[%s10 + $0x68] sm:$0xff]
        %v1504 = vld [vmem:[%s10 + $0x70] sm:$0xff]
        %v1505 = vld [vmem:[%s10 + $0x78] sm:$0xff]
        %v1506 = vld [vmem:[%s11] sm:$0x1]
        %v1508 = vlaneseq
        %v1509 = vshrl.u32 %v1508, 7
        %v1510 = vsub.s32 0, %v1509
        %v1511 = vrot.slane %v1506, %v1510
        %1513 = vmatprep.subr.mxu0 0.0
        %1514 = vmatpush1.msra.mxu0 %v1490
        %1515 = vmatprep.subr.mxu0 0.0
        %1516 = vmatpush1.msra.mxu0 %v1491
        %1517 = vmatprep.subr.mxu0 0.0
        %1518 = vmatpush1.msra.mxu0 %v1492
        %1519 = vmatprep.subr.mxu0 0.0
        %1520 = vmatpush1.msra.mxu0 %v1493
        %1521 = vmatprep.subr.mxu0 0.0
        %1522 = vmatpush1.msra.mxu0 %v1494
        %1523 = vmatprep.subr.mxu0 0.0
        %1524 = vmatpush1.msra.mxu0 %v1495
        %1525 = vmatprep.subr.mxu0 0.0
        %1526 = vmatpush1.msra.mxu0 %v1496
        %1527 = vmatprep.subr.mxu0 0.0
        %1528 = vmatpush1.msra.mxu0 %v1497
        %1529 = vmatprep.subr.mxu0 0.0
        %1530 = vmatpush1.msra.mxu0 %v1498
        %1531 = vmatprep.subr.mxu0 0.0
        %1532 = vmatpush1.msra.mxu0 %v1499
        %1533 = vmatprep.subr.mxu0 0.0
        %1534 = vmatpush1.msra.mxu0 %v1500
        %1535 = vmatprep.subr.mxu0 0.0
        %1536 = vmatpush1.msra.mxu0 %v1501
        %1537 = vmatprep.subr.mxu0 0.0
        %1538 = vmatpush1.msra.mxu0 %v1502
        %1539 = vmatprep.subr.mxu0 0.0
        %1540 = vmatpush1.msra.mxu0 %v1503
        %1541 = vmatprep.subr.mxu0 0.0
        %1542 = vmatpush1.msra.mxu0 %v1504
        %1543 = vmatprep.subr.mxu0 0.0
        %1544 = vmatpush1.msra.mxu0 %v1505
        %1545 = vmatprep.subr.mxu0 0.0
        %1546 = vmatpush1.msra.mxu0 0.0
        %1547 = vmatprep.subr.mxu0 0.0
        %1548 = vmatpush1.msra.mxu0 0.0
        %1549 = vmatprep.subr.mxu0 0.0
        %1550 = vmatpush1.msra.mxu0 0.0
        %1551 = vmatprep.subr.mxu0 0.0
        %1552 = vmatpush1.msra.mxu0 0.0
        %1553 = vmatprep.subr.mxu0 0.0
        %1554 = vmatpush1.msra.mxu0 0.0
        %1555 = vmatprep.subr.mxu0 0.0
        %1556 = vmatpush1.msra.mxu0 0.0
        %1557 = vmatprep.subr.mxu0 0.0
        %1558 = vmatpush1.msra.mxu0 0.0
        %1559 = vmatprep.subr.mxu0 0.0
        %1560 = vmatpush1.msra.mxu0 0.0
        %1561 = vmatprep.subr.mxu0 0.0
        %1562 = vmatpush1.msra.mxu0 0.0
        %1563 = vmatprep.subr.mxu0 0.0
        %1564 = vmatpush1.msra.mxu0 0.0
        %1565 = vmatprep.subr.mxu0 0.0
        %1566 = vmatpush1.msra.mxu0 0.0
        %1567 = vmatprep.subr.mxu0 0.0
        %1568 = vmatpush1.msra.mxu0 0.0
        %1569 = vmatprep.subr.mxu0 0.0
        %1570 = vmatpush1.msra.mxu0 0.0
        %1571 = vmatprep.subr.mxu0 0.0
        %1572 = vmatpush1.msra.mxu0 0.0
        %1573 = vmatprep.subr.mxu0 0.0
        %1574 = vmatpush1.msra.mxu0 0.0
        %1575 = vmatprep.subr.mxu0 0.0
        %1576 = vmatpush1.msra.mxu0 0.0
        %1577 = vmatprep.mubr.f32.mxu0 0.0
        %1578 = vmatmul.mubr.f32.gmra.mrb[0].mxu0 %v1488
        %v1579 = vpop.f32.mrb[0].mxu0
        %v1580 = vadd.f32 %v1511, %v1579
        %v1581 = vpop.f32.mrb[0].mxu0
        %1582 = vmatprep.mubr.f32.mxu0 0.0
        %1583 = vmatmul.mubr.f32.gmra.mrb[0].mxu0 %v1489
        %v1584 = vpop.f32.mrb[0].mxu0
        %v1585 = vadd.f32 %v1511, %v1584
        %v1586 = vpop.f32.mrb[0].mxu0
        %1587 = vdwg.mxu0
        %v1588 = vadd.f32 %v1342, %v1580
        %v1589 = vadd.f32 %v1343, %v1585
        %1590 = vst.msk [vmem:[%s407] sm:$0xff] %vm419, %v1588
        %1591 = vst.msk [vmem:[%s407 + $0x8] sm:$0xff] %vm419, %v1589
        %s1592 = sand.u32 %s291, 1
        %s1593 = scalar_lea.sflag [#allocation5], %s1592
        %s1594 = sand.u32 %s291, 1
        %s1595 = smul.addr %s1594, 16
        %s1596 = scalar_lea.vmem [#allocation4], %s1595
        // Predicated region
        $region76: #{tpu_custom_call.1} parent=67 // pred_check
          %p1597 = pneg %p301
        $region77: #{tpu_custom_call.1} parent=67 // pred_check_branch
          %1599 = sbr.rel (%p1597) target = $region79
        $region78: #{tpu_custom_call.1} parent=67 // pred_region
          %s1600 = smul.u32 2, %s26
          %s1602 = ssub.s32 256, 256
          %1603 = vsyncadd %s1593, %s1602
          %s1604 = smul.addr %s1600, 128
          %s1605 = scalar_lea.hbm %s12, %s1604
          %s1606 = sshll.u32 %s1596, 4
          %s1607 = int_to_ptr.vmem [resolvable:$true] %s1606
          %1612 = dma.vmem_to_hbm [thread:$0]  %s1607, 256, %s1605, %s1593, 128, 128, 8
        $region79: #{tpu_custom_call.1} parent=67 // pred_fallthru
          _
      $region68: #{tpu_custom_call.1} parent=5 // pred_fallthru
        _
      %p1613 = scmp.le.s32.totalorder 2, %s21
      // Predicated region
      $region80: #{tpu_custom_call.1} parent=5 // pred_check
        %p1614 = pneg %p1613
      $region81: #{tpu_custom_call.1} parent=5 // pred_check_branch
        %1616 = sbr.rel (%p1614) target = $region83
      $region82: #{tpu_custom_call.1} parent=5 // pred_region
        %s1617 = ssub.s32 %s21, 2
        // Predicated region
        $region84: #{tpu_custom_call.1} parent=82 // pred_check
          %p1618 = pneg %p307
        $region85: #{tpu_custom_call.1} parent=82 // pred_check_branch
          %1620 = sbr.rel (%p1618) target = $region87
        $region86: #{tpu_custom_call.1} parent=82 // pred_region
          %s1621 = sand.u32 %s292, 1
          %s1622 = scalar_lea.sflag [#allocation5], %s1621
          %s1623 = sand.u32 %s292, 1
          %s1624 = smul.addr %s1623, 16
          %s1625 = scalar_lea.vmem [#allocation4], %s1624
          %1626 = dma.done %s1622, 256
        $region87: #{tpu_custom_call.1} parent=82 // pred_fallthru
          _
      $region83: #{tpu_custom_call.1} parent=5 // pred_fallthru
        _
    $region6: #{tpu_custom_call.1} parent=1 // loop_footer
      %s25 = sadd.s32 1, %s21
    $region7: #{tpu_custom_call.1} parent=1 // loop_footer_branch
      %20 = sbr.rel target = $region3
    $region8: #{tpu_custom_call.1} parent=1 // loop_exit
      _
    %1627 = vsyncpa [#allocation5], 1
    %s1628 = scalar_lea.sflag [#allocation5], 1
    %1629 = vsyncpa %s1628, 1

</llo_original>
